<compile_context>
chip_gen: v7x
topology: tpu7x:2x2x1
jax: 0.10.0
libtpu: 0.0.40
codegen_flags: <defaults>
</compile_context>

<pallas_src>
import functools

import jax
import jax.numpy as jnp
from jax.experimental import pallas as pl
from jax.experimental.pallas import tpu as pltpu

BN_EPS = 1e-5   # nn.BatchNorm2d default eps
LANE = 128


def _round_up(x, m):
    return (x + m - 1) // m * m


def _silu(v):
    return v * jax.nn.sigmoid(v)


def _c2f_kernel(x_ref, m_ref, wa_ref, wb_ref, k1_ref, k2_ref, wc_ref,
                pvc_ref, pvo_ref, o_ref, buf_a, buf_b, *, H, W, n, shortcut):
    Wp = W + 2                # padded row width
    L = H * Wp                # rows of the conv-output ("q") layout
    OFF = Wp + 1              # flat offset of spatial (0, 0) in the padded slab
    CP = wa_ref.shape[1]      # padded hidden channel count
    f32 = jnp.float32
    bf16 = jnp.bfloat16

    xp = x_ref[0]                         # (NpB, C1p) bf16, zero padding ring
    m = m_ref[...]                        # (NpB, 1) f32 interior mask
    m_in = m[OFF:OFF + L, :]              # (L, 1)
    pvc = pvc_ref[...]                    # (4 + 4n, CP) folded-BN scale/shift
    pvo = pvo_ref[...]                    # (2, C2p)     folded-BN scale/shift (cv2)

    # ---- cv1 (1x1 conv + BN + SiLU), split into the two c-channel chunks ----
    # y0 only feeds the final 1x1 conv -> compute on interior rows only.
    y0 = _silu(jnp.dot(xp[OFF:OFF + L, :], wa_ref[...],
                       preferred_element_type=f32) * pvc[0:1] + pvc[1:2])
    # y1 feeds a 3x3 conv -> full slab with an exact zero padding ring.
    y1 = _silu(jnp.dot(xp, wb_ref[...],
                       preferred_element_type=f32) * pvc[2:3] + pvc[3:4]) * m

    # ---- cv2 accumulation: concat realized as sum of per-chunk matmuls ----
    y1_bf = y1.astype(bf16)
    z = jnp.dot(y0.astype(bf16), wc_ref[0], preferred_element_type=f32)
    z = z + jnp.dot(y1_bf[OFF:OFF + L, :], wc_ref[1], preferred_element_type=f32)

    # Re-padding scratch buffers: zeroed once; only interior rows are rewritten
    # (the mask multiply clears the in-range ring columns).
    buf_a[...] = jnp.zeros_like(buf_a)
    if n > 1:
        buf_b[...] = jnp.zeros_like(buf_b)

    prev, prev_bf = y1, y1_bf             # bottleneck input (zero ring)
    for i in range(n):
        # Bottleneck cv1: 3x3 conv as 9 shifted-slice bf16 matmuls, f32 acc.
        s1 = jnp.zeros((L, CP), f32)
        for t in range(9):
            dh, dw = divmod(t, 3)
            s = dh * Wp + dw
            s1 = s1 + jnp.dot(prev_bf[s:s + L, :], k1_ref[i * 9 + t],
                              preferred_element_type=f32)
        t1 = _silu(s1 * pvc[4 + 4 * i:5 + 4 * i] + pvc[5 + 4 * i:6 + 4 * i])
        buf_a[pl.ds(OFF, L), :] = t1 * m_in          # re-pad with zero ring
        mid_bf = buf_a[...].astype(bf16)

        # Bottleneck cv2: second 3x3 conv.
        s2 = jnp.zeros((L, CP), f32)
        for t in range(9):
            dh, dw = divmod(t, 3)
            s = dh * Wp + dw
            s2 = s2 + jnp.dot(mid_bf[s:s + L, :], k2_ref[i * 9 + t],
                              preferred_element_type=f32)
        t2 = _silu(s2 * pvc[6 + 4 * i:7 + 4 * i] + pvc[7 + 4 * i:8 + 4 * i])
        if shortcut:
            t2 = t2 + prev[OFF:OFF + L, :]           # residual in f32

        z = z + jnp.dot(t2.astype(bf16), wc_ref[2 + i],
                        preferred_element_type=f32)

        if i + 1 < n:                                 # re-pad for next bottleneck
            buf_b[pl.ds(OFF, L), :] = t2 * m_in
            prev = buf_b[...]
            prev_bf = prev.astype(bf16)

    # ---- cv2 epilogue: BN + SiLU, lane-dense f32 store ----
    o_ref[0] = _silu(z * pvo[0:1] + pvo[1:2])


def c2f_pallas(x_nchw, params, *, n=1, shortcut=False):
    B, C1, H, W = x_nchw.shape
    c = params["cv1_w"].shape[0] // 2
    C2 = params["cv2_w"].shape[0]
    Wp, Hp = W + 2, H + 3
    NpB = Hp * Wp
    L = H * Wp
    C1p, CP, C2p = (_round_up(v, LANE) for v in (C1, c, C2))
    f32, bf16 = jnp.float32, jnp.bfloat16

    # ---- input: NCHW -> padded channels-last P-layout (bf16 matmul operand) ----
    x = jnp.transpose(x_nchw, (0, 2, 3, 1)).astype(f32)
    x = jnp.pad(x, ((0, 0), (1, 2), (1, 1), (0, C1p - C1)))
    x = x.reshape(B, NpB, C1p).astype(bf16)

    # ---- interior mask (1 on real pixels, 0 on the padding ring) ----
    hh = jnp.arange(Hp)[:, None]
    ww = jnp.arange(Wp)[None, :]
    mask = ((hh >= 1) & (hh <= H) & (ww >= 1) & (ww <= W))
    mask = mask.astype(f32).reshape(NpB, 1)

    def fold_bn(gamma, beta, rm, rv):
        s = gamma / jnp.sqrt(rv + BN_EPS)
        return s, beta - rm * s

    def pad_vec(v, cpad):
        return jnp.pad(v.astype(f32), (0, cpad - v.shape[0]))

    def pad_mat(w, rpad, cpad):
        return jnp.pad(w.astype(f32),
                       ((0, rpad - w.shape[0]), (0, cpad - w.shape[1])))

    # cv1 (1x1): (2c, C1, 1, 1); chunk 0 -> y0, chunk 1 -> y1.
    w_cv1 = params["cv1_w"][:, :, 0, 0]
    s_cv1, b_cv1 = fold_bn(*params["cv1_bn"])
    wa = pad_mat(w_cv1[:c].T, C1p, CP).astype(bf16)
    wb = pad_mat(w_cv1[c:].T, C1p, CP).astype(bf16)

    # Bottleneck 3x3 convs: (Cout, Cin, 3, 3) -> 9 (Cin, Cout) taps, padded.
    def taps(w):
        t = jnp.transpose(w, (2, 3, 1, 0)).reshape(9, w.shape[1], w.shape[0])
        return jnp.pad(t.astype(f32),
                       ((0, 0), (0, CP - w.shape[1]), (0, CP - w.shape[0])))

    k1 = jnp.concatenate([taps(params["m_cv1_w"][i]) for i in range(n)], 0).astype(bf16)
    k2 = jnp.concatenate([taps(params["m_cv2_w"][i]) for i in range(n)], 0).astype(bf16)

    # cv2 (1x1): (C2, (2+n)c, 1, 1) -> one (CP, C2p) chunk per concat member.
    w_cv2 = params["cv2_w"][:, :, 0, 0]
    s_cv2, b_cv2 = fold_bn(*params["cv2_bn"])
    wc = jnp.stack([pad_mat(w_cv2[:, j * c:(j + 1) * c].T, CP, C2p)
                    for j in range(n + 2)]).astype(bf16)

    # Folded-BN scale/shift tables.
    rows = [pad_vec(s_cv1[:c], CP), pad_vec(b_cv1[:c], CP),
            pad_vec(s_cv1[c:], CP), pad_vec(b_cv1[c:], CP)]
    for i in range(n):
        s1, b1 = fold_bn(*[a[i] for a in params["m_cv1_bn"]])
        s2, b2 = fold_bn(*[a[i] for a in params["m_cv2_bn"]])
        rows += [pad_vec(s1, CP), pad_vec(b1, CP), pad_vec(s2, CP), pad_vec(b2, CP)]
    pvc = jnp.stack(rows)                                        # (4+4n, CP)
    pvo = jnp.stack([pad_vec(s_cv2, C2p), pad_vec(b_cv2, C2p)])  # (2, C2p)

    kernel = functools.partial(_c2f_kernel, H=H, W=W, n=n, shortcut=shortcut)
    full = lambda shape: pl.BlockSpec(shape, lambda b: (0,) * len(shape))

    # Explicit VMEM budget (feedback): size to actual blocks, with headroom.
    block_bytes = (NpB * C1p * 2 + L * C2p * 4                     # x + out blocks
                   + 2 * C1p * CP * 2 + 18 * n * CP * CP * 2       # bf16 weights
                   + (n + 2) * CP * C2p * 2
                   + (6 + 4 * n) * max(CP, C2p) * 4 + NpB * 4      # params + mask
                   + 2 * NpB * CP * 4)                             # scratch
    vmem_limit = int(min(64 * 2**20, max(32 * 2**20, 4 * block_bytes + 16 * 2**20)))

    out = pl.pallas_call(
        kernel,
        out_shape=jax.ShapeDtypeStruct((B, L, C2p), f32),
        grid_spec=pltpu.PrefetchScalarGridSpec(
            num_scalar_prefetch=0,
            grid=(B,),
            in_specs=[
                pl.BlockSpec((1, NpB, C1p), lambda b: (b, 0, 0)),
                full((NpB, 1)),
                full((C1p, CP)),
                full((C1p, CP)),
                full((9 * n, CP, CP)),
                full((9 * n, CP, CP)),
                full((n + 2, CP, C2p)),
                full((4 + 4 * n, CP)),
                full((2, C2p)),
            ],
            out_specs=pl.BlockSpec((1, L, C2p), lambda b: (b, 0, 0)),
            scratch_shapes=[pltpu.VMEM((NpB, CP), f32),
                            pltpu.VMEM((NpB, CP), f32)],
        ),
        compiler_params=pltpu.CompilerParams(
            dimension_semantics=("parallel",),
            vmem_limit_bytes=vmem_limit),
    )(x, mask, wa, wb, k1, k2, wc, pvc, pvo)

    # q-layout -> NCHW, dropping the padded columns / channels.
    out = out.reshape(B, H, Wp, C2p)[:, :, :W, :C2]
    return jnp.transpose(out, (0, 3, 1, 2))


# --------------------------- pure-JAX reference ---------------------------
def _conv_bn_silu_ref(x_nhwc, w_oihw, gamma, beta, rm, rv):
    w = jnp.transpose(w_oihw, (2, 3, 1, 0)).astype(jnp.bfloat16)
    y = jax.lax.conv_general_dilated(
        x_nhwc.astype(jnp.bfloat16), w, (1, 1), "SAME",
        dimension_numbers=("NHWC", "HWIO", "NHWC"),
        preferred_element_type=jnp.float32)
    s = gamma / jnp.sqrt(rv + BN_EPS)
    y = y * s + (beta - rm * s)
    return y * jax.nn.sigmoid(y)


def c2f_reference(x_nchw, params, *, n=1, shortcut=False):
    x = jnp.transpose(x_nchw, (0, 2, 3, 1)).astype(jnp.float32)
    c = params["cv1_w"].shape[0] // 2
    y = _conv_bn_silu_ref(x, params["cv1_w"], *params["cv1_bn"])
    ys = [y[..., :c], y[..., c:]]
    for i in range(n):
        t = ys[-1]
        h = _conv_bn_silu_ref(t, params["m_cv1_w"][i],
                              *[a[i] for a in params["m_cv1_bn"]])
        h = _conv_bn_silu_ref(h, params["m_cv2_w"][i],
                              *[a[i] for a in params["m_cv2_bn"]])
        ys.append(t + h if shortcut else h)
    cat = jnp.concatenate(ys, axis=-1)
    out = _conv_bn_silu_ref(cat, params["cv2_w"], *params["cv2_bn"])
    return jnp.transpose(out, (0, 3, 1, 2))


def make_c2f_params(key, c1, c2, n, e=0.5):
    c = int(c2 * e)
    ks = iter(jax.random.split(key, 64))

    def conv_w(k, cout, cin, ksize):
        fan_in = float(cin * ksize * ksize)
        return jax.random.normal(k, (cout, cin, ksize, ksize), jnp.float32) / jnp.sqrt(fan_in)

    def bn(cch):
        return (jax.random.normal(next(ks), (cch,)) * 0.1 + 1.0,
                jax.random.normal(next(ks), (cch,)) * 0.1,
                jax.random.normal(next(ks), (cch,)) * 0.1,
                jax.random.uniform(next(ks), (cch,), minval=0.5, maxval=1.5))

    return {
        "cv1_w": conv_w(next(ks), 2 * c, c1, 1),
        "cv1_bn": bn(2 * c),
        "m_cv1_w": jnp.stack([conv_w(next(ks), c, c, 3) for _ in range(n)]),
        "m_cv1_bn": tuple(jnp.stack(v) for v in zip(*[bn(c) for _ in range(n)])),
        "m_cv2_w": jnp.stack([conv_w(next(ks), c, c, 3) for _ in range(n)]),
        "m_cv2_bn": tuple(jnp.stack(v) for v in zip(*[bn(c) for _ in range(n)])),
        "cv2_w": conv_w(next(ks), c2, (2 + n) * c, 1),
        "cv2_bn": bn(c2),
    }


if __name__ == "__main__":
    key = jax.random.PRNGKey(0)
    k_x, k_p, k_x2, k_p2 = jax.random.split(key, 4)

    # Config 1: module defaults (n=1, shortcut=False).
    B, C1, C2, H, W, n = 2, 32, 32, 8, 8, 1
    x = jax.random.normal(k_x, (B, C1, H, W), jnp.float32)
    params = make_c2f_params(k_p, C1, C2, n)
    out = jax.block_until_ready(c2f_pallas(x, params, n=n, shortcut=False))
    ref = c2f_reference(x, params, n=n, shortcut=False)
    assert out.shape == (B, C2, H, W)
    err = float(jnp.max(jnp.abs(out - ref)))
    assert jnp.allclose(out, ref, atol=5e-3, rtol=5e-3), err

    # Config 2: n=2 bottlenecks with shortcut (exercises the re-pad loop).
    B2, C1b, C2b, H2, W2, n2 = 2, 16, 24, 6, 10, 2
    x2 = jax.random.normal(k_x2, (B2, C1b, H2, W2), jnp.float32)
    params2 = make_c2f_params(k_p2, C1b, C2b, n2)
    out2 = jax.block_until_ready(c2f_pallas(x2, params2, n=n2, shortcut=True))
    ref2 = c2f_reference(x2, params2, n=n2, shortcut=True)
    err2 = float(jnp.max(jnp.abs(out2 - ref2)))
    assert jnp.allclose(out2, ref2, atol=5e-3, rtol=5e-3), err2

    print("KERNEL_OK")
</pallas_src>

<mosaic_0001>
module attributes {stable_mosaic.version = 11 : i64} {
  func.func @_c2f_kernel(%arg0: i32, %arg1: memref<1x110x128xbf16, #tpu.memory_space<vmem>>, %arg2: memref<110x1xf32, #tpu.memory_space<vmem>>, %arg3: memref<128x128xbf16, #tpu.memory_space<vmem>>, %arg4: memref<128x128xbf16, #tpu.memory_space<vmem>>, %arg5: memref<9x128x128xbf16, #tpu.memory_space<vmem>>, %arg6: memref<9x128x128xbf16, #tpu.memory_space<vmem>>, %arg7: memref<3x128x128xbf16, #tpu.memory_space<vmem>>, %arg8: memref<8x128xf32, #tpu.memory_space<vmem>>, %arg9: memref<2x128xf32, #tpu.memory_space<vmem>>, %arg10: memref<1x80x128xf32, #tpu.memory_space<vmem>>, %arg11: memref<110x128xf32, #tpu.memory_space<vmem>>, %arg12: memref<110x128xf32, #tpu.memory_space<vmem>>) attributes {dimension_semantics = [#tpu.dimension_semantics<parallel>], iteration_bounds = array<i64: 2>, scalar_prefetch = 0 : i64, scratch_operands = 2 : i64, tpu.core_type = #tpu.core_type<tc>, window_params = [{transform_indices = @transform_0, window_bounds = array<i64: 1, 110, 128>}, {pipeline_mode = #tpu.pipeline_mode<synchronous>, transform_indices = @transform_1, window_bounds = array<i64: 110, 1>}, {pipeline_mode = #tpu.pipeline_mode<synchronous>, transform_indices = @transform_2, window_bounds = array<i64: 128, 128>}, {pipeline_mode = #tpu.pipeline_mode<synchronous>, transform_indices = @transform_3, window_bounds = array<i64: 128, 128>}, {pipeline_mode = #tpu.pipeline_mode<synchronous>, transform_indices = @transform_4, window_bounds = array<i64: 9, 128, 128>}, {pipeline_mode = #tpu.pipeline_mode<synchronous>, transform_indices = @transform_5, window_bounds = array<i64: 9, 128, 128>}, {pipeline_mode = #tpu.pipeline_mode<synchronous>, transform_indices = @transform_6, window_bounds = array<i64: 3, 128, 128>}, {pipeline_mode = #tpu.pipeline_mode<synchronous>, transform_indices = @transform_7, window_bounds = array<i64: 8, 128>}, {pipeline_mode = #tpu.pipeline_mode<synchronous>, transform_indices = @transform_8, window_bounds = array<i64: 2, 128>}, {transform_indices = @transform_9, window_bounds = array<i64: 1, 80, 128>}]} {
    %c0 = arith.constant 0 : index
    %c0_0 = arith.constant 0 : index
    %c0_1 = arith.constant 0 : index
    %0 = vector.load %arg1[%c0, %c0_0, %c0_1] : memref<1x110x128xbf16, #tpu.memory_space<vmem>>, vector<1x110x128xbf16>
    %1 = vector.shape_cast %0 : vector<1x110x128xbf16> to vector<110x128xbf16>
    %c0_2 = arith.constant 0 : index
    %c0_3 = arith.constant 0 : index
    %2 = vector.load %arg2[%c0_2, %c0_3] : memref<110x1xf32, #tpu.memory_space<vmem>>, vector<110x1xf32>
    %3 = vector.extract_strided_slice %2 {offsets = [11, 0], sizes = [80, 1], strides = [1, 1]} : vector<110x1xf32> to vector<80x1xf32>
    %c0_4 = arith.constant 0 : index
    %c0_5 = arith.constant 0 : index
    %4 = vector.load %arg8[%c0_4, %c0_5] : memref<8x128xf32, #tpu.memory_space<vmem>>, vector<8x128xf32>
    %c0_6 = arith.constant 0 : index
    %c0_7 = arith.constant 0 : index
    %5 = vector.load %arg9[%c0_6, %c0_7] : memref<2x128xf32, #tpu.memory_space<vmem>>, vector<2x128xf32>
    %6 = vector.extract_strided_slice %1 {offsets = [11, 0], sizes = [80, 128], strides = [1, 1]} : vector<110x128xbf16> to vector<80x128xbf16>
    %c0_8 = arith.constant 0 : index
    %c0_9 = arith.constant 0 : index
    %7 = vector.load %arg3[%c0_8, %c0_9] : memref<128x128xbf16, #tpu.memory_space<vmem>>, vector<128x128xbf16>
    %cst = arith.constant dense<0.000000e+00> : vector<80x128xf32>
    %8 = tpu.matmul %6, %7, %cst {dimension_numbers = #tpu.dot_dimension_numbers<[1], [0], [0], [1], [0, 0, 1, 1], [], []>} : vector<80x128xbf16>, vector<128x128xbf16>, vector<80x128xf32> -> vector<80x128xf32>
    %9 = vector.extract_strided_slice %4 {offsets = [0, 0], sizes = [1, 128], strides = [1, 1]} : vector<8x128xf32> to vector<1x128xf32>
    %10 = vector.broadcast %9 : vector<1x128xf32> to vector<80x128xf32>
    %11 = arith.mulf %8, %10 : vector<80x128xf32>
    %12 = vector.extract_strided_slice %4 {offsets = [1, 0], sizes = [1, 128], strides = [1, 1]} : vector<8x128xf32> to vector<1x128xf32>
    %13 = vector.broadcast %12 : vector<1x128xf32> to vector<80x128xf32>
    %14 = arith.addf %11, %13 : vector<80x128xf32>
    %15 = arith.negf %14 : vector<80x128xf32>
    %16 = math.exp %15 : vector<80x128xf32>
    %cst_10 = arith.constant 1.000000e+00 : f32
    %17 = vector.broadcast %cst_10 : f32 to vector<80x128xf32>
    %18 = arith.addf %17, %16 : vector<80x128xf32>
    %19 = arith.divf %17, %18 : vector<80x128xf32>
    %20 = arith.mulf %14, %19 : vector<80x128xf32>
    %c0_11 = arith.constant 0 : index
    %c0_12 = arith.constant 0 : index
    %21 = vector.load %arg4[%c0_11, %c0_12] : memref<128x128xbf16, #tpu.memory_space<vmem>>, vector<128x128xbf16>
    %cst_13 = arith.constant dense<0.000000e+00> : vector<110x128xf32>
    %22 = tpu.matmul %1, %21, %cst_13 {dimension_numbers = #tpu.dot_dimension_numbers<[1], [0], [0], [1], [0, 0, 1, 1], [], []>} : vector<110x128xbf16>, vector<128x128xbf16>, vector<110x128xf32> -> vector<110x128xf32>
    %23 = vector.extract_strided_slice %4 {offsets = [2, 0], sizes = [1, 128], strides = [1, 1]} : vector<8x128xf32> to vector<1x128xf32>
    %24 = vector.broadcast %23 : vector<1x128xf32> to vector<110x128xf32>
    %25 = arith.mulf %22, %24 : vector<110x128xf32>
    %26 = vector.extract_strided_slice %4 {offsets = [3, 0], sizes = [1, 128], strides = [1, 1]} : vector<8x128xf32> to vector<1x128xf32>
    %27 = vector.broadcast %26 : vector<1x128xf32> to vector<110x128xf32>
    %28 = arith.addf %25, %27 : vector<110x128xf32>
    %29 = arith.negf %28 : vector<110x128xf32>
    %30 = math.exp %29 : vector<110x128xf32>
    %cst_14 = arith.constant 1.000000e+00 : f32
    %31 = vector.broadcast %cst_14 : f32 to vector<110x128xf32>
    %32 = arith.addf %31, %30 : vector<110x128xf32>
    %33 = arith.divf %31, %32 : vector<110x128xf32>
    %34 = arith.mulf %28, %33 : vector<110x128xf32>
    %35 = vector.broadcast %2 : vector<110x1xf32> to vector<110x128xf32>
    %36 = arith.mulf %34, %35 : vector<110x128xf32>
    %37 = arith.truncf %36 : vector<110x128xf32> to vector<110x128xbf16>
    %38 = arith.truncf %20 : vector<80x128xf32> to vector<80x128xbf16>
    %c0_15 = arith.constant 0 : index
    %c0_16 = arith.constant 0 : index
    %c0_17 = arith.constant 0 : index
    %39 = vector.load %arg7[%c0_15, %c0_16, %c0_17] : memref<3x128x128xbf16, #tpu.memory_space<vmem>>, vector<1x128x128xbf16>
    %40 = vector.shape_cast %39 : vector<1x128x128xbf16> to vector<128x128xbf16>
    %cst_18 = arith.constant dense<0.000000e+00> : vector<80x128xf32>
    %41 = tpu.matmul %38, %40, %cst_18 {dimension_numbers = #tpu.dot_dimension_numbers<[1], [0], [0], [1], [0, 0, 1, 1], [], []>} : vector<80x128xbf16>, vector<128x128xbf16>, vector<80x128xf32> -> vector<80x128xf32>
    %42 = vector.extract_strided_slice %37 {offsets = [11, 0], sizes = [80, 128], strides = [1, 1]} : vector<110x128xbf16> to vector<80x128xbf16>
    %c1 = arith.constant 1 : index
    %c0_19 = arith.constant 0 : index
    %c0_20 = arith.constant 0 : index
    %43 = vector.load %arg7[%c1, %c0_19, %c0_20] : memref<3x128x128xbf16, #tpu.memory_space<vmem>>, vector<1x128x128xbf16>
    %44 = vector.shape_cast %43 : vector<1x128x128xbf16> to vector<128x128xbf16>
    %cst_21 = arith.constant dense<0.000000e+00> : vector<80x128xf32>
    %45 = tpu.matmul %42, %44, %cst_21 {dimension_numbers = #tpu.dot_dimension_numbers<[1], [0], [0], [1], [0, 0, 1, 1], [], []>} : vector<80x128xbf16>, vector<128x128xbf16>, vector<80x128xf32> -> vector<80x128xf32>
    %46 = arith.addf %41, %45 : vector<80x128xf32>
    %cst_22 = arith.constant 0.000000e+00 : f32
    %47 = vector.broadcast %cst_22 : f32 to vector<110x128xf32>
    %c0_23 = arith.constant 0 : index
    %c0_24 = arith.constant 0 : index
    %48 = vector.load %arg11[%c0_23, %c0_24] : memref<110x128xf32, #tpu.memory_space<vmem>>, vector<110x128xf32>
    tpu.vector_store %arg11[%c0_23, %c0_24], %47 {strides = array<i32>} : memref<110x128xf32, #tpu.memory_space<vmem>>, vector<110x128xf32>,
    %cst_25 = arith.constant 0.000000e+00 : f32
    %49 = vector.broadcast %cst_25 : f32 to vector<80x128xf32>
    %50 = vector.extract_strided_slice %37 {offsets = [0, 0], sizes = [80, 128], strides = [1, 1]} : vector<110x128xbf16> to vector<80x128xbf16>
    %c0_26 = arith.constant 0 : index
    %c0_27 = arith.constant 0 : index
    %c0_28 = arith.constant 0 : index
    %51 = vector.load %arg5[%c0_26, %c0_27, %c0_28] : memref<9x128x128xbf16, #tpu.memory_space<vmem>>, vector<1x128x128xbf16>
    %52 = vector.shape_cast %51 : vector<1x128x128xbf16> to vector<128x128xbf16>
    %cst_29 = arith.constant dense<0.000000e+00> : vector<80x128xf32>
    %53 = tpu.matmul %50, %52, %cst_29 {dimension_numbers = #tpu.dot_dimension_numbers<[1], [0], [0], [1], [0, 0, 1, 1], [], []>} : vector<80x128xbf16>, vector<128x128xbf16>, vector<80x128xf32> -> vector<80x128xf32>
    %54 = arith.addf %49, %53 : vector<80x128xf32>
    %55 = vector.extract_strided_slice %37 {offsets = [1, 0], sizes = [80, 128], strides = [1, 1]} : vector<110x128xbf16> to vector<80x128xbf16>
    %c1_30 = arith.constant 1 : index
    %c0_31 = arith.constant 0 : index
    %c0_32 = arith.constant 0 : index
    %56 = vector.load %arg5[%c1_30, %c0_31, %c0_32] : memref<9x128x128xbf16, #tpu.memory_space<vmem>>, vector<1x128x128xbf16>
    %57 = vector.shape_cast %56 : vector<1x128x128xbf16> to vector<128x128xbf16>
    %cst_33 = arith.constant dense<0.000000e+00> : vector<80x128xf32>
    %58 = tpu.matmul %55, %57, %cst_33 {dimension_numbers = #tpu.dot_dimension_numbers<[1], [0], [0], [1], [0, 0, 1, 1], [], []>} : vector<80x128xbf16>, vector<128x128xbf16>, vector<80x128xf32> -> vector<80x128xf32>
    %59 = arith.addf %54, %58 : vector<80x128xf32>
    %60 = vector.extract_strided_slice %37 {offsets = [2, 0], sizes = [80, 128], strides = [1, 1]} : vector<110x128xbf16> to vector<80x128xbf16>
    %c2 = arith.constant 2 : index
    %c0_34 = arith.constant 0 : index
    %c0_35 = arith.constant 0 : index
    %61 = vector.load %arg5[%c2, %c0_34, %c0_35] : memref<9x128x128xbf16, #tpu.memory_space<vmem>>, vector<1x128x128xbf16>
    %62 = vector.shape_cast %61 : vector<1x128x128xbf16> to vector<128x128xbf16>
    %cst_36 = arith.constant dense<0.000000e+00> : vector<80x128xf32>
    %63 = tpu.matmul %60, %62, %cst_36 {dimension_numbers = #tpu.dot_dimension_numbers<[1], [0], [0], [1], [0, 0, 1, 1], [], []>} : vector<80x128xbf16>, vector<128x128xbf16>, vector<80x128xf32> -> vector<80x128xf32>
    %64 = arith.addf %59, %63 : vector<80x128xf32>
    %65 = vector.extract_strided_slice %37 {offsets = [10, 0], sizes = [80, 128], strides = [1, 1]} : vector<110x128xbf16> to vector<80x128xbf16>
    %c3 = arith.constant 3 : index
    %c0_37 = arith.constant 0 : index
    %c0_38 = arith.constant 0 : index
    %66 = vector.load %arg5[%c3, %c0_37, %c0_38] : memref<9x128x128xbf16, #tpu.memory_space<vmem>>, vector<1x128x128xbf16>
    %67 = vector.shape_cast %66 : vector<1x128x128xbf16> to vector<128x128xbf16>
    %cst_39 = arith.constant dense<0.000000e+00> : vector<80x128xf32>
    %68 = tpu.matmul %65, %67, %cst_39 {dimension_numbers = #tpu.dot_dimension_numbers<[1], [0], [0], [1], [0, 0, 1, 1], [], []>} : vector<80x128xbf16>, vector<128x128xbf16>, vector<80x128xf32> -> vector<80x128xf32>
    %69 = arith.addf %64, %68 : vector<80x128xf32>
    %70 = vector.extract_strided_slice %37 {offsets = [11, 0], sizes = [80, 128], strides = [1, 1]} : vector<110x128xbf16> to vector<80x128xbf16>
    %c4 = arith.constant 4 : index
    %c0_40 = arith.constant 0 : index
    %c0_41 = arith.constant 0 : index
    %71 = vector.load %arg5[%c4, %c0_40, %c0_41] : memref<9x128x128xbf16, #tpu.memory_space<vmem>>, vector<1x128x128xbf16>
    %72 = vector.shape_cast %71 : vector<1x128x128xbf16> to vector<128x128xbf16>
    %cst_42 = arith.constant dense<0.000000e+00> : vector<80x128xf32>
    %73 = tpu.matmul %70, %72, %cst_42 {dimension_numbers = #tpu.dot_dimension_numbers<[1], [0], [0], [1], [0, 0, 1, 1], [], []>} : vector<80x128xbf16>, vector<128x128xbf16>, vector<80x128xf32> -> vector<80x128xf32>
    %74 = arith.addf %69, %73 : vector<80x128xf32>
    %75 = vector.extract_strided_slice %37 {offsets = [12, 0], sizes = [80, 128], strides = [1, 1]} : vector<110x128xbf16> to vector<80x128xbf16>
    %c5 = arith.constant 5 : index
    %c0_43 = arith.constant 0 : index
    %c0_44 = arith.constant 0 : index
    %76 = vector.load %arg5[%c5, %c0_43, %c0_44] : memref<9x128x128xbf16, #tpu.memory_space<vmem>>, vector<1x128x128xbf16>
    %77 = vector.shape_cast %76 : vector<1x128x128xbf16> to vector<128x128xbf16>
    %cst_45 = arith.constant dense<0.000000e+00> : vector<80x128xf32>
    %78 = tpu.matmul %75, %77, %cst_45 {dimension_numbers = #tpu.dot_dimension_numbers<[1], [0], [0], [1], [0, 0, 1, 1], [], []>} : vector<80x128xbf16>, vector<128x128xbf16>, vector<80x128xf32> -> vector<80x128xf32>
    %79 = arith.addf %74, %78 : vector<80x128xf32>
    %80 = vector.extract_strided_slice %37 {offsets = [20, 0], sizes = [80, 128], strides = [1, 1]} : vector<110x128xbf16> to vector<80x128xbf16>
    %c6 = arith.constant 6 : index
    %c0_46 = arith.constant 0 : index
    %c0_47 = arith.constant 0 : index
    %81 = vector.load %arg5[%c6, %c0_46, %c0_47] : memref<9x128x128xbf16, #tpu.memory_space<vmem>>, vector<1x128x128xbf16>
    %82 = vector.shape_cast %81 : vector<1x128x128xbf16> to vector<128x128xbf16>
    %cst_48 = arith.constant dense<0.000000e+00> : vector<80x128xf32>
    %83 = tpu.matmul %80, %82, %cst_48 {dimension_numbers = #tpu.dot_dimension_numbers<[1], [0], [0], [1], [0, 0, 1, 1], [], []>} : vector<80x128xbf16>, vector<128x128xbf16>, vector<80x128xf32> -> vector<80x128xf32>
    %84 = arith.addf %79, %83 : vector<80x128xf32>
    %85 = vector.extract_strided_slice %37 {offsets = [21, 0], sizes = [80, 128], strides = [1, 1]} : vector<110x128xbf16> to vector<80x128xbf16>
    %c7 = arith.constant 7 : index
    %c0_49 = arith.constant 0 : index
    %c0_50 = arith.constant 0 : index
    %86 = vector.load %arg5[%c7, %c0_49, %c0_50] : memref<9x128x128xbf16, #tpu.memory_space<vmem>>, vector<1x128x128xbf16>
    %87 = vector.shape_cast %86 : vector<1x128x128xbf16> to vector<128x128xbf16>
    %cst_51 = arith.constant dense<0.000000e+00> : vector<80x128xf32>
    %88 = tpu.matmul %85, %87, %cst_51 {dimension_numbers = #tpu.dot_dimension_numbers<[1], [0], [0], [1], [0, 0, 1, 1], [], []>} : vector<80x128xbf16>, vector<128x128xbf16>, vector<80x128xf32> -> vector<80x128xf32>
    %89 = arith.addf %84, %88 : vector<80x128xf32>
    %90 = vector.extract_strided_slice %37 {offsets = [22, 0], sizes = [80, 128], strides = [1, 1]} : vector<110x128xbf16> to vector<80x128xbf16>
    %c8 = arith.constant 8 : index
    %c0_52 = arith.constant 0 : index
    %c0_53 = arith.constant 0 : index
    %91 = vector.load %arg5[%c8, %c0_52, %c0_53] : memref<9x128x128xbf16, #tpu.memory_space<vmem>>, vector<1x128x128xbf16>
    %92 = vector.shape_cast %91 : vector<1x128x128xbf16> to vector<128x128xbf16>
    %cst_54 = arith.constant dense<0.000000e+00> : vector<80x128xf32>
    %93 = tpu.matmul %90, %92, %cst_54 {dimension_numbers = #tpu.dot_dimension_numbers<[1], [0], [0], [1], [0, 0, 1, 1], [], []>} : vector<80x128xbf16>, vector<128x128xbf16>, vector<80x128xf32> -> vector<80x128xf32>
    %94 = arith.addf %89, %93 : vector<80x128xf32>
    %95 = vector.extract_strided_slice %4 {offsets = [4, 0], sizes = [1, 128], strides = [1, 1]} : vector<8x128xf32> to vector<1x128xf32>
    %96 = vector.broadcast %95 : vector<1x128xf32> to vector<80x128xf32>
    %97 = arith.mulf %94, %96 : vector<80x128xf32>
    %98 = vector.extract_strided_slice %4 {offsets = [5, 0], sizes = [1, 128], strides = [1, 1]} : vector<8x128xf32> to vector<1x128xf32>
    %99 = vector.broadcast %98 : vector<1x128xf32> to vector<80x128xf32>
    %100 = arith.addf %97, %99 : vector<80x128xf32>
    %101 = arith.negf %100 : vector<80x128xf32>
    %102 = math.exp %101 : vector<80x128xf32>
    %cst_55 = arith.constant 1.000000e+00 : f32
    %103 = vector.broadcast %cst_55 : f32 to vector<80x128xf32>
    %104 = arith.addf %103, %102 : vector<80x128xf32>
    %105 = arith.divf %103, %104 : vector<80x128xf32>
    %106 = arith.mulf %100, %105 : vector<80x128xf32>
    %107 = vector.broadcast %3 : vector<80x1xf32> to vector<80x128xf32>
    %108 = arith.mulf %106, %107 : vector<80x128xf32>
    %c11 = arith.constant 11 : index
    %c0_56 = arith.constant 0 : index
    %109 = vector.load %arg11[%c11, %c0_56] : memref<110x128xf32, #tpu.memory_space<vmem>>, vector<80x128xf32>
    tpu.vector_store %arg11[%c11, %c0_56], %108 {strides = array<i32>} : memref<110x128xf32, #tpu.memory_space<vmem>>, vector<80x128xf32>,
    %c0_57 = arith.constant 0 : index
    %c0_58 = arith.constant 0 : index
    %110 = vector.load %arg11[%c0_57, %c0_58] : memref<110x128xf32, #tpu.memory_space<vmem>>, vector<110x128xf32>
    %111 = arith.truncf %110 : vector<110x128xf32> to vector<110x128xbf16>
    %cst_59 = arith.constant 0.000000e+00 : f32
    %112 = vector.broadcast %cst_59 : f32 to vector<80x128xf32>
    %113 = vector.extract_strided_slice %111 {offsets = [0, 0], sizes = [80, 128], strides = [1, 1]} : vector<110x128xbf16> to vector<80x128xbf16>
    %c0_60 = arith.constant 0 : index
    %c0_61 = arith.constant 0 : index
    %c0_62 = arith.constant 0 : index
    %114 = vector.load %arg6[%c0_60, %c0_61, %c0_62] : memref<9x128x128xbf16, #tpu.memory_space<vmem>>, vector<1x128x128xbf16>
    %115 = vector.shape_cast %114 : vector<1x128x128xbf16> to vector<128x128xbf16>
    %cst_63 = arith.constant dense<0.000000e+00> : vector<80x128xf32>
    %116 = tpu.matmul %113, %115, %cst_63 {dimension_numbers = #tpu.dot_dimension_numbers<[1], [0], [0], [1], [0, 0, 1, 1], [], []>} : vector<80x128xbf16>, vector<128x128xbf16>, vector<80x128xf32> -> vector<80x128xf32>
    %117 = arith.addf %112, %116 : vector<80x128xf32>
    %118 = vector.extract_strided_slice %111 {offsets = [1, 0], sizes = [80, 128], strides = [1, 1]} : vector<110x128xbf16> to vector<80x128xbf16>
    %c1_64 = arith.constant 1 : index
    %c0_65 = arith.constant 0 : index
    %c0_66 = arith.constant 0 : index
    %119 = vector.load %arg6[%c1_64, %c0_65, %c0_66] : memref<9x128x128xbf16, #tpu.memory_space<vmem>>, vector<1x128x128xbf16>
    %120 = vector.shape_cast %119 : vector<1x128x128xbf16> to vector<128x128xbf16>
    %cst_67 = arith.constant dense<0.000000e+00> : vector<80x128xf32>
    %121 = tpu.matmul %118, %120, %cst_67 {dimension_numbers = #tpu.dot_dimension_numbers<[1], [0], [0], [1], [0, 0, 1, 1], [], []>} : vector<80x128xbf16>, vector<128x128xbf16>, vector<80x128xf32> -> vector<80x128xf32>
    %122 = arith.addf %117, %121 : vector<80x128xf32>
    %123 = vector.extract_strided_slice %111 {offsets = [2, 0], sizes = [80, 128], strides = [1, 1]} : vector<110x128xbf16> to vector<80x128xbf16>
    %c2_68 = arith.constant 2 : index
    %c0_69 = arith.constant 0 : index
    %c0_70 = arith.constant 0 : index
    %124 = vector.load %arg6[%c2_68, %c0_69, %c0_70] : memref<9x128x128xbf16, #tpu.memory_space<vmem>>, vector<1x128x128xbf16>
    %125 = vector.shape_cast %124 : vector<1x128x128xbf16> to vector<128x128xbf16>
    %cst_71 = arith.constant dense<0.000000e+00> : vector<80x128xf32>
    %126 = tpu.matmul %123, %125, %cst_71 {dimension_numbers = #tpu.dot_dimension_numbers<[1], [0], [0], [1], [0, 0, 1, 1], [], []>} : vector<80x128xbf16>, vector<128x128xbf16>, vector<80x128xf32> -> vector<80x128xf32>
    %127 = arith.addf %122, %126 : vector<80x128xf32>
    %128 = vector.extract_strided_slice %111 {offsets = [10, 0], sizes = [80, 128], strides = [1, 1]} : vector<110x128xbf16> to vector<80x128xbf16>
    %c3_72 = arith.constant 3 : index
    %c0_73 = arith.constant 0 : index
    %c0_74 = arith.constant 0 : index
    %129 = vector.load %arg6[%c3_72, %c0_73, %c0_74] : memref<9x128x128xbf16, #tpu.memory_space<vmem>>, vector<1x128x128xbf16>
    %130 = vector.shape_cast %129 : vector<1x128x128xbf16> to vector<128x128xbf16>
    %cst_75 = arith.constant dense<0.000000e+00> : vector<80x128xf32>
    %131 = tpu.matmul %128, %130, %cst_75 {dimension_numbers = #tpu.dot_dimension_numbers<[1], [0], [0], [1], [0, 0, 1, 1], [], []>} : vector<80x128xbf16>, vector<128x128xbf16>, vector<80x128xf32> -> vector<80x128xf32>
    %132 = arith.addf %127, %131 : vector<80x128xf32>
    %133 = vector.extract_strided_slice %111 {offsets = [11, 0], sizes = [80, 128], strides = [1, 1]} : vector<110x128xbf16> to vector<80x128xbf16>
    %c4_76 = arith.constant 4 : index
    %c0_77 = arith.constant 0 : index
    %c0_78 = arith.constant 0 : index
    %134 = vector.load %arg6[%c4_76, %c0_77, %c0_78] : memref<9x128x128xbf16, #tpu.memory_space<vmem>>, vector<1x128x128xbf16>
    %135 = vector.shape_cast %134 : vector<1x128x128xbf16> to vector<128x128xbf16>
    %cst_79 = arith.constant dense<0.000000e+00> : vector<80x128xf32>
    %136 = tpu.matmul %133, %135, %cst_79 {dimension_numbers = #tpu.dot_dimension_numbers<[1], [0], [0], [1], [0, 0, 1, 1], [], []>} : vector<80x128xbf16>, vector<128x128xbf16>, vector<80x128xf32> -> vector<80x128xf32>
    %137 = arith.addf %132, %136 : vector<80x128xf32>
    %138 = vector.extract_strided_slice %111 {offsets = [12, 0], sizes = [80, 128], strides = [1, 1]} : vector<110x128xbf16> to vector<80x128xbf16>
    %c5_80 = arith.constant 5 : index
    %c0_81 = arith.constant 0 : index
    %c0_82 = arith.constant 0 : index
    %139 = vector.load %arg6[%c5_80, %c0_81, %c0_82] : memref<9x128x128xbf16, #tpu.memory_space<vmem>>, vector<1x128x128xbf16>
    %140 = vector.shape_cast %139 : vector<1x128x128xbf16> to vector<128x128xbf16>
    %cst_83 = arith.constant dense<0.000000e+00> : vector<80x128xf32>
    %141 = tpu.matmul %138, %140, %cst_83 {dimension_numbers = #tpu.dot_dimension_numbers<[1], [0], [0], [1], [0, 0, 1, 1], [], []>} : vector<80x128xbf16>, vector<128x128xbf16>, vector<80x128xf32> -> vector<80x128xf32>
    %142 = arith.addf %137, %141 : vector<80x128xf32>
    %143 = vector.extract_strided_slice %111 {offsets = [20, 0], sizes = [80, 128], strides = [1, 1]} : vector<110x128xbf16> to vector<80x128xbf16>
    %c6_84 = arith.constant 6 : index
    %c0_85 = arith.constant 0 : index
    %c0_86 = arith.constant 0 : index
    %144 = vector.load %arg6[%c6_84, %c0_85, %c0_86] : memref<9x128x128xbf16, #tpu.memory_space<vmem>>, vector<1x128x128xbf16>
    %145 = vector.shape_cast %144 : vector<1x128x128xbf16> to vector<128x128xbf16>
    %cst_87 = arith.constant dense<0.000000e+00> : vector<80x128xf32>
    %146 = tpu.matmul %143, %145, %cst_87 {dimension_numbers = #tpu.dot_dimension_numbers<[1], [0], [0], [1], [0, 0, 1, 1], [], []>} : vector<80x128xbf16>, vector<128x128xbf16>, vector<80x128xf32> -> vector<80x128xf32>
    %147 = arith.addf %142, %146 : vector<80x128xf32>
    %148 = vector.extract_strided_slice %111 {offsets = [21, 0], sizes = [80, 128], strides = [1, 1]} : vector<110x128xbf16> to vector<80x128xbf16>
    %c7_88 = arith.constant 7 : index
    %c0_89 = arith.constant 0 : index
    %c0_90 = arith.constant 0 : index
    %149 = vector.load %arg6[%c7_88, %c0_89, %c0_90] : memref<9x128x128xbf16, #tpu.memory_space<vmem>>, vector<1x128x128xbf16>
    %150 = vector.shape_cast %149 : vector<1x128x128xbf16> to vector<128x128xbf16>
    %cst_91 = arith.constant dense<0.000000e+00> : vector<80x128xf32>
    %151 = tpu.matmul %148, %150, %cst_91 {dimension_numbers = #tpu.dot_dimension_numbers<[1], [0], [0], [1], [0, 0, 1, 1], [], []>} : vector<80x128xbf16>, vector<128x128xbf16>, vector<80x128xf32> -> vector<80x128xf32>
    %152 = arith.addf %147, %151 : vector<80x128xf32>
    %153 = vector.extract_strided_slice %111 {offsets = [22, 0], sizes = [80, 128], strides = [1, 1]} : vector<110x128xbf16> to vector<80x128xbf16>
    %c8_92 = arith.constant 8 : index
    %c0_93 = arith.constant 0 : index
    %c0_94 = arith.constant 0 : index
    %154 = vector.load %arg6[%c8_92, %c0_93, %c0_94] : memref<9x128x128xbf16, #tpu.memory_space<vmem>>, vector<1x128x128xbf16>
    %155 = vector.shape_cast %154 : vector<1x128x128xbf16> to vector<128x128xbf16>
    %cst_95 = arith.constant dense<0.000000e+00> : vector<80x128xf32>
    %156 = tpu.matmul %153, %155, %cst_95 {dimension_numbers = #tpu.dot_dimension_numbers<[1], [0], [0], [1], [0, 0, 1, 1], [], []>} : vector<80x128xbf16>, vector<128x128xbf16>, vector<80x128xf32> -> vector<80x128xf32>
    %157 = arith.addf %152, %156 : vector<80x128xf32>
    %158 = vector.extract_strided_slice %4 {offsets = [6, 0], sizes = [1, 128], strides = [1, 1]} : vector<8x128xf32> to vector<1x128xf32>
    %159 = vector.broadcast %158 : vector<1x128xf32> to vector<80x128xf32>
    %160 = arith.mulf %157, %159 : vector<80x128xf32>
    %161 = vector.extract_strided_slice %4 {offsets = [7, 0], sizes = [1, 128], strides = [1, 1]} : vector<8x128xf32> to vector<1x128xf32>
    %162 = vector.broadcast %161 : vector<1x128xf32> to vector<80x128xf32>
    %163 = arith.addf %160, %162 : vector<80x128xf32>
    %164 = arith.negf %163 : vector<80x128xf32>
    %165 = math.exp %164 : vector<80x128xf32>
    %cst_96 = arith.constant 1.000000e+00 : f32
    %166 = vector.broadcast %cst_96 : f32 to vector<80x128xf32>
    %167 = arith.addf %166, %165 : vector<80x128xf32>
    %168 = arith.divf %166, %167 : vector<80x128xf32>
    %169 = arith.mulf %163, %168 : vector<80x128xf32>
    %170 = arith.truncf %169 : vector<80x128xf32> to vector<80x128xbf16>
    %c2_97 = arith.constant 2 : index
    %c0_98 = arith.constant 0 : index
    %c0_99 = arith.constant 0 : index
    %171 = vector.load %arg7[%c2_97, %c0_98, %c0_99] : memref<3x128x128xbf16, #tpu.memory_space<vmem>>, vector<1x128x128xbf16>
    %172 = vector.shape_cast %171 : vector<1x128x128xbf16> to vector<128x128xbf16>
    %cst_100 = arith.constant dense<0.000000e+00> : vector<80x128xf32>
    %173 = tpu.matmul %170, %172, %cst_100 {dimension_numbers = #tpu.dot_dimension_numbers<[1], [0], [0], [1], [0, 0, 1, 1], [], []>} : vector<80x128xbf16>, vector<128x128xbf16>, vector<80x128xf32> -> vector<80x128xf32>
    %174 = arith.addf %46, %173 : vector<80x128xf32>
    %175 = vector.extract_strided_slice %5 {offsets = [0, 0], sizes = [1, 128], strides = [1, 1]} : vector<2x128xf32> to vector<1x128xf32>
    %176 = vector.broadcast %175 : vector<1x128xf32> to vector<80x128xf32>
    %177 = arith.mulf %174, %176 : vector<80x128xf32>
    %178 = vector.extract_strided_slice %5 {offsets = [1, 0], sizes = [1, 128], strides = [1, 1]} : vector<2x128xf32> to vector<1x128xf32>
    %179 = vector.broadcast %178 : vector<1x128xf32> to vector<80x128xf32>
    %180 = arith.addf %177, %179 : vector<80x128xf32>
    %181 = arith.negf %180 : vector<80x128xf32>
    %182 = math.exp %181 : vector<80x128xf32>
    %cst_101 = arith.constant 1.000000e+00 : f32
    %183 = vector.broadcast %cst_101 : f32 to vector<80x128xf32>
    %184 = arith.addf %183, %182 : vector<80x128xf32>
    %185 = arith.divf %183, %184 : vector<80x128xf32>
    %186 = arith.mulf %180, %185 : vector<80x128xf32>
    %c0_102 = arith.constant 0 : index
    %c0_103 = arith.constant 0 : index
    %c0_104 = arith.constant 0 : index
    %187 = vector.load %arg10[%c0_102, %c0_103, %c0_104] : memref<1x80x128xf32, #tpu.memory_space<vmem>>, vector<1x80x128xf32>
    %188 = vector.shape_cast %187 : vector<1x80x128xf32> to vector<80x128xf32>
    %189 = vector.shape_cast %186 : vector<80x128xf32> to vector<1x80x128xf32>
    tpu.vector_store %arg10[%c0_102, %c0_103, %c0_104], %189 {strides = array<i32>} : memref<1x80x128xf32, #tpu.memory_space<vmem>>, vector<1x80x128xf32>,
    return
  }
  func.func @transform_0(%arg0: i32) -> (i32, i32, i32) {
    %c0_i32 = arith.constant 0 : i32
    %c0_i32_0 = arith.constant 0 : i32
    %c0_i32_1 = arith.constant 0 : i32
    return %arg0, %c0_i32, %c0_i32_0 : i32, i32, i32
  }
  func.func @transform_1(%arg0: i32) -> (i32, i32) {
    %c0_i32 = arith.constant 0 : i32
    %c0_i32_0 = arith.constant 0 : i32
    %c0_i32_1 = arith.constant 0 : i32
    return %c0_i32, %c0_i32_0 : i32, i32
  }
  func.func @transform_2(%arg0: i32) -> (i32, i32) {
    %c0_i32 = arith.constant 0 : i32
    %c0_i32_0 = arith.constant 0 : i32
    %c0_i32_1 = arith.constant 0 : i32
    return %c0_i32, %c0_i32_0 : i32, i32
  }
  func.func @transform_3(%arg0: i32) -> (i32, i32) {
    %c0_i32 = arith.constant 0 : i32
    %c0_i32_0 = arith.constant 0 : i32
    %c0_i32_1 = arith.constant 0 : i32
    return %c0_i32, %c0_i32_0 : i32, i32
  }
  func.func @transform_4(%arg0: i32) -> (i32, i32, i32) {
    %c0_i32 = arith.constant 0 : i32
    %c0_i32_0 = arith.constant 0 : i32
    %c0_i32_1 = arith.constant 0 : i32
    %c0_i32_2 = arith.constant 0 : i32
    return %c0_i32, %c0_i32_0, %c0_i32_1 : i32, i32, i32
  }
  func.func @transform_5(%arg0: i32) -> (i32, i32, i32) {
    %c0_i32 = arith.constant 0 : i32
    %c0_i32_0 = arith.constant 0 : i32
    %c0_i32_1 = arith.constant 0 : i32
    %c0_i32_2 = arith.constant 0 : i32
    return %c0_i32, %c0_i32_0, %c0_i32_1 : i32, i32, i32
  }
  func.func @transform_6(%arg0: i32) -> (i32, i32, i32) {
    %c0_i32 = arith.constant 0 : i32
    %c0_i32_0 = arith.constant 0 : i32
    %c0_i32_1 = arith.constant 0 : i32
    %c0_i32_2 = arith.constant 0 : i32
    return %c0_i32, %c0_i32_0, %c0_i32_1 : i32, i32, i32
  }
  func.func @transform_7(%arg0: i32) -> (i32, i32) {
    %c0_i32 = arith.constant 0 : i32
    %c0_i32_0 = arith.constant 0 : i32
    %c0_i32_1 = arith.constant 0 : i32
    return %c0_i32, %c0_i32_0 : i32, i32
  }
  func.func @transform_8(%arg0: i32) -> (i32, i32) {
    %c0_i32 = arith.constant 0 : i32
    %c0_i32_0 = arith.constant 0 : i32
    %c0_i32_1 = arith.constant 0 : i32
    return %c0_i32, %c0_i32_0 : i32, i32
  }
  func.func @transform_9(%arg0: i32) -> (i32, i32, i32) {
    %c0_i32 = arith.constant 0 : i32
    %c0_i32_0 = arith.constant 0 : i32
    %c0_i32_1 = arith.constant 0 : i32
    return %arg0, %c0_i32, %c0_i32_0 : i32, i32, i32
  }
}

</mosaic_0001>

<llo_original>
// kernel: tpu_custom_call.1
$region0: #{tpu_custom_call.1}
  #allocation0 [shape = 'u32[]', space=smem, size = 0x4, offset = 0x4, fixed_abs, tag = 'smem constant byte address 0x4 - core index']
  #allocation1 [shape = 'u32[144,128]{1,0:T(1,128)}', space=vmem, size = 0x12000, scoped, tag = 'internal scratch']
  #allocation2 [shape = 'f32[110,128]{1,0:T(8,128)}', space=vmem, size = 0xe000, scoped, tag = 'scratch operand']
  #allocation3 [shape = 'f32[110,128]{1,0:T(8,128)}', space=vmem, size = 0xe000, scoped, tag = 'scratch operand']
  %s0 = inlined_call_operand.vmem [shape: bf16[2,110,128], index: 0, kind: input, shape index: {}]
  %s1 = inlined_call_operand.vmem [shape: f32[110,1], index: 1, kind: input, shape index: {}]
  %s2 = inlined_call_operand.vmem [shape: bf16[128,128], index: 2, kind: input, shape index: {}]
  %s3 = inlined_call_operand.vmem [shape: bf16[128,128], index: 3, kind: input, shape index: {}]
  %s4 = inlined_call_operand.hbm [shape: bf16[9,128,128], index: 4, kind: input, shape index: {}]
  %s5 = inlined_call_operand.hbm [shape: bf16[9,128,128], index: 5, kind: input, shape index: {}]
  %s6 = inlined_call_operand.vmem [shape: bf16[3,128,128], index: 6, kind: input, shape index: {}]
  %s7 = inlined_call_operand.vmem [shape: f32[8,128], index: 7, kind: input, shape index: {}]
  %s8 = inlined_call_operand.vmem [shape: f32[2,128], index: 8, kind: input, shape index: {}]
  %s9 = inlined_call_operand.hbm [shape: f32[2,80,128], index: 9, kind: output, shape index: {}]
  %s10 = sld [smem:[#allocation0]]
  $region77: #{tpu_custom_call.1} parent=0
    _
  %s12 = ssub.s32 1, %s10
  %s13 = scalar_select 0, %s12, %s10
  $region1: #{tpu_custom_call.1} parent=0
    #allocation4 [shape = 'u8[294912]{0}', space=vmem, size = 0x48000, scoped, tag = 'input window, operand 4, single buffered']
    #allocation5 [shape = 's32[2]{0}', space=sflag, size = 0x8, scoped, tag = 'scoped memory for tpu_custom_call.1']
    #allocation6 [shape = 's32[2]{0}', space=sflag, size = 0x8, scoped, tag = 'scoped memory for tpu_custom_call.1']
    #allocation7 [shape = 'u8[294912]{0}', space=vmem, size = 0x48000, scoped, tag = 'input window, operand 5, single buffered']
    #allocation8 [shape = 's32[1]{0}', space=sflag, size = 0x4, scoped, tag = 'scoped memory for tpu_custom_call.1']
    #allocation9 [shape = 'u8[81920]{0}', space=vmem, size = 0x14000, scoped, tag = 'output window, operand 0']
    %14 = vsyncpa [#allocation5], 0
    %15 = vsyncpa [#allocation8], 0
    %16 = vsyncpa [#allocation6], 0
    %s17 = scalar_lea.sflag [#allocation6], 1
    %18 = vsyncpa %s17, 0
    loop: start=0, step=1, limit=4
    $region2: #{tpu_custom_call.1} parent=1 // loop_pre_header
      _
    $region3: #{tpu_custom_call.1} parent=1 // loop_header
      %s20 = sphi 0, %s24
      %p21 = scmp.ge.s32.totalorder %s20, 4
      %s30 = sphi 0, %s32
      %s33 = sphi 0, %s30
      %s34 = sphi 0, %s33
      %s50 = sphi 0, %s34
      %s54 = sphi 0, %s54
      %s56 = sphi 0, %s54
      %s57 = sphi 0, %s56
      %s71 = sphi 0, %s57
      %s75 = sphi 0, %s75
      %s77 = sphi 0, %s75
      %s78 = sphi 0, %s77
      %s92 = sphi 0, %s78
      %s96 = sphi 0, %s96
      %s98 = sphi 0, %s96
      %s99 = sphi 0, %s98
      %s113 = sphi 0, %s99
      %s117 = sphi 0, %s117
      %s119 = sphi 0, %s117
      %s120 = sphi 0, %s119
      %s134 = sphi 0, %s120
      %s138 = sphi 0, %s138
      %s140 = sphi 0, %s138
      %s141 = sphi 0, %s140
      %s155 = sphi 0, %s141
      %s159 = sphi 0, %s159
      %s161 = sphi 0, %s159
      %s162 = sphi 0, %s161
      %s176 = sphi 0, %s162
      %s180 = sphi 0, %s180
      %s182 = sphi 0, %s180
      %s183 = sphi 0, %s182
      %s197 = sphi 0, %s183
      %s201 = sphi 0, %s201
      %s203 = sphi 0, %s201
      %s204 = sphi 0, %s203
      %s218 = sphi 0, %s204
      %s224 = sphi 0, %s226
      %s227 = sphi 0, %s224
      %s228 = sphi 0, %s227
      %s244 = sphi 0, %s228
    $region4: #{tpu_custom_call.1} parent=1 // loop_header_branch
      %23 = sbr.rel (%p21) target = $region8
    $region5: #{tpu_custom_call.1} parent=1 // loop_body
      %s25 = ssub.s32 %s20, 1
      %s26 = ssub.s32 %s20, 2
      %s27 = sadd.s32 %s20, 1
      %s28 = ssub.s32 %s20, %s27
      %p29 = scmp.eq.s32.totalorder %s28, 0
      %s31 = sadd.s32 %s30, 1
      %s32 = scalar_select %p29, %s30, %s31
      %p35 = pneg %p29
      %p36 = scmp.eq.s32.totalorder %s20, 1
      %p37 = por %p35, %p36
      %p38 = scmp.ne.s32.totalorder %s30, %s33
      %p39 = scmp.eq.s32.totalorder %s20, 0
      %p40 = por %p38, %p39
      %p41 = scmp.ne.s32.totalorder %s30, %s33
      %p42 = scmp.eq.s32.totalorder %s25, 1
      %p43 = por %p41, %p42
      %p44 = scmp.ne.s32.totalorder %s33, %s34
      %p45 = scmp.eq.s32.totalorder %s25, 0
      %p46 = por %p44, %p45
      %p47 = scmp.ne.s32.totalorder %s33, %s34
      %p48 = scmp.eq.s32.totalorder %s26, 1
      %p49 = por %p47, %p48
      %p51 = scmp.ne.s32.totalorder %s34, %s50
      %p52 = scmp.eq.s32.totalorder %s26, 0
      %p53 = por %p51, %p52
      %s55 = sadd.s32 %s54, 1
      %p58 = scmp.eq.s32.totalorder %s20, 1
      %p59 = scmp.ne.s32.totalorder %s54, %s56
      %p60 = scmp.eq.s32.totalorder %s20, 0
      %p61 = por %p59, %p60
      %p62 = scmp.ne.s32.totalorder %s54, %s56
      %p63 = scmp.eq.s32.totalorder %s25, 1
      %p64 = por %p62, %p63
      %p65 = scmp.ne.s32.totalorder %s56, %s57
      %p66 = scmp.eq.s32.totalorder %s25, 0
      %p67 = por %p65, %p66
      %p68 = scmp.ne.s32.totalorder %s56, %s57
      %p69 = scmp.eq.s32.totalorder %s26, 1
      %p70 = por %p68, %p69
      %p72 = scmp.ne.s32.totalorder %s57, %s71
      %p73 = scmp.eq.s32.totalorder %s26, 0
      %p74 = por %p72, %p73
      %s76 = sadd.s32 %s75, 1
      %p79 = scmp.eq.s32.totalorder %s20, 1
      %p80 = scmp.ne.s32.totalorder %s75, %s77
      %p81 = scmp.eq.s32.totalorder %s20, 0
      %p82 = por %p80, %p81
      %p83 = scmp.ne.s32.totalorder %s75, %s77
      %p84 = scmp.eq.s32.totalorder %s25, 1
      %p85 = por %p83, %p84
      %p86 = scmp.ne.s32.totalorder %s77, %s78
      %p87 = scmp.eq.s32.totalorder %s25, 0
      %p88 = por %p86, %p87
      %p89 = scmp.ne.s32.totalorder %s77, %s78
      %p90 = scmp.eq.s32.totalorder %s26, 1
      %p91 = por %p89, %p90
      %p93 = scmp.ne.s32.totalorder %s78, %s92
      %p94 = scmp.eq.s32.totalorder %s26, 0
      %p95 = por %p93, %p94
      %s97 = sadd.s32 %s96, 1
      %p100 = scmp.eq.s32.totalorder %s20, 1
      %p101 = scmp.ne.s32.totalorder %s96, %s98
      %p102 = scmp.eq.s32.totalorder %s20, 0
      %p103 = por %p101, %p102
      %p104 = scmp.ne.s32.totalorder %s96, %s98
      %p105 = scmp.eq.s32.totalorder %s25, 1
      %p106 = por %p104, %p105
      %p107 = scmp.ne.s32.totalorder %s98, %s99
      %p108 = scmp.eq.s32.totalorder %s25, 0
      %p109 = por %p107, %p108
      %p110 = scmp.ne.s32.totalorder %s98, %s99
      %p111 = scmp.eq.s32.totalorder %s26, 1
      %p112 = por %p110, %p111
      %p114 = scmp.ne.s32.totalorder %s99, %s113
      %p115 = scmp.eq.s32.totalorder %s26, 0
      %p116 = por %p114, %p115
      %s118 = sadd.s32 %s117, 1
      %p121 = scmp.eq.s32.totalorder %s20, 1
      %p122 = scmp.ne.s32.totalorder %s117, %s119
      %p123 = scmp.eq.s32.totalorder %s20, 0
      %p124 = por %p122, %p123
      %p125 = scmp.ne.s32.totalorder %s117, %s119
      %p126 = scmp.eq.s32.totalorder %s25, 1
      %p127 = por %p125, %p126
      %p128 = scmp.ne.s32.totalorder %s119, %s120
      %p129 = scmp.eq.s32.totalorder %s25, 0
      %p130 = por %p128, %p129
      %p131 = scmp.ne.s32.totalorder %s119, %s120
      %p132 = scmp.eq.s32.totalorder %s26, 1
      %p133 = por %p131, %p132
      %p135 = scmp.ne.s32.totalorder %s120, %s134
      %p136 = scmp.eq.s32.totalorder %s26, 0
      %p137 = por %p135, %p136
      %s139 = sadd.s32 %s138, 1
      %p142 = scmp.eq.s32.totalorder %s20, 1
      %p143 = scmp.ne.s32.totalorder %s138, %s140
      %p144 = scmp.eq.s32.totalorder %s20, 0
      %p145 = por %p143, %p144
      %p146 = scmp.ne.s32.totalorder %s138, %s140
      %p147 = scmp.eq.s32.totalorder %s25, 1
      %p148 = por %p146, %p147
      %p149 = scmp.ne.s32.totalorder %s140, %s141
      %p150 = scmp.eq.s32.totalorder %s25, 0
      %p151 = por %p149, %p150
      %p152 = scmp.ne.s32.totalorder %s140, %s141
      %p153 = scmp.eq.s32.totalorder %s26, 1
      %p154 = por %p152, %p153
      %p156 = scmp.ne.s32.totalorder %s141, %s155
      %p157 = scmp.eq.s32.totalorder %s26, 0
      %p158 = por %p156, %p157
      %s160 = sadd.s32 %s159, 1
      %p163 = scmp.eq.s32.totalorder %s20, 1
      %p164 = scmp.ne.s32.totalorder %s159, %s161
      %p165 = scmp.eq.s32.totalorder %s20, 0
      %p166 = por %p164, %p165
      %p167 = scmp.ne.s32.totalorder %s159, %s161
      %p168 = scmp.eq.s32.totalorder %s25, 1
      %p169 = por %p167, %p168
      %p170 = scmp.ne.s32.totalorder %s161, %s162
      %p171 = scmp.eq.s32.totalorder %s25, 0
      %p172 = por %p170, %p171
      %p173 = scmp.ne.s32.totalorder %s161, %s162
      %p174 = scmp.eq.s32.totalorder %s26, 1
      %p175 = por %p173, %p174
      %p177 = scmp.ne.s32.totalorder %s162, %s176
      %p178 = scmp.eq.s32.totalorder %s26, 0
      %p179 = por %p177, %p178
      %s181 = sadd.s32 %s180, 1
      %p184 = scmp.eq.s32.totalorder %s20, 1
      %p185 = scmp.ne.s32.totalorder %s180, %s182
      %p186 = scmp.eq.s32.totalorder %s20, 0
      %p187 = por %p185, %p186
      %p188 = scmp.ne.s32.totalorder %s180, %s182
      %p189 = scmp.eq.s32.totalorder %s25, 1
      %p190 = por %p188, %p189
      %p191 = scmp.ne.s32.totalorder %s182, %s183
      %p192 = scmp.eq.s32.totalorder %s25, 0
      %p193 = por %p191, %p192
      %p194 = scmp.ne.s32.totalorder %s182, %s183
      %p195 = scmp.eq.s32.totalorder %s26, 1
      %p196 = por %p194, %p195
      %p198 = scmp.ne.s32.totalorder %s183, %s197
      %p199 = scmp.eq.s32.totalorder %s26, 0
      %p200 = por %p198, %p199
      %s202 = sadd.s32 %s201, 1
      %p205 = scmp.eq.s32.totalorder %s20, 1
      %p206 = scmp.ne.s32.totalorder %s201, %s203
      %p207 = scmp.eq.s32.totalorder %s20, 0
      %p208 = por %p206, %p207
      %p209 = scmp.ne.s32.totalorder %s201, %s203
      %p210 = scmp.eq.s32.totalorder %s25, 1
      %p211 = por %p209, %p210
      %p212 = scmp.ne.s32.totalorder %s203, %s204
      %p213 = scmp.eq.s32.totalorder %s25, 0
      %p214 = por %p212, %p213
      %p215 = scmp.ne.s32.totalorder %s203, %s204
      %p216 = scmp.eq.s32.totalorder %s26, 1
      %p217 = por %p215, %p216
      %p219 = scmp.ne.s32.totalorder %s204, %s218
      %p220 = scmp.eq.s32.totalorder %s26, 0
      %p221 = por %p219, %p220
      %s222 = ssub.s32 %s20, %s27
      %p223 = scmp.eq.s32.totalorder %s222, 0
      %s225 = sadd.s32 %s224, 1
      %s226 = scalar_select %p223, %s224, %s225
      %p229 = pneg %p223
      %p230 = scmp.eq.s32.totalorder %s20, 1
      %p231 = por %p229, %p230
      %p232 = scmp.ne.s32.totalorder %s224, %s227
      %p233 = scmp.eq.s32.totalorder %s20, 0
      %p234 = por %p232, %p233
      %p235 = scmp.ne.s32.totalorder %s224, %s227
      %p236 = scmp.eq.s32.totalorder %s25, 1
      %p237 = por %p235, %p236
      %p238 = scmp.ne.s32.totalorder %s227, %s228
      %p239 = scmp.eq.s32.totalorder %s25, 0
      %p240 = por %p238, %p239
      %p241 = scmp.ne.s32.totalorder %s227, %s228
      %p242 = scmp.eq.s32.totalorder %s26, 1
      %p243 = por %p241, %p242
      %p245 = scmp.ne.s32.totalorder %s228, %s244
      %p246 = scmp.eq.s32.totalorder %s26, 0
      %p247 = por %p245, %p246
      %p248 = scmp.le.s32.totalorder 1, %s20
      %p249 = scmp.lt.s32.totalorder %s20, 3
      %p250 = pnand %p248, %p249
      %p251 = pneg %p250
      // Predicated region
      $region9: #{tpu_custom_call.1} parent=5 // pred_check
        _
      $region10: #{tpu_custom_call.1} parent=5 // pred_check_branch
        %253 = sbr.rel (%p250) target = $region12
      $region11: #{tpu_custom_call.1} parent=5 // pred_region
        %s254 = ssub.s32 %s20, 1
        // Predicated region
        $region13: #{tpu_custom_call.1} parent=11 // pred_check
          %p255 = pneg %p67
        $region14: #{tpu_custom_call.1} parent=11 // pred_check_branch
          %257 = sbr.rel (%p255) target = $region16
        $region15: #{tpu_custom_call.1} parent=11 // pred_region
          _
        $region16: #{tpu_custom_call.1} parent=11 // pred_fallthru
          _
        // Predicated region
        $region17: #{tpu_custom_call.1} parent=11 // pred_check
          %p258 = pneg %p88
        $region18: #{tpu_custom_call.1} parent=11 // pred_check_branch
          %260 = sbr.rel (%p258) target = $region20
        $region19: #{tpu_custom_call.1} parent=11 // pred_region
          _
        $region20: #{tpu_custom_call.1} parent=11 // pred_fallthru
          _
        // Predicated region
        $region21: #{tpu_custom_call.1} parent=11 // pred_check
          %p261 = pneg %p109
        $region22: #{tpu_custom_call.1} parent=11 // pred_check_branch
          %263 = sbr.rel (%p261) target = $region24
        $region23: #{tpu_custom_call.1} parent=11 // pred_region
          _
        $region24: #{tpu_custom_call.1} parent=11 // pred_fallthru
          _
        // Predicated region
        $region25: #{tpu_custom_call.1} parent=11 // pred_check
          %p264 = pneg %p130
        $region26: #{tpu_custom_call.1} parent=11 // pred_check_branch
          %266 = sbr.rel (%p264) target = $region28
        $region27: #{tpu_custom_call.1} parent=11 // pred_region
          %s268 = ssub.s32 9216, 9216
          %269 = vsyncadd [#allocation5], %s268
          %s270 = sshll.u32 [#allocation4], 4
          %s271 = int_to_ptr.vmem [resolvable:$true] %s270
          %276 = dma.hbm_to_vmem [thread:$0]  %s4, 9216, %s271, [#allocation5], 64, 64, 4
        $region28: #{tpu_custom_call.1} parent=11 // pred_fallthru
          _
        // Predicated region
        $region29: #{tpu_custom_call.1} parent=11 // pred_check
          %p277 = pneg %p151
        $region30: #{tpu_custom_call.1} parent=11 // pred_check_branch
          %279 = sbr.rel (%p277) target = $region32
        $region31: #{tpu_custom_call.1} parent=11 // pred_region
          %s281 = ssub.s32 9216, 9216
          %282 = vsyncadd [#allocation8], %s281
          %s283 = sshll.u32 [#allocation7], 4
          %s284 = int_to_ptr.vmem [resolvable:$true] %s283
          %289 = dma.hbm_to_vmem [thread:$0]  %s5, 9216, %s284, [#allocation8], 64, 64, 4
        $region32: #{tpu_custom_call.1} parent=11 // pred_fallthru
          _
        // Predicated region
        $region33: #{tpu_custom_call.1} parent=11 // pred_check
          %p290 = pneg %p172
        $region34: #{tpu_custom_call.1} parent=11 // pred_check_branch
          %292 = sbr.rel (%p290) target = $region36
        $region35: #{tpu_custom_call.1} parent=11 // pred_region
          _
        $region36: #{tpu_custom_call.1} parent=11 // pred_fallthru
          _
        // Predicated region
        $region37: #{tpu_custom_call.1} parent=11 // pred_check
          %p293 = pneg %p193
        $region38: #{tpu_custom_call.1} parent=11 // pred_check_branch
          %295 = sbr.rel (%p293) target = $region40
        $region39: #{tpu_custom_call.1} parent=11 // pred_region
          _
        $region40: #{tpu_custom_call.1} parent=11 // pred_fallthru
          _
        // Predicated region
        $region41: #{tpu_custom_call.1} parent=11 // pred_check
          %p296 = pneg %p214
        $region42: #{tpu_custom_call.1} parent=11 // pred_check_branch
          %298 = sbr.rel (%p296) target = $region44
        $region43: #{tpu_custom_call.1} parent=11 // pred_region
          _
        $region44: #{tpu_custom_call.1} parent=11 // pred_fallthru
          _
      $region12: #{tpu_custom_call.1} parent=5 // pred_fallthru
        _
      %p299 = scmp.lt.s32.totalorder %s20, 2
      // Predicated region
      $region45: #{tpu_custom_call.1} parent=5 // pred_check
        %p300 = pneg %p299
      $region46: #{tpu_custom_call.1} parent=5 // pred_check_branch
        %302 = sbr.rel (%p300) target = $region48
      $region47: #{tpu_custom_call.1} parent=5 // pred_region
        // Predicated region
        $region49: #{tpu_custom_call.1} parent=47 // pred_check
          %p303 = pneg %p40
        $region50: #{tpu_custom_call.1} parent=47 // pred_check_branch
          %305 = sbr.rel (%p303) target = $region52
        $region51: #{tpu_custom_call.1} parent=47 // pred_region
          %p306 = scmp.lt.s32.totalorder %s20, 1
          %s307 = scalar_select %p306, %s20, 1
          %s308 = smul.addr %s307, 14
          %s309 = smul.addr %s308, 4
          %s310 = scalar_lea.vmem %s0, %s309
        $region52: #{tpu_custom_call.1} parent=47 // pred_fallthru
          _
      $region48: #{tpu_custom_call.1} parent=5 // pred_fallthru
        _
      %p311 = scmp.le.s32.totalorder 1, %s20
      %p312 = scmp.lt.s32.totalorder %s20, 3
      %p313 = pnand %p311, %p312
      %p314 = pneg %p313
      // Predicated region
      $region53: #{tpu_custom_call.1} parent=5 // pred_check
        _
      $region54: #{tpu_custom_call.1} parent=5 // pred_check_branch
        %316 = sbr.rel (%p313) target = $region56
      $region55: #{tpu_custom_call.1} parent=5 // pred_region
        %s317 = ssub.s32 %s20, 1
        // Predicated region
        $region57: #{tpu_custom_call.1} parent=55 // pred_check
          %p318 = pneg %p130
        $region58: #{tpu_custom_call.1} parent=55 // pred_check_branch
          %320 = sbr.rel (%p318) target = $region60
        $region59: #{tpu_custom_call.1} parent=55 // pred_region
          %321 = dma.done [#allocation5], 9216
        $region60: #{tpu_custom_call.1} parent=55 // pred_fallthru
          _
        // Predicated region
        $region61: #{tpu_custom_call.1} parent=55 // pred_check
          %p322 = pneg %p151
        $region62: #{tpu_custom_call.1} parent=55 // pred_check_branch
          %324 = sbr.rel (%p322) target = $region64
        $region63: #{tpu_custom_call.1} parent=55 // pred_region
          %325 = dma.done [#allocation8], 9216
        $region64: #{tpu_custom_call.1} parent=55 // pred_fallthru
          _
        %p326 = scmp.lt.s32.totalorder %s25, 1
        %s327 = scalar_select %p326, %s25, 1
        %s328 = smul.addr %s327, 14
        %s329 = smul.addr %s328, 4
        %s330 = scalar_lea.vmem %s0, %s329
        %p331 = pneg %p46
        %p332 = pneg %p43
        %p333 = pneg %p67
        %p334 = pneg %p64
        %p335 = pneg %p88
        %p336 = pneg %p85
        %p337 = pneg %p109
        %p338 = pneg %p106
        %p339 = pneg %p130
        %p340 = pneg %p127
        %p341 = pneg %p151
        %p342 = pneg %p148
        %p343 = pneg %p172
        %p344 = pneg %p169
        %p345 = pneg %p193
        %p346 = pneg %p190
        %p347 = pneg %p214
        %p348 = pneg %p211
        %p349 = pneg %p240
        %p350 = pneg %p237
        %s351 = sand.u32 %s227, 1
        %s352 = scalar_lea.sflag [#allocation6], %s351
        %s353 = sand.u32 %s227, 1
        %s354 = smul.addr %s353, 80
        %s355 = scalar_lea.vmem [#allocation9], %s354
        %p356 = scmp.lt.s32.totalorder %s25, 1
        %s357 = scalar_select %p356, %s25, 1
        %s358 = smul.addr %s357, 14
        %s359 = smul.addr %s358, 4
        %s360 = scalar_lea.vmem %s0, %s359
        %v362 = vld [vmem:[%s360] sm:$0xf]
        %v363 = vld [vmem:[%s360 + $0x4] sm:$0xf]
        %v364 = vld [vmem:[%s360 + $0x8] sm:$0xf]
        %v365 = vld [vmem:[%s360 + $0xc] sm:$0xf]
        %v366 = vld [vmem:[%s360 + $0x10] sm:$0xf]
        %v367 = vld [vmem:[%s360 + $0x14] sm:$0xf]
        %v368 = vld [vmem:[%s360 + $0x18] sm:$0xf]
        %v369 = vld [vmem:[%s360 + $0x1c] sm:$0xf]
        %v370 = vld [vmem:[%s360 + $0x20] sm:$0xf]
        %v371 = vld [vmem:[%s360 + $0x24] sm:$0xf]
        %v372 = vld [vmem:[%s360 + $0x28] sm:$0xf]
        %v373 = vld [vmem:[%s360 + $0x2c] sm:$0xf]
        %v374 = vld [vmem:[%s360 + $0x30] sm:$0xf]
        %v375 = vld [vmem:[%s360 + $0x34] sm:$0x7]
        %v376 = vld [vmem:[%s1] sm:$0xff]
        %v377 = vld [vmem:[%s1 + $0x8] sm:$0xff]
        %v378 = vld [vmem:[%s1 + $0x10] sm:$0xff]
        %v379 = vld [vmem:[%s1 + $0x18] sm:$0xff]
        %v380 = vld [vmem:[%s1 + $0x20] sm:$0xff]
        %v381 = vld [vmem:[%s1 + $0x28] sm:$0xff]
        %v382 = vld [vmem:[%s1 + $0x30] sm:$0xff]
        %v383 = vld [vmem:[%s1 + $0x38] sm:$0xff]
        %v384 = vld [vmem:[%s1 + $0x40] sm:$0xff]
        %v385 = vld [vmem:[%s1 + $0x48] sm:$0xff]
        %v386 = vld [vmem:[%s1 + $0x50] sm:$0xff]
        %v387 = vld [vmem:[%s1 + $0x58] sm:$0xff]
        %v388 = vld [vmem:[%s1 + $0x60] sm:$0xff]
        %v389 = vld [vmem:[%s1 + $0x68] sm:$0x3f]
        %v390 = vld [vmem:[%s7] sm:$0xff]
        %v391 = vld [vmem:[%s8] sm:$0x3]
        %v392 = vld [vmem:[%s2] sm:$0xf]
        %v393 = vld [vmem:[%s2 + $0x4] sm:$0xf]
        %v394 = vld [vmem:[%s2 + $0x8] sm:$0xf]
        %v395 = vld [vmem:[%s2 + $0xc] sm:$0xf]
        %v396 = vld [vmem:[%s2 + $0x10] sm:$0xf]
        %v397 = vld [vmem:[%s2 + $0x14] sm:$0xf]
        %v398 = vld [vmem:[%s2 + $0x18] sm:$0xf]
        %v399 = vld [vmem:[%s2 + $0x1c] sm:$0xf]
        %v400 = vld [vmem:[%s2 + $0x20] sm:$0xf]
        %v401 = vld [vmem:[%s2 + $0x24] sm:$0xf]
        %v402 = vld [vmem:[%s2 + $0x28] sm:$0xf]
        %v403 = vld [vmem:[%s2 + $0x2c] sm:$0xf]
        %v404 = vld [vmem:[%s2 + $0x30] sm:$0xf]
        %v405 = vld [vmem:[%s2 + $0x34] sm:$0xf]
        %v406 = vld [vmem:[%s2 + $0x38] sm:$0xf]
        %v407 = vld [vmem:[%s2 + $0x3c] sm:$0xf]
        %v419 = vunpack.c.l.b16 %v363
        %v420 = vunpack.c.l.b16 %v364
        %v421 = vunpack.c.l.b16 %v365
        %v422 = vunpack.c.l.b16 %v366
        %v423 = vunpack.c.l.b16 %v367
        %v424 = vunpack.c.l.b16 %v368
        %v425 = vunpack.c.l.b16 %v369
        %v426 = vunpack.c.l.b16 %v370
        %v427 = vunpack.c.l.b16 %v371
        %v428 = vunpack.c.l.b16 %v372
        %v429 = vunpack.c.l.b16 %v373
        %v430 = vpack.c.b16 %v420, %v419
        %v431 = vpack.c.b16 %v422, %v421
        %v432 = vpack.c.b16 %v424, %v423
        %v433 = vpack.c.b16 %v426, %v425
        %v434 = vpack.c.b16 %v428, %v427
        %v435 = vpack.c.b16 %v429, %v429
        %vm436 = vsmask.f32 6400
        %v438 = vshrl.u32 %v430, 16
        %v440 = vrot.slane %v438, 1
        %v441 = vshll.u32 %v430, 16
        %v443 = vrot.slane %v441, 2
        %v444 = vor.u32 %v440, %v443
        %v446 = vshrl.u32 %v431, 16
        %v448 = vrot.slane %v446, 1
        %v449 = vshll.u32 %v431, 16
        %v451 = vrot.slane %v449, 2
        %v452 = vor.u32 %v448, %v451
        %v453 = vsel %vm436, %v444, %v452
        %v455 = vshrl.u32 %v432, 16
        %v457 = vrot.slane %v455, 1
        %v458 = vshll.u32 %v432, 16
        %v460 = vrot.slane %v458, 2
        %v461 = vor.u32 %v457, %v460
        %v462 = vsel %vm436, %v452, %v461
        %v464 = vshrl.u32 %v433, 16
        %v466 = vrot.slane %v464, 1
        %v467 = vshll.u32 %v433, 16
        %v469 = vrot.slane %v467, 2
        %v470 = vor.u32 %v466, %v469
        %v471 = vsel %vm436, %v461, %v470
        %v473 = vshrl.u32 %v434, 16
        %v475 = vrot.slane %v473, 1
        %v476 = vshll.u32 %v434, 16
        %v478 = vrot.slane %v476, 2
        %v479 = vor.u32 %v475, %v478
        %v480 = vsel %vm436, %v470, %v479
        %v482 = vshrl.u32 %v435, 16
        %v484 = vrot.slane %v482, 1
        %v485 = vshll.u32 %v435, 16
        %v487 = vrot.slane %v485, 2
        %v488 = vor.u32 %v484, %v487
        %v489 = vsel %vm436, %v479, %v488
        %v511 = vunpack.c.l.b16 %v392
        %v512 = vunpack.c.l.b16 %v393
        %v513 = vunpack.c.l.b16 %v394
        %v514 = vunpack.c.l.b16 %v395
        %v515 = vunpack.c.l.b16 %v396
        %v516 = vunpack.c.l.b16 %v397
        %v517 = vunpack.c.l.b16 %v398
        %v518 = vunpack.c.l.b16 %v399
        %v519 = vunpack.c.l.b16 %v400
        %v520 = vunpack.c.l.b16 %v401
        %v521 = vunpack.c.l.b16 %v402
        %v522 = vunpack.c.l.b16 %v403
        %v523 = vunpack.c.l.b16 %v404
        %v524 = vunpack.c.l.b16 %v405
        %v525 = vunpack.c.l.b16 %v406
        %v526 = vunpack.c.l.b16 %v407
        %v527 = vpack.c.b16 %v512, %v511
        %v528 = vpack.c.b16 %v514, %v513
        %v529 = vpack.c.b16 %v516, %v515
        %v530 = vpack.c.b16 %v518, %v517
        %v531 = vpack.c.b16 %v520, %v519
        %v532 = vpack.c.b16 %v522, %v521
        %v533 = vpack.c.b16 %v524, %v523
        %v534 = vpack.c.b16 %v526, %v525
        %543 = vmatprep.subr.bf16.mxu0 0
        %544 = vmatpush1.bf16.msra.mxu0 %v527
        %545 = vmatprep.subr.bf16.mxu0 0
        %546 = vmatpush1.bf16.msra.mxu0 %v528
        %547 = vmatprep.subr.bf16.mxu0 0
        %548 = vmatpush1.bf16.msra.mxu0 %v529
        %549 = vmatprep.subr.bf16.mxu0 0
        %550 = vmatpush1.bf16.msra.mxu0 %v530
        %551 = vmatprep.subr.bf16.mxu0 0
        %552 = vmatpush1.bf16.msra.mxu0 %v531
        %553 = vmatprep.subr.bf16.mxu0 0
        %554 = vmatpush1.bf16.msra.mxu0 %v532
        %555 = vmatprep.subr.bf16.mxu0 0
        %556 = vmatpush1.bf16.msra.mxu0 %v533
        %557 = vmatprep.subr.bf16.mxu0 0
        %558 = vmatpush1.bf16.msra.mxu0 %v534
        %559 = vmatprep.subr.bf16.mxu0 0
        %560 = vmatpush1.bf16.msra.mxu0 0
        %561 = vmatprep.subr.bf16.mxu0 0
        %562 = vmatpush1.bf16.msra.mxu0 0
        %563 = vmatprep.subr.bf16.mxu0 0
        %564 = vmatpush1.bf16.msra.mxu0 0
        %565 = vmatprep.subr.bf16.mxu0 0
        %566 = vmatpush1.bf16.msra.mxu0 0
        %567 = vmatprep.subr.bf16.mxu0 0
        %568 = vmatpush1.bf16.msra.mxu0 0
        %569 = vmatprep.subr.bf16.mxu0 0
        %570 = vmatpush1.bf16.msra.mxu0 0
        %571 = vmatprep.subr.bf16.mxu0 0
        %572 = vmatpush1.bf16.msra.mxu0 0
        %573 = vmatprep.subr.bf16.mxu0 0
        %574 = vmatpush1.bf16.msra.mxu0 0
        %575 = vmatprep.mubr.bf16.mxu0 0
        %576 = vmatmul.mubr.bf16.gmra.mrb[0].mxu0 %v453
        %v577 = vpop.f32.mrb[0].mxu0
        %v578 = vadd.f32 0.0, %v577
        %v579 = vpop.f32.mrb[0].mxu0
        %v580 = vpop.f32.mrb[0].mxu0
        %v581 = vadd.f32 0.0, %v580
        %v582 = vpop.f32.mrb[0].mxu0
        %583 = vmatprep.mubr.bf16.mxu0 0
        %584 = vmatmul.mubr.bf16.gmra.mrb[0].mxu0 %v462
        %v585 = vpop.f32.mrb[0].mxu0
        %v586 = vadd.f32 0.0, %v585
        %v587 = vpop.f32.mrb[0].mxu0
        %v588 = vpop.f32.mrb[0].mxu0
        %v589 = vadd.f32 0.0, %v588
        %v590 = vpop.f32.mrb[0].mxu0
        %591 = vmatprep.mubr.bf16.mxu0 0
        %592 = vmatmul.mubr.bf16.gmra.mrb[0].mxu0 %v471
        %v593 = vpop.f32.mrb[0].mxu0
        %v594 = vadd.f32 0.0, %v593
        %v595 = vpop.f32.mrb[0].mxu0
        %v596 = vpop.f32.mrb[0].mxu0
        %v597 = vadd.f32 0.0, %v596
        %v598 = vpop.f32.mrb[0].mxu0
        %599 = vmatprep.mubr.bf16.mxu0 0
        %600 = vmatmul.mubr.bf16.gmra.mrb[0].mxu0 %v480
        %v601 = vpop.f32.mrb[0].mxu0
        %v602 = vadd.f32 0.0, %v601
        %v603 = vpop.f32.mrb[0].mxu0
        %v604 = vpop.f32.mrb[0].mxu0
        %v605 = vadd.f32 0.0, %v604
        %v606 = vpop.f32.mrb[0].mxu0
        %607 = vmatprep.mubr.bf16.mxu0 0
        %608 = vmatmul.mubr.bf16.gmra.mrb[0].mxu0 %v489
        %v609 = vpop.f32.mrb[0].mxu0
        %v610 = vadd.f32 0.0, %v609
        %v611 = vpop.f32.mrb[0].mxu0
        %v612 = vpop.f32.mrb[0].mxu0
        %v613 = vadd.f32 0.0, %v612
        %v614 = vpop.f32.mrb[0].mxu0
        %615 = vdwg.mxu0
        %v616 = vlaneseq
        %v617 = vshrl.u32 %v616, 7
        %v618 = vsub.s32 0, %v617
        %v619 = vrot.slane %v390, %v618
        %v620 = vmul.f32 %v578, %v619
        %v621 = vmul.f32 %v581, %v619
        %v622 = vmul.f32 %v586, %v619
        %v623 = vmul.f32 %v589, %v619
        %v624 = vmul.f32 %v594, %v619
        %v625 = vmul.f32 %v597, %v619
        %v626 = vmul.f32 %v602, %v619
        %v627 = vmul.f32 %v605, %v619
        %v628 = vmul.f32 %v610, %v619
        %v629 = vmul.f32 %v613, %v619
        %v630 = vlaneseq
        %v631 = vshrl.u32 %v630, 7
        %v632 = vsub.s32 1, %v631
        %v633 = vrot.slane %v390, %v632
        %v634 = vadd.f32 %v620, %v633
        %v635 = vadd.f32 %v621, %v633
        %v636 = vadd.f32 %v622, %v633
        %v637 = vadd.f32 %v623, %v633
        %v638 = vadd.f32 %v624, %v633
        %v639 = vadd.f32 %v625, %v633
        %v640 = vadd.f32 %v626, %v633
        %v641 = vadd.f32 %v627, %v633
        %v642 = vadd.f32 %v628, %v633
        %v643 = vadd.f32 %v629, %v633
        %v644 = vxor.u32 %v634, 2147483648
        %v645 = vxor.u32 %v635, 2147483648
        %v646 = vxor.u32 %v636, 2147483648
        %v647 = vxor.u32 %v637, 2147483648
        %v648 = vxor.u32 %v638, 2147483648
        %v649 = vxor.u32 %v639, 2147483648
        %v650 = vxor.u32 %v640, 2147483648
        %v651 = vxor.u32 %v641, 2147483648
        %v652 = vxor.u32 %v642, 2147483648
        %v653 = vxor.u32 %v643, 2147483648
        %v654 = vmul.f32 %v644, 1.442695
        %v655 = vpow.pop %v654
        %v656 = vmul.f32 %v645, 1.442695
        %v657 = vpow.pop %v656
        %v658 = vmul.f32 %v646, 1.442695
        %v659 = vpow.pop %v658
        %v660 = vmul.f32 %v647, 1.442695
        %v661 = vpow.pop %v660
        %v662 = vmul.f32 %v648, 1.442695
        %v663 = vpow.pop %v662
        %v664 = vmul.f32 %v649, 1.442695
        %v665 = vpow.pop %v664
        %v666 = vmul.f32 %v650, 1.442695
        %v667 = vpow.pop %v666
        %v668 = vmul.f32 %v651, 1.442695
        %v669 = vpow.pop %v668
        %v670 = vmul.f32 %v652, 1.442695
        %v671 = vpow.pop %v670
        %v672 = vmul.f32 %v653, 1.442695
        %v673 = vpow.pop %v672
        %v674 = vadd.f32 %v655, 1.0
        %v675 = vadd.f32 %v657, 1.0
        %v676 = vadd.f32 %v659, 1.0
        %v677 = vadd.f32 %v661, 1.0
        %v678 = vadd.f32 %v663, 1.0
        %v679 = vadd.f32 %v665, 1.0
        %v680 = vadd.f32 %v667, 1.0
        %v681 = vadd.f32 %v669, 1.0
        %v682 = vadd.f32 %v671, 1.0
        %v683 = vadd.f32 %v673, 1.0
        %v684 = vrcp.pop %v674
        %v685 = vmul.f32 1.0, %v684
        %v686 = vrcp.pop %v675
        %v687 = vmul.f32 1.0, %v686
        %v688 = vrcp.pop %v676
        %v689 = vmul.f32 1.0, %v688
        %v690 = vrcp.pop %v677
        %v691 = vmul.f32 1.0, %v690
        %v692 = vrcp.pop %v678
        %v693 = vmul.f32 1.0, %v692
        %v694 = vrcp.pop %v679
        %v695 = vmul.f32 1.0, %v694
        %v696 = vrcp.pop %v680
        %v697 = vmul.f32 1.0, %v696
        %v698 = vrcp.pop %v681
        %v699 = vmul.f32 1.0, %v698
        %v700 = vrcp.pop %v682
        %v701 = vmul.f32 1.0, %v700
        %v702 = vrcp.pop %v683
        %v703 = vmul.f32 1.0, %v702
        %v704 = vmul.f32 %v634, %v685
        %v705 = vmul.f32 %v635, %v687
        %v706 = vmul.f32 %v636, %v689
        %v707 = vmul.f32 %v637, %v691
        %v708 = vmul.f32 %v638, %v693
        %v709 = vmul.f32 %v639, %v695
        %v710 = vmul.f32 %v640, %v697
        %v711 = vmul.f32 %v641, %v699
        %v712 = vmul.f32 %v642, %v701
        %v713 = vmul.f32 %v643, %v703
        %v714 = vld [vmem:[%s3] sm:$0xf]
        %v715 = vld [vmem:[%s3 + $0x4] sm:$0xf]
        %v716 = vld [vmem:[%s3 + $0x8] sm:$0xf]
        %v717 = vld [vmem:[%s3 + $0xc] sm:$0xf]
        %v718 = vld [vmem:[%s3 + $0x10] sm:$0xf]
        %v719 = vld [vmem:[%s3 + $0x14] sm:$0xf]
        %v720 = vld [vmem:[%s3 + $0x18] sm:$0xf]
        %v721 = vld [vmem:[%s3 + $0x1c] sm:$0xf]
        %v722 = vld [vmem:[%s3 + $0x20] sm:$0xf]
        %v723 = vld [vmem:[%s3 + $0x24] sm:$0xf]
        %v724 = vld [vmem:[%s3 + $0x28] sm:$0xf]
        %v725 = vld [vmem:[%s3 + $0x2c] sm:$0xf]
        %v726 = vld [vmem:[%s3 + $0x30] sm:$0xf]
        %v727 = vld [vmem:[%s3 + $0x34] sm:$0xf]
        %v728 = vld [vmem:[%s3 + $0x38] sm:$0xf]
        %v729 = vld [vmem:[%s3 + $0x3c] sm:$0xf]
        %v733 = vunpack.c.l.b16 %v362
        %v734 = vunpack.c.l.b16 %v374
        %v735 = vunpack.c.l.b16 %v375
        %v736 = vpack.c.b16 %v419, %v733
        %v737 = vpack.c.b16 %v421, %v420
        %v738 = vpack.c.b16 %v423, %v422
        %v739 = vpack.c.b16 %v425, %v424
        %v740 = vpack.c.b16 %v427, %v426
        %v741 = vpack.c.b16 %v429, %v428
        %v742 = vpack.c.b16 %v735, %v734
        %v766 = vunpack.c.l.b16 %v714
        %v767 = vunpack.c.l.b16 %v715
        %v768 = vunpack.c.l.b16 %v716
        %v769 = vunpack.c.l.b16 %v717
        %v770 = vunpack.c.l.b16 %v718
        %v771 = vunpack.c.l.b16 %v719
        %v772 = vunpack.c.l.b16 %v720
        %v773 = vunpack.c.l.b16 %v721
        %v774 = vunpack.c.l.b16 %v722
        %v775 = vunpack.c.l.b16 %v723
        %v776 = vunpack.c.l.b16 %v724
        %v777 = vunpack.c.l.b16 %v725
        %v778 = vunpack.c.l.b16 %v726
        %v779 = vunpack.c.l.b16 %v727
        %v780 = vunpack.c.l.b16 %v728
        %v781 = vunpack.c.l.b16 %v729
        %v782 = vpack.c.b16 %v767, %v766
        %v783 = vpack.c.b16 %v769, %v768
        %v784 = vpack.c.b16 %v771, %v770
        %v785 = vpack.c.b16 %v773, %v772
        %v786 = vpack.c.b16 %v775, %v774
        %v787 = vpack.c.b16 %v777, %v776
        %v788 = vpack.c.b16 %v779, %v778
        %v789 = vpack.c.b16 %v781, %v780
        %798 = vmatprep.subr.bf16.mxu0 0
        %799 = vmatpush1.bf16.msra.mxu0 %v782
        %800 = vmatprep.subr.bf16.mxu0 0
        %801 = vmatpush1.bf16.msra.mxu0 %v783
        %802 = vmatprep.subr.bf16.mxu0 0
        %803 = vmatpush1.bf16.msra.mxu0 %v784
        %804 = vmatprep.subr.bf16.mxu0 0
        %805 = vmatpush1.bf16.msra.mxu0 %v785
        %806 = vmatprep.subr.bf16.mxu0 0
        %807 = vmatpush1.bf16.msra.mxu0 %v786
        %808 = vmatprep.subr.bf16.mxu0 0
        %809 = vmatpush1.bf16.msra.mxu0 %v787
        %810 = vmatprep.subr.bf16.mxu0 0
        %811 = vmatpush1.bf16.msra.mxu0 %v788
        %812 = vmatprep.subr.bf16.mxu0 0
        %813 = vmatpush1.bf16.msra.mxu0 %v789
        %814 = vmatprep.subr.bf16.mxu0 0
        %815 = vmatpush1.bf16.msra.mxu0 0
        %816 = vmatprep.subr.bf16.mxu0 0
        %817 = vmatpush1.bf16.msra.mxu0 0
        %818 = vmatprep.subr.bf16.mxu0 0
        %819 = vmatpush1.bf16.msra.mxu0 0
        %820 = vmatprep.subr.bf16.mxu0 0
        %821 = vmatpush1.bf16.msra.mxu0 0
        %822 = vmatprep.subr.bf16.mxu0 0
        %823 = vmatpush1.bf16.msra.mxu0 0
        %824 = vmatprep.subr.bf16.mxu0 0
        %825 = vmatpush1.bf16.msra.mxu0 0
        %826 = vmatprep.subr.bf16.mxu0 0
        %827 = vmatpush1.bf16.msra.mxu0 0
        %828 = vmatprep.subr.bf16.mxu0 0
        %829 = vmatpush1.bf16.msra.mxu0 0
        %830 = vmatprep.mubr.bf16.mxu0 0
        %831 = vmatmul.mubr.bf16.gmra.mrb[0].mxu0 %v736
        %v832 = vpop.f32.mrb[0].mxu0
        %v833 = vadd.f32 0.0, %v832
        %v834 = vpop.f32.mrb[0].mxu0
        %v835 = vpop.f32.mrb[0].mxu0
        %v836 = vadd.f32 0.0, %v835
        %v837 = vpop.f32.mrb[0].mxu0
        %838 = vmatprep.mubr.bf16.mxu0 0
        %839 = vmatmul.mubr.bf16.gmra.mrb[0].mxu0 %v737
        %v840 = vpop.f32.mrb[0].mxu0
        %v841 = vadd.f32 0.0, %v840
        %v842 = vpop.f32.mrb[0].mxu0
        %v843 = vpop.f32.mrb[0].mxu0
        %v844 = vadd.f32 0.0, %v843
        %v845 = vpop.f32.mrb[0].mxu0
        %846 = vmatprep.mubr.bf16.mxu0 0
        %847 = vmatmul.mubr.bf16.gmra.mrb[0].mxu0 %v738
        %v848 = vpop.f32.mrb[0].mxu0
        %v849 = vadd.f32 0.0, %v848
        %v850 = vpop.f32.mrb[0].mxu0
        %v851 = vpop.f32.mrb[0].mxu0
        %v852 = vadd.f32 0.0, %v851
        %v853 = vpop.f32.mrb[0].mxu0
        %854 = vmatprep.mubr.bf16.mxu0 0
        %855 = vmatmul.mubr.bf16.gmra.mrb[0].mxu0 %v739
        %v856 = vpop.f32.mrb[0].mxu0
        %v857 = vadd.f32 0.0, %v856
        %v858 = vpop.f32.mrb[0].mxu0
        %v859 = vpop.f32.mrb[0].mxu0
        %v860 = vadd.f32 0.0, %v859
        %v861 = vpop.f32.mrb[0].mxu0
        %862 = vmatprep.mubr.bf16.mxu0 0
        %863 = vmatmul.mubr.bf16.gmra.mrb[0].mxu0 %v740
        %v864 = vpop.f32.mrb[0].mxu0
        %v865 = vadd.f32 0.0, %v864
        %v866 = vpop.f32.mrb[0].mxu0
        %v867 = vpop.f32.mrb[0].mxu0
        %v868 = vadd.f32 0.0, %v867
        %v869 = vpop.f32.mrb[0].mxu0
        %870 = vmatprep.mubr.bf16.mxu0 0
        %871 = vmatmul.mubr.bf16.gmra.mrb[0].mxu0 %v741
        %v872 = vpop.f32.mrb[0].mxu0
        %v873 = vadd.f32 0.0, %v872
        %v874 = vpop.f32.mrb[0].mxu0
        %v875 = vpop.f32.mrb[0].mxu0
        %v876 = vadd.f32 0.0, %v875
        %v877 = vpop.f32.mrb[0].mxu0
        %878 = vmatprep.mubr.bf16.mxu0 0
        %879 = vmatmul.mubr.bf16.gmra.mrb[0].mxu0 %v742
        %v880 = vpop.f32.mrb[0].mxu0
        %v881 = vadd.f32 0.0, %v880
        %v882 = vpop.f32.mrb[0].mxu0
        %v883 = vpop.f32.mrb[0].mxu0
        %v884 = vadd.f32 0.0, %v883
        %v885 = vpop.f32.mrb[0].mxu0
        %886 = vdwg.mxu0
        %v887 = vlaneseq
        %v888 = vshrl.u32 %v887, 7
        %v889 = vsub.s32 2, %v888
        %v890 = vrot.slane %v390, %v889
        %v891 = vmul.f32 %v833, %v890
        %v892 = vmul.f32 %v836, %v890
        %v893 = vmul.f32 %v841, %v890
        %v894 = vmul.f32 %v844, %v890
        %v895 = vmul.f32 %v849, %v890
        %v896 = vmul.f32 %v852, %v890
        %v897 = vmul.f32 %v857, %v890
        %v898 = vmul.f32 %v860, %v890
        %v899 = vmul.f32 %v865, %v890
        %v900 = vmul.f32 %v868, %v890
        %v901 = vmul.f32 %v873, %v890
        %v902 = vmul.f32 %v876, %v890
        %v903 = vmul.f32 %v881, %v890
        %v904 = vmul.f32 %v884, %v890
        %v905 = vlaneseq
        %v906 = vshrl.u32 %v905, 7
        %v907 = vsub.s32 3, %v906
        %v908 = vrot.slane %v390, %v907
        %v909 = vadd.f32 %v891, %v908
        %v910 = vadd.f32 %v892, %v908
        %v911 = vadd.f32 %v893, %v908
        %v912 = vadd.f32 %v894, %v908
        %v913 = vadd.f32 %v895, %v908
        %v914 = vadd.f32 %v896, %v908
        %v915 = vadd.f32 %v897, %v908
        %v916 = vadd.f32 %v898, %v908
        %v917 = vadd.f32 %v899, %v908
        %v918 = vadd.f32 %v900, %v908
        %v919 = vadd.f32 %v901, %v908
        %v920 = vadd.f32 %v902, %v908
        %v921 = vadd.f32 %v903, %v908
        %v922 = vadd.f32 %v904, %v908
        %v923 = vxor.u32 %v909, 2147483648
        %v924 = vxor.u32 %v910, 2147483648
        %v925 = vxor.u32 %v911, 2147483648
        %v926 = vxor.u32 %v912, 2147483648
        %v927 = vxor.u32 %v913, 2147483648
        %v928 = vxor.u32 %v914, 2147483648
        %v929 = vxor.u32 %v915, 2147483648
        %v930 = vxor.u32 %v916, 2147483648
        %v931 = vxor.u32 %v917, 2147483648
        %v932 = vxor.u32 %v918, 2147483648
        %v933 = vxor.u32 %v919, 2147483648
        %v934 = vxor.u32 %v920, 2147483648
        %v935 = vxor.u32 %v921, 2147483648
        %v936 = vxor.u32 %v922, 2147483648
        %v937 = vmul.f32 %v923, 1.442695
        %v938 = vpow.pop %v937
        %v939 = vmul.f32 %v924, 1.442695
        %v940 = vpow.pop %v939
        %v941 = vmul.f32 %v925, 1.442695
        %v942 = vpow.pop %v941
        %v943 = vmul.f32 %v926, 1.442695
        %v944 = vpow.pop %v943
        %v945 = vmul.f32 %v927, 1.442695
        %v946 = vpow.pop %v945
        %v947 = vmul.f32 %v928, 1.442695
        %v948 = vpow.pop %v947
        %v949 = vmul.f32 %v929, 1.442695
        %v950 = vpow.pop %v949
        %v951 = vmul.f32 %v930, 1.442695
        %v952 = vpow.pop %v951
        %v953 = vmul.f32 %v931, 1.442695
        %v954 = vpow.pop %v953
        %v955 = vmul.f32 %v932, 1.442695
        %v956 = vpow.pop %v955
        %v957 = vmul.f32 %v933, 1.442695
        %v958 = vpow.pop %v957
        %v959 = vmul.f32 %v934, 1.442695
        %v960 = vpow.pop %v959
        %v961 = vmul.f32 %v935, 1.442695
        %v962 = vpow.pop %v961
        %v963 = vmul.f32 %v936, 1.442695
        %v964 = vpow.pop %v963
        %v965 = vadd.f32 %v938, 1.0
        %v966 = vadd.f32 %v940, 1.0
        %v967 = vadd.f32 %v942, 1.0
        %v968 = vadd.f32 %v944, 1.0
        %v969 = vadd.f32 %v946, 1.0
        %v970 = vadd.f32 %v948, 1.0
        %v971 = vadd.f32 %v950, 1.0
        %v972 = vadd.f32 %v952, 1.0
        %v973 = vadd.f32 %v954, 1.0
        %v974 = vadd.f32 %v956, 1.0
        %v975 = vadd.f32 %v958, 1.0
        %v976 = vadd.f32 %v960, 1.0
        %v977 = vadd.f32 %v962, 1.0
        %v978 = vadd.f32 %v964, 1.0
        %v979 = vrcp.pop %v965
        %v980 = vmul.f32 1.0, %v979
        %v981 = vrcp.pop %v966
        %v982 = vmul.f32 1.0, %v981
        %v983 = vrcp.pop %v967
        %v984 = vmul.f32 1.0, %v983
        %v985 = vrcp.pop %v968
        %v986 = vmul.f32 1.0, %v985
        %v987 = vrcp.pop %v969
        %v988 = vmul.f32 1.0, %v987
        %v989 = vrcp.pop %v970
        %v990 = vmul.f32 1.0, %v989
        %v991 = vrcp.pop %v971
        %v992 = vmul.f32 1.0, %v991
        %v993 = vrcp.pop %v972
        %v994 = vmul.f32 1.0, %v993
        %v995 = vrcp.pop %v973
        %v996 = vmul.f32 1.0, %v995
        %v997 = vrcp.pop %v974
        %v998 = vmul.f32 1.0, %v997
        %v999 = vrcp.pop %v975
        %v1000 = vmul.f32 1.0, %v999
        %v1001 = vrcp.pop %v976
        %v1002 = vmul.f32 1.0, %v1001
        %v1003 = vrcp.pop %v977
        %v1004 = vmul.f32 1.0, %v1003
        %v1005 = vrcp.pop %v978
        %v1006 = vmul.f32 1.0, %v1005
        %v1007 = vmul.f32 %v909, %v980
        %v1008 = vmul.f32 %v910, %v982
        %v1009 = vmul.f32 %v911, %v984
        %v1010 = vmul.f32 %v912, %v986
        %v1011 = vmul.f32 %v913, %v988
        %v1012 = vmul.f32 %v914, %v990
        %v1013 = vmul.f32 %v915, %v992
        %v1014 = vmul.f32 %v916, %v994
        %v1015 = vmul.f32 %v917, %v996
        %v1016 = vmul.f32 %v918, %v998
        %v1017 = vmul.f32 %v919, %v1000
        %v1018 = vmul.f32 %v920, %v1002
        %v1019 = vmul.f32 %v921, %v1004
        %v1020 = vmul.f32 %v922, %v1006
        %1022 = vset.pattern.permute.xlu0 0
        %1023 = vperm.xlu0 %1022, %v376
        %v1024 = vpop.permute.xlu0 %1023
        %1027 = vset.pattern.permute.xlu0 0
        %1028 = vperm.xlu0 %1027, %v377
        %v1029 = vpop.permute.xlu0 %1028
        %1032 = vset.pattern.permute.xlu0 0
        %1033 = vperm.xlu0 %1032, %v378
        %v1034 = vpop.permute.xlu0 %1033
        %1037 = vset.pattern.permute.xlu0 0
        %1038 = vperm.xlu0 %1037, %v379
        %v1039 = vpop.permute.xlu0 %1038
        %1042 = vset.pattern.permute.xlu0 0
        %1043 = vperm.xlu0 %1042, %v380
        %v1044 = vpop.permute.xlu0 %1043
        %1047 = vset.pattern.permute.xlu0 0
        %1048 = vperm.xlu0 %1047, %v381
        %v1049 = vpop.permute.xlu0 %1048
        %1052 = vset.pattern.permute.xlu0 0
        %1053 = vperm.xlu0 %1052, %v382
        %v1054 = vpop.permute.xlu0 %1053
        %1057 = vset.pattern.permute.xlu0 0
        %1058 = vperm.xlu0 %1057, %v383
        %v1059 = vpop.permute.xlu0 %1058
        %1062 = vset.pattern.permute.xlu0 0
        %1063 = vperm.xlu0 %1062, %v384
        %v1064 = vpop.permute.xlu0 %1063
        %1067 = vset.pattern.permute.xlu0 0
        %1068 = vperm.xlu0 %1067, %v385
        %v1069 = vpop.permute.xlu0 %1068
        %1072 = vset.pattern.permute.xlu0 0
        %1073 = vperm.xlu0 %1072, %v386
        %v1074 = vpop.permute.xlu0 %1073
        %1077 = vset.pattern.permute.xlu0 0
        %1078 = vperm.xlu0 %1077, %v387
        %v1079 = vpop.permute.xlu0 %1078
        %1082 = vset.pattern.permute.xlu0 0
        %1083 = vperm.xlu0 %1082, %v388
        %v1084 = vpop.permute.xlu0 %1083
        %1087 = vset.pattern.permute.xlu0 0
        %1088 = vperm.xlu0 %1087, %v389
        %v1089 = vpop.permute.xlu0 %1088
        %v1091 = vmul.f32 %v1007, %v1024
        %v1092 = vmul.f32 %v1008, %v1029
        %v1093 = vmul.f32 %v1009, %v1034
        %v1094 = vmul.f32 %v1010, %v1039
        %v1095 = vmul.f32 %v1011, %v1044
        %v1096 = vmul.f32 %v1012, %v1049
        %v1097 = vmul.f32 %v1013, %v1054
        %v1098 = vmul.f32 %v1014, %v1059
        %v1099 = vmul.f32 %v1015, %v1064
        %v1100 = vmul.f32 %v1016, %v1069
        %v1101 = vmul.f32 %v1017, %v1074
        %v1102 = vmul.f32 %v1018, %v1079
        %v1103 = vmul.f32 %v1019, %v1084
        %v1104 = vmul.f32 %v1020, %v1089
        %v1105 = vpack.c.bf16 %v1092, %v1091
        %v1106 = vpack.c.bf16 %v1094, %v1093
        %v1107 = vpack.c.bf16 %v1096, %v1095
        %v1108 = vpack.c.bf16 %v1098, %v1097
        %v1109 = vpack.c.bf16 %v1100, %v1099
        %v1110 = vpack.c.bf16 %v1102, %v1101
        %v1111 = vpack.c.bf16 %v1104, %v1103
        %v1112 = vpack.c.bf16 %v705, %v704
        %v1113 = vpack.c.bf16 %v707, %v706
        %v1114 = vpack.c.bf16 %v709, %v708
        %v1115 = vpack.c.bf16 %v711, %v710
        %v1116 = vpack.c.bf16 %v713, %v712
        %v1117 = vld [vmem:[%s6] sm:$0xf]
        %v1118 = vld [vmem:[%s6 + $0x4] sm:$0xf]
        %v1119 = vld [vmem:[%s6 + $0x8] sm:$0xf]
        %v1120 = vld [vmem:[%s6 + $0xc] sm:$0xf]
        %v1121 = vld [vmem:[%s6 + $0x10] sm:$0xf]
        %v1122 = vld [vmem:[%s6 + $0x14] sm:$0xf]
        %v1123 = vld [vmem:[%s6 + $0x18] sm:$0xf]
        %v1124 = vld [vmem:[%s6 + $0x1c] sm:$0xf]
        %v1125 = vld [vmem:[%s6 + $0x20] sm:$0xf]
        %v1126 = vld [vmem:[%s6 + $0x24] sm:$0xf]
        %v1127 = vld [vmem:[%s6 + $0x28] sm:$0xf]
        %v1128 = vld [vmem:[%s6 + $0x2c] sm:$0xf]
        %v1129 = vld [vmem:[%s6 + $0x30] sm:$0xf]
        %v1130 = vld [vmem:[%s6 + $0x34] sm:$0xf]
        %v1131 = vld [vmem:[%s6 + $0x38] sm:$0xf]
        %v1132 = vld [vmem:[%s6 + $0x3c] sm:$0xf]
        %s1133 = scalar_lea.vmem %s6, 64
        %v1134 = vld [vmem:[%s1133] sm:$0xf]
        %v1135 = vld [vmem:[%s1133 + $0x4] sm:$0xf]
        %v1136 = vld [vmem:[%s1133 + $0x8] sm:$0xf]
        %v1137 = vld [vmem:[%s1133 + $0xc] sm:$0xf]
        %v1138 = vld [vmem:[%s1133 + $0x10] sm:$0xf]
        %v1139 = vld [vmem:[%s1133 + $0x14] sm:$0xf]
        %v1140 = vld [vmem:[%s1133 + $0x18] sm:$0xf]
        %v1141 = vld [vmem:[%s1133 + $0x1c] sm:$0xf]
        %v1142 = vld [vmem:[%s1133 + $0x20] sm:$0xf]
        %v1143 = vld [vmem:[%s1133 + $0x24] sm:$0xf]
        %v1144 = vld [vmem:[%s1133 + $0x28] sm:$0xf]
        %v1145 = vld [vmem:[%s1133 + $0x2c] sm:$0xf]
        %v1146 = vld [vmem:[%s1133 + $0x30] sm:$0xf]
        %v1147 = vld [vmem:[%s1133 + $0x34] sm:$0xf]
        %v1148 = vld [vmem:[%s1133 + $0x38] sm:$0xf]
        %v1149 = vld [vmem:[%s1133 + $0x3c] sm:$0xf]
        %vm1150 = vsmask.f32 2304
        %v1152 = vshrl.u32 %v1105, 16
        %v1154 = vrot.slane %v1152, 5
        %v1155 = vshll.u32 %v1105, 16
        %v1157 = vrot.slane %v1155, 6
        %v1158 = vor.u32 %v1154, %v1157
        %v1160 = vshrl.u32 %v1106, 16
        %v1162 = vrot.slane %v1160, 5
        %v1163 = vshll.u32 %v1106, 16
        %v1165 = vrot.slane %v1163, 6
        %v1166 = vor.u32 %v1162, %v1165
        %v1167 = vsel %vm1150, %v1158, %v1166
        %v1169 = vshrl.u32 %v1107, 16
        %v1171 = vrot.slane %v1169, 5
        %v1172 = vshll.u32 %v1107, 16
        %v1174 = vrot.slane %v1172, 6
        %v1175 = vor.u32 %v1171, %v1174
        %v1176 = vsel %vm1150, %v1166, %v1175
        %v1178 = vshrl.u32 %v1108, 16
        %v1180 = vrot.slane %v1178, 5
        %v1181 = vshll.u32 %v1108, 16
        %v1183 = vrot.slane %v1181, 6
        %v1184 = vor.u32 %v1180, %v1183
        %v1185 = vsel %vm1150, %v1175, %v1184
        %v1187 = vshrl.u32 %v1109, 16
        %v1189 = vrot.slane %v1187, 5
        %v1190 = vshll.u32 %v1109, 16
        %v1192 = vrot.slane %v1190, 6
        %v1193 = vor.u32 %v1189, %v1192
        %v1194 = vsel %vm1150, %v1184, %v1193
        %v1196 = vshrl.u32 %v1110, 16
        %v1198 = vrot.slane %v1196, 5
        %v1199 = vshll.u32 %v1110, 16
        %v1201 = vrot.slane %v1199, 6
        %v1202 = vor.u32 %v1198, %v1201
        %v1203 = vsel %vm1150, %v1193, %v1202
        %v1225 = vunpack.c.l.b16 %v1134
        %v1226 = vunpack.c.l.b16 %v1135
        %v1227 = vunpack.c.l.b16 %v1136
        %v1228 = vunpack.c.l.b16 %v1137
        %v1229 = vunpack.c.l.b16 %v1138
        %v1230 = vunpack.c.l.b16 %v1139
        %v1231 = vunpack.c.l.b16 %v1140
        %v1232 = vunpack.c.l.b16 %v1141
        %v1233 = vunpack.c.l.b16 %v1142
        %v1234 = vunpack.c.l.b16 %v1143
        %v1235 = vunpack.c.l.b16 %v1144
        %v1236 = vunpack.c.l.b16 %v1145
        %v1237 = vunpack.c.l.b16 %v1146
        %v1238 = vunpack.c.l.b16 %v1147
        %v1239 = vunpack.c.l.b16 %v1148
        %v1240 = vunpack.c.l.b16 %v1149
        %v1241 = vpack.c.b16 %v1226, %v1225
        %v1242 = vpack.c.b16 %v1228, %v1227
        %v1243 = vpack.c.b16 %v1230, %v1229
        %v1244 = vpack.c.b16 %v1232, %v1231
        %v1245 = vpack.c.b16 %v1234, %v1233
        %v1246 = vpack.c.b16 %v1236, %v1235
        %v1247 = vpack.c.b16 %v1238, %v1237
        %v1248 = vpack.c.b16 %v1240, %v1239
        %1257 = vmatprep.subr.bf16.mxu0 0
        %1258 = vmatpush1.bf16.msra.mxu0 %v1241
        %1259 = vmatprep.subr.bf16.mxu0 0
        %1260 = vmatpush1.bf16.msra.mxu0 %v1242
        %1261 = vmatprep.subr.bf16.mxu0 0
        %1262 = vmatpush1.bf16.msra.mxu0 %v1243
        %1263 = vmatprep.subr.bf16.mxu0 0
        %1264 = vmatpush1.bf16.msra.mxu0 %v1244
        %1265 = vmatprep.subr.bf16.mxu0 0
        %1266 = vmatpush1.bf16.msra.mxu0 %v1245
        %1267 = vmatprep.subr.bf16.mxu0 0
        %1268 = vmatpush1.bf16.msra.mxu0 %v1246
        %1269 = vmatprep.subr.bf16.mxu0 0
        %1270 = vmatpush1.bf16.msra.mxu0 %v1247
        %1271 = vmatprep.subr.bf16.mxu0 0
        %1272 = vmatpush1.bf16.msra.mxu0 %v1248
        %1273 = vmatprep.subr.bf16.mxu0 0
        %1274 = vmatpush1.bf16.msra.mxu0 0
        %1275 = vmatprep.subr.bf16.mxu0 0
        %1276 = vmatpush1.bf16.msra.mxu0 0
        %1277 = vmatprep.subr.bf16.mxu0 0
        %1278 = vmatpush1.bf16.msra.mxu0 0
        %1279 = vmatprep.subr.bf16.mxu0 0
        %1280 = vmatpush1.bf16.msra.mxu0 0
        %1281 = vmatprep.subr.bf16.mxu0 0
        %1282 = vmatpush1.bf16.msra.mxu0 0
        %1283 = vmatprep.subr.bf16.mxu0 0
        %1284 = vmatpush1.bf16.msra.mxu0 0
        %1285 = vmatprep.subr.bf16.mxu0 0
        %1286 = vmatpush1.bf16.msra.mxu0 0
        %1287 = vmatprep.subr.bf16.mxu0 0
        %1288 = vmatpush1.bf16.msra.mxu0 0
        %1289 = vmatprep.mubr.bf16.mxu0 0
        %1290 = vmatmul.mubr.bf16.gmra.mrb[0].mxu0 %v1167
        %v1291 = vpop.f32.mrb[0].mxu0
        %v1292 = vadd.f32 0.0, %v1291
        %v1293 = vpop.f32.mrb[0].mxu0
        %v1294 = vpop.f32.mrb[0].mxu0
        %v1295 = vadd.f32 0.0, %v1294
        %v1296 = vpop.f32.mrb[0].mxu0
        %1297 = vmatprep.mubr.bf16.mxu0 0
        %1298 = vmatmul.mubr.bf16.gmra.mrb[0].mxu0 %v1176
        %v1299 = vpop.f32.mrb[0].mxu0
        %v1300 = vadd.f32 0.0, %v1299
        %v1301 = vpop.f32.mrb[0].mxu0
        %v1302 = vpop.f32.mrb[0].mxu0
        %v1303 = vadd.f32 0.0, %v1302
        %v1304 = vpop.f32.mrb[0].mxu0
        %1305 = vmatprep.mubr.bf16.mxu0 0
        %1306 = vmatmul.mubr.bf16.gmra.mrb[0].mxu0 %v1185
        %v1307 = vpop.f32.mrb[0].mxu0
        %v1308 = vadd.f32 0.0, %v1307
        %v1309 = vpop.f32.mrb[0].mxu0
        %v1310 = vpop.f32.mrb[0].mxu0
        %v1311 = vadd.f32 0.0, %v1310
        %v1312 = vpop.f32.mrb[0].mxu0
        %1313 = vmatprep.mubr.bf16.mxu0 0
        %1314 = vmatmul.mubr.bf16.gmra.mrb[0].mxu0 %v1194
        %v1315 = vpop.f32.mrb[0].mxu0
        %v1316 = vadd.f32 0.0, %v1315
        %v1317 = vpop.f32.mrb[0].mxu0
        %v1318 = vpop.f32.mrb[0].mxu0
        %v1319 = vadd.f32 0.0, %v1318
        %v1320 = vpop.f32.mrb[0].mxu0
        %1321 = vmatprep.mubr.bf16.mxu0 0
        %1322 = vmatmul.mubr.bf16.gmra.mrb[0].mxu0 %v1203
        %v1323 = vpop.f32.mrb[0].mxu0
        %v1324 = vadd.f32 0.0, %v1323
        %v1325 = vpop.f32.mrb[0].mxu0
        %v1326 = vpop.f32.mrb[0].mxu0
        %v1327 = vadd.f32 0.0, %v1326
        %v1328 = vpop.f32.mrb[0].mxu0
        %1329 = vdwg.mxu0
        %v1346 = vunpack.c.l.b16 %v1117
        %v1347 = vunpack.c.l.b16 %v1118
        %v1348 = vunpack.c.l.b16 %v1119
        %v1349 = vunpack.c.l.b16 %v1120
        %v1350 = vunpack.c.l.b16 %v1121
        %v1351 = vunpack.c.l.b16 %v1122
        %v1352 = vunpack.c.l.b16 %v1123
        %v1353 = vunpack.c.l.b16 %v1124
        %v1354 = vunpack.c.l.b16 %v1125
        %v1355 = vunpack.c.l.b16 %v1126
        %v1356 = vunpack.c.l.b16 %v1127
        %v1357 = vunpack.c.l.b16 %v1128
        %v1358 = vunpack.c.l.b16 %v1129
        %v1359 = vunpack.c.l.b16 %v1130
        %v1360 = vunpack.c.l.b16 %v1131
        %v1361 = vunpack.c.l.b16 %v1132
        %v1362 = vpack.c.b16 %v1347, %v1346
        %v1363 = vpack.c.b16 %v1349, %v1348
        %v1364 = vpack.c.b16 %v1351, %v1350
        %v1365 = vpack.c.b16 %v1353, %v1352
        %v1366 = vpack.c.b16 %v1355, %v1354
        %v1367 = vpack.c.b16 %v1357, %v1356
        %v1368 = vpack.c.b16 %v1359, %v1358
        %v1369 = vpack.c.b16 %v1361, %v1360
        %1378 = vmatprep.subr.bf16.mxu0 0
        %1379 = vmatpush1.bf16.msra.mxu0 %v1362
        %1380 = vmatprep.subr.bf16.mxu0 0
        %1381 = vmatpush1.bf16.msra.mxu0 %v1363
        %1382 = vmatprep.subr.bf16.mxu0 0
        %1383 = vmatpush1.bf16.msra.mxu0 %v1364
        %1384 = vmatprep.subr.bf16.mxu0 0
        %1385 = vmatpush1.bf16.msra.mxu0 %v1365
        %1386 = vmatprep.subr.bf16.mxu0 0
        %1387 = vmatpush1.bf16.msra.mxu0 %v1366
        %1388 = vmatprep.subr.bf16.mxu0 0
        %1389 = vmatpush1.bf16.msra.mxu0 %v1367
        %1390 = vmatprep.subr.bf16.mxu0 0
        %1391 = vmatpush1.bf16.msra.mxu0 %v1368
        %1392 = vmatprep.subr.bf16.mxu0 0
        %1393 = vmatpush1.bf16.msra.mxu0 %v1369
        %1394 = vmatprep.subr.bf16.mxu0 0
        %1395 = vmatpush1.bf16.msra.mxu0 0
        %1396 = vmatprep.subr.bf16.mxu0 0
        %1397 = vmatpush1.bf16.msra.mxu0 0
        %1398 = vmatprep.subr.bf16.mxu0 0
        %1399 = vmatpush1.bf16.msra.mxu0 0
        %1400 = vmatprep.subr.bf16.mxu0 0
        %1401 = vmatpush1.bf16.msra.mxu0 0
        %1402 = vmatprep.subr.bf16.mxu0 0
        %1403 = vmatpush1.bf16.msra.mxu0 0
        %1404 = vmatprep.subr.bf16.mxu0 0
        %1405 = vmatpush1.bf16.msra.mxu0 0
        %1406 = vmatprep.subr.bf16.mxu0 0
        %1407 = vmatpush1.bf16.msra.mxu0 0
        %1408 = vmatprep.subr.bf16.mxu0 0
        %1409 = vmatpush1.bf16.msra.mxu0 0
        %1410 = vmatprep.mubr.bf16.mxu0 0
        %1411 = vmatmul.mubr.bf16.gmra.mrb[0].mxu0 %v1112
        %v1412 = vpop.f32.mrb[0].mxu0
        %v1413 = vadd.f32 %v1292, %v1412
        %v1414 = vpop.f32.mrb[0].mxu0
        %v1415 = vpop.f32.mrb[0].mxu0
        %v1416 = vadd.f32 %v1295, %v1415
        %v1417 = vpop.f32.mrb[0].mxu0
        %1418 = vmatprep.mubr.bf16.mxu0 0
        %1419 = vmatmul.mubr.bf16.gmra.mrb[0].mxu0 %v1113
        %v1420 = vpop.f32.mrb[0].mxu0
        %v1421 = vadd.f32 %v1300, %v1420
        %v1422 = vpop.f32.mrb[0].mxu0
        %v1423 = vpop.f32.mrb[0].mxu0
        %v1424 = vadd.f32 %v1303, %v1423
        %v1425 = vpop.f32.mrb[0].mxu0
        %1426 = vmatprep.mubr.bf16.mxu0 0
        %1427 = vmatmul.mubr.bf16.gmra.mrb[0].mxu0 %v1114
        %v1428 = vpop.f32.mrb[0].mxu0
        %v1429 = vadd.f32 %v1308, %v1428
        %v1430 = vpop.f32.mrb[0].mxu0
        %v1431 = vpop.f32.mrb[0].mxu0
        %v1432 = vadd.f32 %v1311, %v1431
        %v1433 = vpop.f32.mrb[0].mxu0
        %1434 = vmatprep.mubr.bf16.mxu0 0
        %1435 = vmatmul.mubr.bf16.gmra.mrb[0].mxu0 %v1115
        %v1436 = vpop.f32.mrb[0].mxu0
        %v1437 = vadd.f32 %v1316, %v1436
        %v1438 = vpop.f32.mrb[0].mxu0
        %v1439 = vpop.f32.mrb[0].mxu0
        %v1440 = vadd.f32 %v1319, %v1439
        %v1441 = vpop.f32.mrb[0].mxu0
        %1442 = vmatprep.mubr.bf16.mxu0 0
        %1443 = vmatmul.mubr.bf16.gmra.mrb[0].mxu0 %v1116
        %v1444 = vpop.f32.mrb[0].mxu0
        %v1445 = vadd.f32 %v1324, %v1444
        %v1446 = vpop.f32.mrb[0].mxu0
        %v1447 = vpop.f32.mrb[0].mxu0
        %v1448 = vadd.f32 %v1327, %v1447
        %v1449 = vpop.f32.mrb[0].mxu0
        %1450 = vdwg.mxu0
        %1451 = vst [vmem:[#allocation2] sm:$0xff] 0.0
        %1452 = vst [vmem:[#allocation2 + $0x8] sm:$0xff] 0.0
        %1453 = vst [vmem:[#allocation2 + $0x10] sm:$0xff] 0.0
        %1454 = vst [vmem:[#allocation2 + $0x18] sm:$0xff] 0.0
        %1455 = vst [vmem:[#allocation2 + $0x20] sm:$0xff] 0.0
        %1456 = vst [vmem:[#allocation2 + $0x28] sm:$0xff] 0.0
        %1457 = vst [vmem:[#allocation2 + $0x30] sm:$0xff] 0.0
        %1458 = vst [vmem:[#allocation2 + $0x38] sm:$0xff] 0.0
        %1459 = vst [vmem:[#allocation2 + $0x40] sm:$0xff] 0.0
        %1460 = vst [vmem:[#allocation2 + $0x48] sm:$0xff] 0.0
        %1461 = vst [vmem:[#allocation2 + $0x50] sm:$0xff] 0.0
        %1462 = vst [vmem:[#allocation2 + $0x58] sm:$0xff] 0.0
        %1463 = vst [vmem:[#allocation2 + $0x60] sm:$0xff] 0.0
        %1464 = vst [vmem:[#allocation2 + $0x68] sm:$0x3f] 0.0
        %v1465 = vld [vmem:[#allocation4] sm:$0xf]
        %v1466 = vld [vmem:[#allocation4 + $0x4] sm:$0xf]
        %v1467 = vld [vmem:[#allocation4 + $0x8] sm:$0xf]
        %v1468 = vld [vmem:[#allocation4 + $0xc] sm:$0xf]
        %v1469 = vld [vmem:[#allocation4 + $0x10] sm:$0xf]
        %v1470 = vld [vmem:[#allocation4 + $0x14] sm:$0xf]
        %v1471 = vld [vmem:[#allocation4 + $0x18] sm:$0xf]
        %v1472 = vld [vmem:[#allocation4 + $0x1c] sm:$0xf]
        %v1473 = vld [vmem:[#allocation4 + $0x20] sm:$0xf]
        %v1474 = vld [vmem:[#allocation4 + $0x24] sm:$0xf]
        %v1475 = vld [vmem:[#allocation4 + $0x28] sm:$0xf]
        %v1476 = vld [vmem:[#allocation4 + $0x2c] sm:$0xf]
        %v1477 = vld [vmem:[#allocation4 + $0x30] sm:$0xf]
        %v1478 = vld [vmem:[#allocation4 + $0x34] sm:$0xf]
        %v1479 = vld [vmem:[#allocation4 + $0x38] sm:$0xf]
        %v1480 = vld [vmem:[#allocation4 + $0x3c] sm:$0xf]
        %s1481 = scalar_lea.vmem [#allocation4], 64
        %v1482 = vld [vmem:[%s1481] sm:$0xf]
        %v1483 = vld [vmem:[%s1481 + $0x4] sm:$0xf]
        %v1484 = vld [vmem:[%s1481 + $0x8] sm:$0xf]
        %v1485 = vld [vmem:[%s1481 + $0xc] sm:$0xf]
        %v1486 = vld [vmem:[%s1481 + $0x10] sm:$0xf]
        %v1487 = vld [vmem:[%s1481 + $0x14] sm:$0xf]
        %v1488 = vld [vmem:[%s1481 + $0x18] sm:$0xf]
        %v1489 = vld [vmem:[%s1481 + $0x1c] sm:$0xf]
        %v1490 = vld [vmem:[%s1481 + $0x20] sm:$0xf]
        %v1491 = vld [vmem:[%s1481 + $0x24] sm:$0xf]
        %v1492 = vld [vmem:[%s1481 + $0x28] sm:$0xf]
        %v1493 = vld [vmem:[%s1481 + $0x2c] sm:$0xf]
        %v1494 = vld [vmem:[%s1481 + $0x30] sm:$0xf]
        %v1495 = vld [vmem:[%s1481 + $0x34] sm:$0xf]
        %v1496 = vld [vmem:[%s1481 + $0x38] sm:$0xf]
        %v1497 = vld [vmem:[%s1481 + $0x3c] sm:$0xf]
        %vm1498 = vsmask.f32 7424
        %v1499 = vrot.slane %v1155, 1
        %v1500 = vor.u32 %v1152, %v1499
        %v1501 = vrot.slane %v1163, 1
        %v1502 = vsel %vm1498, %v1500, %v1501
        %v1503 = vor.u32 %v1160, %v1501
        %v1504 = vrot.slane %v1172, 1
        %v1505 = vsel %vm1498, %v1503, %v1504
        %v1506 = vor.u32 %v1169, %v1504
        %v1507 = vrot.slane %v1181, 1
        %v1508 = vsel %vm1498, %v1506, %v1507
        %v1509 = vor.u32 %v1178, %v1507
        %v1510 = vrot.slane %v1190, 1
        %v1511 = vsel %vm1498, %v1509, %v1510
        %v1512 = vor.u32 %v1187, %v1510
        %v1513 = vrot.slane %v1199, 1
        %v1514 = vsel %vm1498, %v1512, %v1513
        %v1536 = vunpack.c.l.b16 %v1482
        %v1537 = vunpack.c.l.b16 %v1483
        %v1538 = vunpack.c.l.b16 %v1484
        %v1539 = vunpack.c.l.b16 %v1485
        %v1540 = vunpack.c.l.b16 %v1486
        %v1541 = vunpack.c.l.b16 %v1487
        %v1542 = vunpack.c.l.b16 %v1488
        %v1543 = vunpack.c.l.b16 %v1489
        %v1544 = vunpack.c.l.b16 %v1490
        %v1545 = vunpack.c.l.b16 %v1491
        %v1546 = vunpack.c.l.b16 %v1492
        %v1547 = vunpack.c.l.b16 %v1493
        %v1548 = vunpack.c.l.b16 %v1494
        %v1549 = vunpack.c.l.b16 %v1495
        %v1550 = vunpack.c.l.b16 %v1496
        %v1551 = vunpack.c.l.b16 %v1497
        %v1552 = vpack.c.b16 %v1537, %v1536
        %v1553 = vpack.c.b16 %v1539, %v1538
        %v1554 = vpack.c.b16 %v1541, %v1540
        %v1555 = vpack.c.b16 %v1543, %v1542
        %v1556 = vpack.c.b16 %v1545, %v1544
        %v1557 = vpack.c.b16 %v1547, %v1546
        %v1558 = vpack.c.b16 %v1549, %v1548
        %v1559 = vpack.c.b16 %v1551, %v1550
        %1568 = vmatprep.subr.bf16.mxu0 0
        %1569 = vmatpush1.bf16.msra.mxu0 %v1552
        %1570 = vmatprep.subr.bf16.mxu0 0
        %1571 = vmatpush1.bf16.msra.mxu0 %v1553
        %1572 = vmatprep.subr.bf16.mxu0 0
        %1573 = vmatpush1.bf16.msra.mxu0 %v1554
        %1574 = vmatprep.subr.bf16.mxu0 0
        %1575 = vmatpush1.bf16.msra.mxu0 %v1555
        %1576 = vmatprep.subr.bf16.mxu0 0
        %1577 = vmatpush1.bf16.msra.mxu0 %v1556
        %1578 = vmatprep.subr.bf16.mxu0 0
        %1579 = vmatpush1.bf16.msra.mxu0 %v1557
        %1580 = vmatprep.subr.bf16.mxu0 0
        %1581 = vmatpush1.bf16.msra.mxu0 %v1558
        %1582 = vmatprep.subr.bf16.mxu0 0
        %1583 = vmatpush1.bf16.msra.mxu0 %v1559
        %1584 = vmatprep.subr.bf16.mxu0 0
        %1585 = vmatpush1.bf16.msra.mxu0 0
        %1586 = vmatprep.subr.bf16.mxu0 0
        %1587 = vmatpush1.bf16.msra.mxu0 0
        %1588 = vmatprep.subr.bf16.mxu0 0
        %1589 = vmatpush1.bf16.msra.mxu0 0
        %1590 = vmatprep.subr.bf16.mxu0 0
        %1591 = vmatpush1.bf16.msra.mxu0 0
        %1592 = vmatprep.subr.bf16.mxu0 0
        %1593 = vmatpush1.bf16.msra.mxu0 0
        %1594 = vmatprep.subr.bf16.mxu0 0
        %1595 = vmatpush1.bf16.msra.mxu0 0
        %1596 = vmatprep.subr.bf16.mxu0 0
        %1597 = vmatpush1.bf16.msra.mxu0 0
        %1598 = vmatprep.subr.bf16.mxu0 0
        %1599 = vmatpush1.bf16.msra.mxu0 0
        %1600 = vmatprep.mubr.bf16.mxu0 0
        %1601 = vmatmul.mubr.bf16.gmra.mrb[0].mxu0 %v1502
        %v1602 = vpop.f32.mrb[0].mxu0
        %v1603 = vadd.f32 0.0, %v1602
        %v1604 = vpop.f32.mrb[0].mxu0
        %v1605 = vpop.f32.mrb[0].mxu0
        %v1606 = vadd.f32 0.0, %v1605
        %v1607 = vpop.f32.mrb[0].mxu0
        %1608 = vmatprep.mubr.bf16.mxu0 0
        %1609 = vmatmul.mubr.bf16.gmra.mrb[0].mxu0 %v1505
        %v1610 = vpop.f32.mrb[0].mxu0
        %v1611 = vadd.f32 0.0, %v1610
        %v1612 = vpop.f32.mrb[0].mxu0
        %v1613 = vpop.f32.mrb[0].mxu0
        %v1614 = vadd.f32 0.0, %v1613
        %v1615 = vpop.f32.mrb[0].mxu0
        %1616 = vmatprep.mubr.bf16.mxu0 0
        %1617 = vmatmul.mubr.bf16.gmra.mrb[0].mxu0 %v1508
        %v1618 = vpop.f32.mrb[0].mxu0
        %v1619 = vadd.f32 0.0, %v1618
        %v1620 = vpop.f32.mrb[0].mxu0
        %v1621 = vpop.f32.mrb[0].mxu0
        %v1622 = vadd.f32 0.0, %v1621
        %v1623 = vpop.f32.mrb[0].mxu0
        %1624 = vmatprep.mubr.bf16.mxu0 0
        %1625 = vmatmul.mubr.bf16.gmra.mrb[0].mxu0 %v1511
        %v1626 = vpop.f32.mrb[0].mxu0
        %v1627 = vadd.f32 0.0, %v1626
        %v1628 = vpop.f32.mrb[0].mxu0
        %v1629 = vpop.f32.mrb[0].mxu0
        %v1630 = vadd.f32 0.0, %v1629
        %v1631 = vpop.f32.mrb[0].mxu0
        %1632 = vmatprep.mubr.bf16.mxu0 0
        %1633 = vmatmul.mubr.bf16.gmra.mrb[0].mxu0 %v1514
        %v1634 = vpop.f32.mrb[0].mxu0
        %v1635 = vadd.f32 0.0, %v1634
        %v1636 = vpop.f32.mrb[0].mxu0
        %v1637 = vpop.f32.mrb[0].mxu0
        %v1638 = vadd.f32 0.0, %v1637
        %v1639 = vpop.f32.mrb[0].mxu0
        %1640 = vdwg.mxu0
        %v1657 = vunpack.c.l.b16 %v1465
        %v1658 = vunpack.c.l.b16 %v1466
        %v1659 = vunpack.c.l.b16 %v1467
        %v1660 = vunpack.c.l.b16 %v1468
        %v1661 = vunpack.c.l.b16 %v1469
        %v1662 = vunpack.c.l.b16 %v1470
        %v1663 = vunpack.c.l.b16 %v1471
        %v1664 = vunpack.c.l.b16 %v1472
        %v1665 = vunpack.c.l.b16 %v1473
        %v1666 = vunpack.c.l.b16 %v1474
        %v1667 = vunpack.c.l.b16 %v1475
        %v1668 = vunpack.c.l.b16 %v1476
        %v1669 = vunpack.c.l.b16 %v1477
        %v1670 = vunpack.c.l.b16 %v1478
        %v1671 = vunpack.c.l.b16 %v1479
        %v1672 = vunpack.c.l.b16 %v1480
        %v1673 = vpack.c.b16 %v1658, %v1657
        %v1674 = vpack.c.b16 %v1660, %v1659
        %v1675 = vpack.c.b16 %v1662, %v1661
        %v1676 = vpack.c.b16 %v1664, %v1663
        %v1677 = vpack.c.b16 %v1666, %v1665
        %v1678 = vpack.c.b16 %v1668, %v1667
        %v1679 = vpack.c.b16 %v1670, %v1669
        %v1680 = vpack.c.b16 %v1672, %v1671
        %1689 = vmatprep.subr.bf16.mxu0 0
        %1690 = vmatpush1.bf16.msra.mxu0 %v1673
        %1691 = vmatprep.subr.bf16.mxu0 0
        %1692 = vmatpush1.bf16.msra.mxu0 %v1674
        %1693 = vmatprep.subr.bf16.mxu0 0
        %1694 = vmatpush1.bf16.msra.mxu0 %v1675
        %1695 = vmatprep.subr.bf16.mxu0 0
        %1696 = vmatpush1.bf16.msra.mxu0 %v1676
        %1697 = vmatprep.subr.bf16.mxu0 0
        %1698 = vmatpush1.bf16.msra.mxu0 %v1677
        %1699 = vmatprep.subr.bf16.mxu0 0
        %1700 = vmatpush1.bf16.msra.mxu0 %v1678
        %1701 = vmatprep.subr.bf16.mxu0 0
        %1702 = vmatpush1.bf16.msra.mxu0 %v1679
        %1703 = vmatprep.subr.bf16.mxu0 0
        %1704 = vmatpush1.bf16.msra.mxu0 %v1680
        %1705 = vmatprep.subr.bf16.mxu0 0
        %1706 = vmatpush1.bf16.msra.mxu0 0
        %1707 = vmatprep.subr.bf16.mxu0 0
        %1708 = vmatpush1.bf16.msra.mxu0 0
        %1709 = vmatprep.subr.bf16.mxu0 0
        %1710 = vmatpush1.bf16.msra.mxu0 0
        %1711 = vmatprep.subr.bf16.mxu0 0
        %1712 = vmatpush1.bf16.msra.mxu0 0
        %1713 = vmatprep.subr.bf16.mxu0 0
        %1714 = vmatpush1.bf16.msra.mxu0 0
        %1715 = vmatprep.subr.bf16.mxu0 0
        %1716 = vmatpush1.bf16.msra.mxu0 0
        %1717 = vmatprep.subr.bf16.mxu0 0
        %1718 = vmatpush1.bf16.msra.mxu0 0
        %1719 = vmatprep.subr.bf16.mxu0 0
        %1720 = vmatpush1.bf16.msra.mxu0 0
        %1721 = vmatprep.mubr.bf16.mxu0 0
        %1722 = vmatmul.mubr.bf16.gmra.mrb[0].mxu0 %v1105
        %v1723 = vpop.f32.mrb[0].mxu0
        %v1724 = vadd.f32 %v1603, %v1723
        %v1725 = vpop.f32.mrb[0].mxu0
        %v1726 = vpop.f32.mrb[0].mxu0
        %v1727 = vadd.f32 %v1606, %v1726
        %v1728 = vpop.f32.mrb[0].mxu0
        %1729 = vmatprep.mubr.bf16.mxu0 0
        %1730 = vmatmul.mubr.bf16.gmra.mrb[0].mxu0 %v1106
        %v1731 = vpop.f32.mrb[0].mxu0
        %v1732 = vadd.f32 %v1611, %v1731
        %v1733 = vpop.f32.mrb[0].mxu0
        %v1734 = vpop.f32.mrb[0].mxu0
        %v1735 = vadd.f32 %v1614, %v1734
        %v1736 = vpop.f32.mrb[0].mxu0
        %1737 = vmatprep.mubr.bf16.mxu0 0
        %1738 = vmatmul.mubr.bf16.gmra.mrb[0].mxu0 %v1107
        %v1739 = vpop.f32.mrb[0].mxu0
        %v1740 = vadd.f32 %v1619, %v1739
        %v1741 = vpop.f32.mrb[0].mxu0
        %v1742 = vpop.f32.mrb[0].mxu0
        %v1743 = vadd.f32 %v1622, %v1742
        %v1744 = vpop.f32.mrb[0].mxu0
        %1745 = vmatprep.mubr.bf16.mxu0 0
        %1746 = vmatmul.mubr.bf16.gmra.mrb[0].mxu0 %v1108
        %v1747 = vpop.f32.mrb[0].mxu0
        %v1748 = vadd.f32 %v1627, %v1747
        %v1749 = vpop.f32.mrb[0].mxu0
        %v1750 = vpop.f32.mrb[0].mxu0
        %v1751 = vadd.f32 %v1630, %v1750
        %v1752 = vpop.f32.mrb[0].mxu0
        %1753 = vmatprep.mubr.bf16.mxu0 0
        %1754 = vmatmul.mubr.bf16.gmra.mrb[0].mxu0 %v1109
        %v1755 = vpop.f32.mrb[0].mxu0
        %v1756 = vadd.f32 %v1635, %v1755
        %v1757 = vpop.f32.mrb[0].mxu0
        %v1758 = vpop.f32.mrb[0].mxu0
        %v1759 = vadd.f32 %v1638, %v1758
        %v1760 = vpop.f32.mrb[0].mxu0
        %1761 = vdwg.mxu0
        %s1762 = scalar_lea.vmem [#allocation4], 128
        %v1763 = vld [vmem:[%s1762] sm:$0xf]
        %v1764 = vld [vmem:[%s1762 + $0x4] sm:$0xf]
        %v1765 = vld [vmem:[%s1762 + $0x8] sm:$0xf]
        %v1766 = vld [vmem:[%s1762 + $0xc] sm:$0xf]
        %v1767 = vld [vmem:[%s1762 + $0x10] sm:$0xf]
        %v1768 = vld [vmem:[%s1762 + $0x14] sm:$0xf]
        %v1769 = vld [vmem:[%s1762 + $0x18] sm:$0xf]
        %v1770 = vld [vmem:[%s1762 + $0x1c] sm:$0xf]
        %v1771 = vld [vmem:[%s1762 + $0x20] sm:$0xf]
        %v1772 = vld [vmem:[%s1762 + $0x24] sm:$0xf]
        %v1773 = vld [vmem:[%s1762 + $0x28] sm:$0xf]
        %v1774 = vld [vmem:[%s1762 + $0x2c] sm:$0xf]
        %v1775 = vld [vmem:[%s1762 + $0x30] sm:$0xf]
        %v1776 = vld [vmem:[%s1762 + $0x34] sm:$0xf]
        %v1777 = vld [vmem:[%s1762 + $0x38] sm:$0xf]
        %v1778 = vld [vmem:[%s1762 + $0x3c] sm:$0xf]
        %vm1785 = vcmask 1046528
        %v1786 = vrot.slane %v1105, 1
        %v1787 = vrot.slane %v1106, 1
        %v1788 = vsel %vm1785, %v1786, %v1787
        %v1789 = vrot.slane %v1107, 1
        %v1790 = vsel %vm1785, %v1787, %v1789
        %v1791 = vrot.slane %v1108, 1
        %v1792 = vsel %vm1785, %v1789, %v1791
        %v1793 = vrot.slane %v1109, 1
        %v1794 = vsel %vm1785, %v1791, %v1793
        %v1795 = vrot.slane %v1110, 1
        %v1796 = vsel %vm1785, %v1793, %v1795
        %v1818 = vunpack.c.l.b16 %v1763
        %v1819 = vunpack.c.l.b16 %v1764
        %v1820 = vunpack.c.l.b16 %v1765
        %v1821 = vunpack.c.l.b16 %v1766
        %v1822 = vunpack.c.l.b16 %v1767
        %v1823 = vunpack.c.l.b16 %v1768
        %v1824 = vunpack.c.l.b16 %v1769
        %v1825 = vunpack.c.l.b16 %v1770
        %v1826 = vunpack.c.l.b16 %v1771
        %v1827 = vunpack.c.l.b16 %v1772
        %v1828 = vunpack.c.l.b16 %v1773
        %v1829 = vunpack.c.l.b16 %v1774
        %v1830 = vunpack.c.l.b16 %v1775
        %v1831 = vunpack.c.l.b16 %v1776
        %v1832 = vunpack.c.l.b16 %v1777
        %v1833 = vunpack.c.l.b16 %v1778
        %v1834 = vpack.c.b16 %v1819, %v1818
        %v1835 = vpack.c.b16 %v1821, %v1820
        %v1836 = vpack.c.b16 %v1823, %v1822
        %v1837 = vpack.c.b16 %v1825, %v1824
        %v1838 = vpack.c.b16 %v1827, %v1826
        %v1839 = vpack.c.b16 %v1829, %v1828
        %v1840 = vpack.c.b16 %v1831, %v1830
        %v1841 = vpack.c.b16 %v1833, %v1832
        %1850 = vmatprep.subr.bf16.mxu0 0
        %1851 = vmatpush1.bf16.msra.mxu0 %v1834
        %1852 = vmatprep.subr.bf16.mxu0 0
        %1853 = vmatpush1.bf16.msra.mxu0 %v1835
        %1854 = vmatprep.subr.bf16.mxu0 0
        %1855 = vmatpush1.bf16.msra.mxu0 %v1836
        %1856 = vmatprep.subr.bf16.mxu0 0
        %1857 = vmatpush1.bf16.msra.mxu0 %v1837
        %1858 = vmatprep.subr.bf16.mxu0 0
        %1859 = vmatpush1.bf16.msra.mxu0 %v1838
        %1860 = vmatprep.subr.bf16.mxu0 0
        %1861 = vmatpush1.bf16.msra.mxu0 %v1839
        %1862 = vmatprep.subr.bf16.mxu0 0
        %1863 = vmatpush1.bf16.msra.mxu0 %v1840
        %1864 = vmatprep.subr.bf16.mxu0 0
        %1865 = vmatpush1.bf16.msra.mxu0 %v1841
        %1866 = vmatprep.subr.bf16.mxu0 0
        %1867 = vmatpush1.bf16.msra.mxu0 0
        %1868 = vmatprep.subr.bf16.mxu0 0
        %1869 = vmatpush1.bf16.msra.mxu0 0
        %1870 = vmatprep.subr.bf16.mxu0 0
        %1871 = vmatpush1.bf16.msra.mxu0 0
        %1872 = vmatprep.subr.bf16.mxu0 0
        %1873 = vmatpush1.bf16.msra.mxu0 0
        %1874 = vmatprep.subr.bf16.mxu0 0
        %1875 = vmatpush1.bf16.msra.mxu0 0
        %1876 = vmatprep.subr.bf16.mxu0 0
        %1877 = vmatpush1.bf16.msra.mxu0 0
        %1878 = vmatprep.subr.bf16.mxu0 0
        %1879 = vmatpush1.bf16.msra.mxu0 0
        %1880 = vmatprep.subr.bf16.mxu0 0
        %1881 = vmatpush1.bf16.msra.mxu0 0
        %1882 = vmatprep.mubr.bf16.mxu0 0
        %1883 = vmatmul.mubr.bf16.gmra.mrb[0].mxu0 %v1788
        %v1884 = vpop.f32.mrb[0].mxu0
        %v1885 = vadd.f32 0.0, %v1884
        %v1886 = vpop.f32.mrb[0].mxu0
        %v1887 = vpop.f32.mrb[0].mxu0
        %v1888 = vadd.f32 0.0, %v1887
        %v1889 = vpop.f32.mrb[0].mxu0
        %1890 = vmatprep.mubr.bf16.mxu0 0
        %1891 = vmatmul.mubr.bf16.gmra.mrb[0].mxu0 %v1790
        %v1892 = vpop.f32.mrb[0].mxu0
        %v1893 = vadd.f32 0.0, %v1892
        %v1894 = vpop.f32.mrb[0].mxu0
        %v1895 = vpop.f32.mrb[0].mxu0
        %v1896 = vadd.f32 0.0, %v1895
        %v1897 = vpop.f32.mrb[0].mxu0
        %1898 = vmatprep.mubr.bf16.mxu0 0
        %1899 = vmatmul.mubr.bf16.gmra.mrb[0].mxu0 %v1792
        %v1900 = vpop.f32.mrb[0].mxu0
        %v1901 = vadd.f32 0.0, %v1900
        %v1902 = vpop.f32.mrb[0].mxu0
        %v1903 = vpop.f32.mrb[0].mxu0
        %v1904 = vadd.f32 0.0, %v1903
        %v1905 = vpop.f32.mrb[0].mxu0
        %1906 = vmatprep.mubr.bf16.mxu0 0
        %1907 = vmatmul.mubr.bf16.gmra.mrb[0].mxu0 %v1794
        %v1908 = vpop.f32.mrb[0].mxu0
        %v1909 = vadd.f32 0.0, %v1908
        %v1910 = vpop.f32.mrb[0].mxu0
        %v1911 = vpop.f32.mrb[0].mxu0
        %v1912 = vadd.f32 0.0, %v1911
        %v1913 = vpop.f32.mrb[0].mxu0
        %1914 = vmatprep.mubr.bf16.mxu0 0
        %1915 = vmatmul.mubr.bf16.gmra.mrb[0].mxu0 %v1796
        %v1916 = vpop.f32.mrb[0].mxu0
        %v1917 = vadd.f32 0.0, %v1916
        %v1918 = vpop.f32.mrb[0].mxu0
        %v1919 = vpop.f32.mrb[0].mxu0
        %v1920 = vadd.f32 0.0, %v1919
        %v1921 = vpop.f32.mrb[0].mxu0
        %1922 = vdwg.mxu0
        %v1923 = vadd.f32 %v1724, %v1885
        %v1924 = vadd.f32 %v1727, %v1888
        %v1925 = vadd.f32 %v1732, %v1893
        %v1926 = vadd.f32 %v1735, %v1896
        %v1927 = vadd.f32 %v1740, %v1901
        %v1928 = vadd.f32 %v1743, %v1904
        %v1929 = vadd.f32 %v1748, %v1909
        %v1930 = vadd.f32 %v1751, %v1912
        %v1931 = vadd.f32 %v1756, %v1917
        %v1932 = vadd.f32 %v1759, %v1920
        %s1933 = scalar_lea.vmem [#allocation4], 192
        %v1934 = vld [vmem:[%s1933] sm:$0xf]
        %v1935 = vld [vmem:[%s1933 + $0x4] sm:$0xf]
        %v1936 = vld [vmem:[%s1933 + $0x8] sm:$0xf]
        %v1937 = vld [vmem:[%s1933 + $0xc] sm:$0xf]
        %v1938 = vld [vmem:[%s1933 + $0x10] sm:$0xf]
        %v1939 = vld [vmem:[%s1933 + $0x14] sm:$0xf]
        %v1940 = vld [vmem:[%s1933 + $0x18] sm:$0xf]
        %v1941 = vld [vmem:[%s1933 + $0x1c] sm:$0xf]
        %v1942 = vld [vmem:[%s1933 + $0x20] sm:$0xf]
        %v1943 = vld [vmem:[%s1933 + $0x24] sm:$0xf]
        %v1944 = vld [vmem:[%s1933 + $0x28] sm:$0xf]
        %v1945 = vld [vmem:[%s1933 + $0x2c] sm:$0xf]
        %v1946 = vld [vmem:[%s1933 + $0x30] sm:$0xf]
        %v1947 = vld [vmem:[%s1933 + $0x34] sm:$0xf]
        %v1948 = vld [vmem:[%s1933 + $0x38] sm:$0xf]
        %v1949 = vld [vmem:[%s1933 + $0x3c] sm:$0xf]
        %vm1950 = vcmask 1042432
        %v1951 = vrot.slane %v1105, 5
        %v1952 = vrot.slane %v1106, 5
        %v1953 = vsel %vm1950, %v1951, %v1952
        %v1954 = vrot.slane %v1107, 5
        %v1955 = vsel %vm1950, %v1952, %v1954
        %v1956 = vrot.slane %v1108, 5
        %v1957 = vsel %vm1950, %v1954, %v1956
        %v1958 = vrot.slane %v1109, 5
        %v1959 = vsel %vm1950, %v1956, %v1958
        %v1960 = vrot.slane %v1110, 5
        %v1961 = vsel %vm1950, %v1958, %v1960
        %v1983 = vunpack.c.l.b16 %v1934
        %v1984 = vunpack.c.l.b16 %v1935
        %v1985 = vunpack.c.l.b16 %v1936
        %v1986 = vunpack.c.l.b16 %v1937
        %v1987 = vunpack.c.l.b16 %v1938
        %v1988 = vunpack.c.l.b16 %v1939
        %v1989 = vunpack.c.l.b16 %v1940
        %v1990 = vunpack.c.l.b16 %v1941
        %v1991 = vunpack.c.l.b16 %v1942
        %v1992 = vunpack.c.l.b16 %v1943
        %v1993 = vunpack.c.l.b16 %v1944
        %v1994 = vunpack.c.l.b16 %v1945
        %v1995 = vunpack.c.l.b16 %v1946
        %v1996 = vunpack.c.l.b16 %v1947
        %v1997 = vunpack.c.l.b16 %v1948
        %v1998 = vunpack.c.l.b16 %v1949
        %v1999 = vpack.c.b16 %v1984, %v1983
        %v2000 = vpack.c.b16 %v1986, %v1985
        %v2001 = vpack.c.b16 %v1988, %v1987
        %v2002 = vpack.c.b16 %v1990, %v1989
        %v2003 = vpack.c.b16 %v1992, %v1991
        %v2004 = vpack.c.b16 %v1994, %v1993
        %v2005 = vpack.c.b16 %v1996, %v1995
        %v2006 = vpack.c.b16 %v1998, %v1997
        %2015 = vmatprep.subr.bf16.mxu0 0
        %2016 = vmatpush1.bf16.msra.mxu0 %v1999
        %2017 = vmatprep.subr.bf16.mxu0 0
        %2018 = vmatpush1.bf16.msra.mxu0 %v2000
        %2019 = vmatprep.subr.bf16.mxu0 0
        %2020 = vmatpush1.bf16.msra.mxu0 %v2001
        %2021 = vmatprep.subr.bf16.mxu0 0
        %2022 = vmatpush1.bf16.msra.mxu0 %v2002
        %2023 = vmatprep.subr.bf16.mxu0 0
        %2024 = vmatpush1.bf16.msra.mxu0 %v2003
        %2025 = vmatprep.subr.bf16.mxu0 0
        %2026 = vmatpush1.bf16.msra.mxu0 %v2004
        %2027 = vmatprep.subr.bf16.mxu0 0
        %2028 = vmatpush1.bf16.msra.mxu0 %v2005
        %2029 = vmatprep.subr.bf16.mxu0 0
        %2030 = vmatpush1.bf16.msra.mxu0 %v2006
        %2031 = vmatprep.subr.bf16.mxu0 0
        %2032 = vmatpush1.bf16.msra.mxu0 0
        %2033 = vmatprep.subr.bf16.mxu0 0
        %2034 = vmatpush1.bf16.msra.mxu0 0
        %2035 = vmatprep.subr.bf16.mxu0 0
        %2036 = vmatpush1.bf16.msra.mxu0 0
        %2037 = vmatprep.subr.bf16.mxu0 0
        %2038 = vmatpush1.bf16.msra.mxu0 0
        %2039 = vmatprep.subr.bf16.mxu0 0
        %2040 = vmatpush1.bf16.msra.mxu0 0
        %2041 = vmatprep.subr.bf16.mxu0 0
        %2042 = vmatpush1.bf16.msra.mxu0 0
        %2043 = vmatprep.subr.bf16.mxu0 0
        %2044 = vmatpush1.bf16.msra.mxu0 0
        %2045 = vmatprep.subr.bf16.mxu0 0
        %2046 = vmatpush1.bf16.msra.mxu0 0
        %2047 = vmatprep.mubr.bf16.mxu0 0
        %2048 = vmatmul.mubr.bf16.gmra.mrb[0].mxu0 %v1953
        %v2049 = vpop.f32.mrb[0].mxu0
        %v2050 = vadd.f32 0.0, %v2049
        %v2051 = vpop.f32.mrb[0].mxu0
        %v2052 = vpop.f32.mrb[0].mxu0
        %v2053 = vadd.f32 0.0, %v2052
        %v2054 = vpop.f32.mrb[0].mxu0
        %2055 = vmatprep.mubr.bf16.mxu0 0
        %2056 = vmatmul.mubr.bf16.gmra.mrb[0].mxu0 %v1955
        %v2057 = vpop.f32.mrb[0].mxu0
        %v2058 = vadd.f32 0.0, %v2057
        %v2059 = vpop.f32.mrb[0].mxu0
        %v2060 = vpop.f32.mrb[0].mxu0
        %v2061 = vadd.f32 0.0, %v2060
        %v2062 = vpop.f32.mrb[0].mxu0
        %2063 = vmatprep.mubr.bf16.mxu0 0
        %2064 = vmatmul.mubr.bf16.gmra.mrb[0].mxu0 %v1957
        %v2065 = vpop.f32.mrb[0].mxu0
        %v2066 = vadd.f32 0.0, %v2065
        %v2067 = vpop.f32.mrb[0].mxu0
        %v2068 = vpop.f32.mrb[0].mxu0
        %v2069 = vadd.f32 0.0, %v2068
        %v2070 = vpop.f32.mrb[0].mxu0
        %2071 = vmatprep.mubr.bf16.mxu0 0
        %2072 = vmatmul.mubr.bf16.gmra.mrb[0].mxu0 %v1959
        %v2073 = vpop.f32.mrb[0].mxu0
        %v2074 = vadd.f32 0.0, %v2073
        %v2075 = vpop.f32.mrb[0].mxu0
        %v2076 = vpop.f32.mrb[0].mxu0
        %v2077 = vadd.f32 0.0, %v2076
        %v2078 = vpop.f32.mrb[0].mxu0
        %2079 = vmatprep.mubr.bf16.mxu0 0
        %2080 = vmatmul.mubr.bf16.gmra.mrb[0].mxu0 %v1961
        %v2081 = vpop.f32.mrb[0].mxu0
        %v2082 = vadd.f32 0.0, %v2081
        %v2083 = vpop.f32.mrb[0].mxu0
        %v2084 = vpop.f32.mrb[0].mxu0
        %v2085 = vadd.f32 0.0, %v2084
        %v2086 = vpop.f32.mrb[0].mxu0
        %2087 = vdwg.mxu0
        %v2088 = vadd.f32 %v1923, %v2050
        %v2089 = vadd.f32 %v1924, %v2053
        %v2090 = vadd.f32 %v1925, %v2058
        %v2091 = vadd.f32 %v1926, %v2061
        %v2092 = vadd.f32 %v1927, %v2066
        %v2093 = vadd.f32 %v1928, %v2069
        %v2094 = vadd.f32 %v1929, %v2074
        %v2095 = vadd.f32 %v1930, %v2077
        %v2096 = vadd.f32 %v1931, %v2082
        %v2097 = vadd.f32 %v1932, %v2085
        %s2098 = scalar_lea.vmem [#allocation4], 256
        %v2099 = vld [vmem:[%s2098] sm:$0xf]
        %v2100 = vld [vmem:[%s2098 + $0x4] sm:$0xf]
        %v2101 = vld [vmem:[%s2098 + $0x8] sm:$0xf]
        %v2102 = vld [vmem:[%s2098 + $0xc] sm:$0xf]
        %v2103 = vld [vmem:[%s2098 + $0x10] sm:$0xf]
        %v2104 = vld [vmem:[%s2098 + $0x14] sm:$0xf]
        %v2105 = vld [vmem:[%s2098 + $0x18] sm:$0xf]
        %v2106 = vld [vmem:[%s2098 + $0x1c] sm:$0xf]
        %v2107 = vld [vmem:[%s2098 + $0x20] sm:$0xf]
        %v2108 = vld [vmem:[%s2098 + $0x24] sm:$0xf]
        %v2109 = vld [vmem:[%s2098 + $0x28] sm:$0xf]
        %v2110 = vld [vmem:[%s2098 + $0x2c] sm:$0xf]
        %v2111 = vld [vmem:[%s2098 + $0x30] sm:$0xf]
        %v2112 = vld [vmem:[%s2098 + $0x34] sm:$0xf]
        %v2113 = vld [vmem:[%s2098 + $0x38] sm:$0xf]
        %v2114 = vld [vmem:[%s2098 + $0x3c] sm:$0xf]
        %v2131 = vunpack.c.l.b16 %v2099
        %v2132 = vunpack.c.l.b16 %v2100
        %v2133 = vunpack.c.l.b16 %v2101
        %v2134 = vunpack.c.l.b16 %v2102
        %v2135 = vunpack.c.l.b16 %v2103
        %v2136 = vunpack.c.l.b16 %v2104
        %v2137 = vunpack.c.l.b16 %v2105
        %v2138 = vunpack.c.l.b16 %v2106
        %v2139 = vunpack.c.l.b16 %v2107
        %v2140 = vunpack.c.l.b16 %v2108
        %v2141 = vunpack.c.l.b16 %v2109
        %v2142 = vunpack.c.l.b16 %v2110
        %v2143 = vunpack.c.l.b16 %v2111
        %v2144 = vunpack.c.l.b16 %v2112
        %v2145 = vunpack.c.l.b16 %v2113
        %v2146 = vunpack.c.l.b16 %v2114
        %v2147 = vpack.c.b16 %v2132, %v2131
        %v2148 = vpack.c.b16 %v2134, %v2133
        %v2149 = vpack.c.b16 %v2136, %v2135
        %v2150 = vpack.c.b16 %v2138, %v2137
        %v2151 = vpack.c.b16 %v2140, %v2139
        %v2152 = vpack.c.b16 %v2142, %v2141
        %v2153 = vpack.c.b16 %v2144, %v2143
        %v2154 = vpack.c.b16 %v2146, %v2145
        %2163 = vmatprep.subr.bf16.mxu0 0
        %2164 = vmatpush1.bf16.msra.mxu0 %v2147
        %2165 = vmatprep.subr.bf16.mxu0 0
        %2166 = vmatpush1.bf16.msra.mxu0 %v2148
        %2167 = vmatprep.subr.bf16.mxu0 0
        %2168 = vmatpush1.bf16.msra.mxu0 %v2149
        %2169 = vmatprep.subr.bf16.mxu0 0
        %2170 = vmatpush1.bf16.msra.mxu0 %v2150
        %2171 = vmatprep.subr.bf16.mxu0 0
        %2172 = vmatpush1.bf16.msra.mxu0 %v2151
        %2173 = vmatprep.subr.bf16.mxu0 0
        %2174 = vmatpush1.bf16.msra.mxu0 %v2152
        %2175 = vmatprep.subr.bf16.mxu0 0
        %2176 = vmatpush1.bf16.msra.mxu0 %v2153
        %2177 = vmatprep.subr.bf16.mxu0 0
        %2178 = vmatpush1.bf16.msra.mxu0 %v2154
        %2179 = vmatprep.subr.bf16.mxu0 0
        %2180 = vmatpush1.bf16.msra.mxu0 0
        %2181 = vmatprep.subr.bf16.mxu0 0
        %2182 = vmatpush1.bf16.msra.mxu0 0
        %2183 = vmatprep.subr.bf16.mxu0 0
        %2184 = vmatpush1.bf16.msra.mxu0 0
        %2185 = vmatprep.subr.bf16.mxu0 0
        %2186 = vmatpush1.bf16.msra.mxu0 0
        %2187 = vmatprep.subr.bf16.mxu0 0
        %2188 = vmatpush1.bf16.msra.mxu0 0
        %2189 = vmatprep.subr.bf16.mxu0 0
        %2190 = vmatpush1.bf16.msra.mxu0 0
        %2191 = vmatprep.subr.bf16.mxu0 0
        %2192 = vmatpush1.bf16.msra.mxu0 0
        %2193 = vmatprep.subr.bf16.mxu0 0
        %2194 = vmatpush1.bf16.msra.mxu0 0
        %2195 = vmatprep.mubr.bf16.mxu0 0
        %2196 = vmatmul.mubr.bf16.gmra.mrb[0].mxu0 %v1167
        %v2197 = vpop.f32.mrb[0].mxu0
        %v2198 = vadd.f32 0.0, %v2197
        %v2199 = vpop.f32.mrb[0].mxu0
        %v2200 = vpop.f32.mrb[0].mxu0
        %v2201 = vadd.f32 0.0, %v2200
        %v2202 = vpop.f32.mrb[0].mxu0
        %2203 = vmatprep.mubr.bf16.mxu0 0
        %2204 = vmatmul.mubr.bf16.gmra.mrb[0].mxu0 %v1176
        %v2205 = vpop.f32.mrb[0].mxu0
        %v2206 = vadd.f32 0.0, %v2205
        %v2207 = vpop.f32.mrb[0].mxu0
        %v2208 = vpop.f32.mrb[0].mxu0
        %v2209 = vadd.f32 0.0, %v2208
        %v2210 = vpop.f32.mrb[0].mxu0
        %2211 = vmatprep.mubr.bf16.mxu0 0
        %2212 = vmatmul.mubr.bf16.gmra.mrb[0].mxu0 %v1185
        %v2213 = vpop.f32.mrb[0].mxu0
        %v2214 = vadd.f32 0.0, %v2213
        %v2215 = vpop.f32.mrb[0].mxu0
        %v2216 = vpop.f32.mrb[0].mxu0
        %v2217 = vadd.f32 0.0, %v2216
        %v2218 = vpop.f32.mrb[0].mxu0
        %2219 = vmatprep.mubr.bf16.mxu0 0
        %2220 = vmatmul.mubr.bf16.gmra.mrb[0].mxu0 %v1194
        %v2221 = vpop.f32.mrb[0].mxu0
        %v2222 = vadd.f32 0.0, %v2221
        %v2223 = vpop.f32.mrb[0].mxu0
        %v2224 = vpop.f32.mrb[0].mxu0
        %v2225 = vadd.f32 0.0, %v2224
        %v2226 = vpop.f32.mrb[0].mxu0
        %2227 = vmatprep.mubr.bf16.mxu0 0
        %2228 = vmatmul.mubr.bf16.gmra.mrb[0].mxu0 %v1203
        %v2229 = vpop.f32.mrb[0].mxu0
        %v2230 = vadd.f32 0.0, %v2229
        %v2231 = vpop.f32.mrb[0].mxu0
        %v2232 = vpop.f32.mrb[0].mxu0
        %v2233 = vadd.f32 0.0, %v2232
        %v2234 = vpop.f32.mrb[0].mxu0
        %2235 = vdwg.mxu0
        %v2236 = vadd.f32 %v2088, %v2198
        %v2237 = vadd.f32 %v2089, %v2201
        %v2238 = vadd.f32 %v2090, %v2206
        %v2239 = vadd.f32 %v2091, %v2209
        %v2240 = vadd.f32 %v2092, %v2214
        %v2241 = vadd.f32 %v2093, %v2217
        %v2242 = vadd.f32 %v2094, %v2222
        %v2243 = vadd.f32 %v2095, %v2225
        %v2244 = vadd.f32 %v2096, %v2230
        %v2245 = vadd.f32 %v2097, %v2233
        %s2246 = scalar_lea.vmem [#allocation4], 320
        %v2247 = vld [vmem:[%s2246] sm:$0xf]
        %v2248 = vld [vmem:[%s2246 + $0x4] sm:$0xf]
        %v2249 = vld [vmem:[%s2246 + $0x8] sm:$0xf]
        %v2250 = vld [vmem:[%s2246 + $0xc] sm:$0xf]
        %v2251 = vld [vmem:[%s2246 + $0x10] sm:$0xf]
        %v2252 = vld [vmem:[%s2246 + $0x14] sm:$0xf]
        %v2253 = vld [vmem:[%s2246 + $0x18] sm:$0xf]
        %v2254 = vld [vmem:[%s2246 + $0x1c] sm:$0xf]
        %v2255 = vld [vmem:[%s2246 + $0x20] sm:$0xf]
        %v2256 = vld [vmem:[%s2246 + $0x24] sm:$0xf]
        %v2257 = vld [vmem:[%s2246 + $0x28] sm:$0xf]
        %v2258 = vld [vmem:[%s2246 + $0x2c] sm:$0xf]
        %v2259 = vld [vmem:[%s2246 + $0x30] sm:$0xf]
        %v2260 = vld [vmem:[%s2246 + $0x34] sm:$0xf]
        %v2261 = vld [vmem:[%s2246 + $0x38] sm:$0xf]
        %v2262 = vld [vmem:[%s2246 + $0x3c] sm:$0xf]
        %vm2263 = vcmask 1041408
        %v2264 = vrot.slane %v1105, 6
        %v2265 = vrot.slane %v1106, 6
        %v2266 = vsel %vm2263, %v2264, %v2265
        %v2267 = vrot.slane %v1107, 6
        %v2268 = vsel %vm2263, %v2265, %v2267
        %v2269 = vrot.slane %v1108, 6
        %v2270 = vsel %vm2263, %v2267, %v2269
        %v2271 = vrot.slane %v1109, 6
        %v2272 = vsel %vm2263, %v2269, %v2271
        %v2273 = vrot.slane %v1110, 6
        %v2274 = vsel %vm2263, %v2271, %v2273
        %v2296 = vunpack.c.l.b16 %v2247
        %v2297 = vunpack.c.l.b16 %v2248
        %v2298 = vunpack.c.l.b16 %v2249
        %v2299 = vunpack.c.l.b16 %v2250
        %v2300 = vunpack.c.l.b16 %v2251
        %v2301 = vunpack.c.l.b16 %v2252
        %v2302 = vunpack.c.l.b16 %v2253
        %v2303 = vunpack.c.l.b16 %v2254
        %v2304 = vunpack.c.l.b16 %v2255
        %v2305 = vunpack.c.l.b16 %v2256
        %v2306 = vunpack.c.l.b16 %v2257
        %v2307 = vunpack.c.l.b16 %v2258
        %v2308 = vunpack.c.l.b16 %v2259
        %v2309 = vunpack.c.l.b16 %v2260
        %v2310 = vunpack.c.l.b16 %v2261
        %v2311 = vunpack.c.l.b16 %v2262
        %v2312 = vpack.c.b16 %v2297, %v2296
        %v2313 = vpack.c.b16 %v2299, %v2298
        %v2314 = vpack.c.b16 %v2301, %v2300
        %v2315 = vpack.c.b16 %v2303, %v2302
        %v2316 = vpack.c.b16 %v2305, %v2304
        %v2317 = vpack.c.b16 %v2307, %v2306
        %v2318 = vpack.c.b16 %v2309, %v2308
        %v2319 = vpack.c.b16 %v2311, %v2310
        %2328 = vmatprep.subr.bf16.mxu0 0
        %2329 = vmatpush1.bf16.msra.mxu0 %v2312
        %2330 = vmatprep.subr.bf16.mxu0 0
        %2331 = vmatpush1.bf16.msra.mxu0 %v2313
        %2332 = vmatprep.subr.bf16.mxu0 0
        %2333 = vmatpush1.bf16.msra.mxu0 %v2314
        %2334 = vmatprep.subr.bf16.mxu0 0
        %2335 = vmatpush1.bf16.msra.mxu0 %v2315
        %2336 = vmatprep.subr.bf16.mxu0 0
        %2337 = vmatpush1.bf16.msra.mxu0 %v2316
        %2338 = vmatprep.subr.bf16.mxu0 0
        %2339 = vmatpush1.bf16.msra.mxu0 %v2317
        %2340 = vmatprep.subr.bf16.mxu0 0
        %2341 = vmatpush1.bf16.msra.mxu0 %v2318
        %2342 = vmatprep.subr.bf16.mxu0 0
        %2343 = vmatpush1.bf16.msra.mxu0 %v2319
        %2344 = vmatprep.subr.bf16.mxu0 0
        %2345 = vmatpush1.bf16.msra.mxu0 0
        %2346 = vmatprep.subr.bf16.mxu0 0
        %2347 = vmatpush1.bf16.msra.mxu0 0
        %2348 = vmatprep.subr.bf16.mxu0 0
        %2349 = vmatpush1.bf16.msra.mxu0 0
        %2350 = vmatprep.subr.bf16.mxu0 0
        %2351 = vmatpush1.bf16.msra.mxu0 0
        %2352 = vmatprep.subr.bf16.mxu0 0
        %2353 = vmatpush1.bf16.msra.mxu0 0
        %2354 = vmatprep.subr.bf16.mxu0 0
        %2355 = vmatpush1.bf16.msra.mxu0 0
        %2356 = vmatprep.subr.bf16.mxu0 0
        %2357 = vmatpush1.bf16.msra.mxu0 0
        %2358 = vmatprep.subr.bf16.mxu0 0
        %2359 = vmatpush1.bf16.msra.mxu0 0
        %2360 = vmatprep.mubr.bf16.mxu0 0
        %2361 = vmatmul.mubr.bf16.gmra.mrb[0].mxu0 %v2266
        %v2362 = vpop.f32.mrb[0].mxu0
        %v2363 = vadd.f32 0.0, %v2362
        %v2364 = vpop.f32.mrb[0].mxu0
        %v2365 = vpop.f32.mrb[0].mxu0
        %v2366 = vadd.f32 0.0, %v2365
        %v2367 = vpop.f32.mrb[0].mxu0
        %2368 = vmatprep.mubr.bf16.mxu0 0
        %2369 = vmatmul.mubr.bf16.gmra.mrb[0].mxu0 %v2268
        %v2370 = vpop.f32.mrb[0].mxu0
        %v2371 = vadd.f32 0.0, %v2370
        %v2372 = vpop.f32.mrb[0].mxu0
        %v2373 = vpop.f32.mrb[0].mxu0
        %v2374 = vadd.f32 0.0, %v2373
        %v2375 = vpop.f32.mrb[0].mxu0
        %2376 = vmatprep.mubr.bf16.mxu0 0
        %2377 = vmatmul.mubr.bf16.gmra.mrb[0].mxu0 %v2270
        %v2378 = vpop.f32.mrb[0].mxu0
        %v2379 = vadd.f32 0.0, %v2378
        %v2380 = vpop.f32.mrb[0].mxu0
        %v2381 = vpop.f32.mrb[0].mxu0
        %v2382 = vadd.f32 0.0, %v2381
        %v2383 = vpop.f32.mrb[0].mxu0
        %2384 = vmatprep.mubr.bf16.mxu0 0
        %2385 = vmatmul.mubr.bf16.gmra.mrb[0].mxu0 %v2272
        %v2386 = vpop.f32.mrb[0].mxu0
        %v2387 = vadd.f32 0.0, %v2386
        %v2388 = vpop.f32.mrb[0].mxu0
        %v2389 = vpop.f32.mrb[0].mxu0
        %v2390 = vadd.f32 0.0, %v2389
        %v2391 = vpop.f32.mrb[0].mxu0
        %2392 = vmatprep.mubr.bf16.mxu0 0
        %2393 = vmatmul.mubr.bf16.gmra.mrb[0].mxu0 %v2274
        %v2394 = vpop.f32.mrb[0].mxu0
        %v2395 = vadd.f32 0.0, %v2394
        %v2396 = vpop.f32.mrb[0].mxu0
        %v2397 = vpop.f32.mrb[0].mxu0
        %v2398 = vadd.f32 0.0, %v2397
        %v2399 = vpop.f32.mrb[0].mxu0
        %2400 = vdwg.mxu0
        %v2401 = vadd.f32 %v2236, %v2363
        %v2402 = vadd.f32 %v2237, %v2366
        %v2403 = vadd.f32 %v2238, %v2371
        %v2404 = vadd.f32 %v2239, %v2374
        %v2405 = vadd.f32 %v2240, %v2379
        %v2406 = vadd.f32 %v2241, %v2382
        %v2407 = vadd.f32 %v2242, %v2387
        %v2408 = vadd.f32 %v2243, %v2390
        %v2409 = vadd.f32 %v2244, %v2395
        %v2410 = vadd.f32 %v2245, %v2398
        %s2411 = scalar_lea.vmem [#allocation4], 384
        %v2412 = vld [vmem:[%s2411] sm:$0xf]
        %v2413 = vld [vmem:[%s2411 + $0x4] sm:$0xf]
        %v2414 = vld [vmem:[%s2411 + $0x8] sm:$0xf]
        %v2415 = vld [vmem:[%s2411 + $0xc] sm:$0xf]
        %v2416 = vld [vmem:[%s2411 + $0x10] sm:$0xf]
        %v2417 = vld [vmem:[%s2411 + $0x14] sm:$0xf]
        %v2418 = vld [vmem:[%s2411 + $0x18] sm:$0xf]
        %v2419 = vld [vmem:[%s2411 + $0x1c] sm:$0xf]
        %v2420 = vld [vmem:[%s2411 + $0x20] sm:$0xf]
        %v2421 = vld [vmem:[%s2411 + $0x24] sm:$0xf]
        %v2422 = vld [vmem:[%s2411 + $0x28] sm:$0xf]
        %v2423 = vld [vmem:[%s2411 + $0x2c] sm:$0xf]
        %v2424 = vld [vmem:[%s2411 + $0x30] sm:$0xf]
        %v2425 = vld [vmem:[%s2411 + $0x34] sm:$0xf]
        %v2426 = vld [vmem:[%s2411 + $0x38] sm:$0xf]
        %v2427 = vld [vmem:[%s2411 + $0x3c] sm:$0xf]
        %vm2429 = vcmask 1045504
        %v2430 = vrot.slane %v1106, 2
        %v2431 = vrot.slane %v1107, 2
        %v2432 = vsel %vm2429, %v2430, %v2431
        %v2433 = vrot.slane %v1108, 2
        %v2434 = vsel %vm2429, %v2431, %v2433
        %v2435 = vrot.slane %v1109, 2
        %v2436 = vsel %vm2429, %v2433, %v2435
        %v2437 = vrot.slane %v1110, 2
        %v2438 = vsel %vm2429, %v2435, %v2437
        %v2439 = vrot.slane %v1111, 2
        %v2440 = vsel %vm2429, %v2437, %v2439
        %v2462 = vunpack.c.l.b16 %v2412
        %v2463 = vunpack.c.l.b16 %v2413
        %v2464 = vunpack.c.l.b16 %v2414
        %v2465 = vunpack.c.l.b16 %v2415
        %v2466 = vunpack.c.l.b16 %v2416
        %v2467 = vunpack.c.l.b16 %v2417
        %v2468 = vunpack.c.l.b16 %v2418
        %v2469 = vunpack.c.l.b16 %v2419
        %v2470 = vunpack.c.l.b16 %v2420
        %v2471 = vunpack.c.l.b16 %v2421
        %v2472 = vunpack.c.l.b16 %v2422
        %v2473 = vunpack.c.l.b16 %v2423
        %v2474 = vunpack.c.l.b16 %v2424
        %v2475 = vunpack.c.l.b16 %v2425
        %v2476 = vunpack.c.l.b16 %v2426
        %v2477 = vunpack.c.l.b16 %v2427
        %v2478 = vpack.c.b16 %v2463, %v2462
        %v2479 = vpack.c.b16 %v2465, %v2464
        %v2480 = vpack.c.b16 %v2467, %v2466
        %v2481 = vpack.c.b16 %v2469, %v2468
        %v2482 = vpack.c.b16 %v2471, %v2470
        %v2483 = vpack.c.b16 %v2473, %v2472
        %v2484 = vpack.c.b16 %v2475, %v2474
        %v2485 = vpack.c.b16 %v2477, %v2476
        %2494 = vmatprep.subr.bf16.mxu0 0
        %2495 = vmatpush1.bf16.msra.mxu0 %v2478
        %2496 = vmatprep.subr.bf16.mxu0 0
        %2497 = vmatpush1.bf16.msra.mxu0 %v2479
        %2498 = vmatprep.subr.bf16.mxu0 0
        %2499 = vmatpush1.bf16.msra.mxu0 %v2480
        %2500 = vmatprep.subr.bf16.mxu0 0
        %2501 = vmatpush1.bf16.msra.mxu0 %v2481
        %2502 = vmatprep.subr.bf16.mxu0 0
        %2503 = vmatpush1.bf16.msra.mxu0 %v2482
        %2504 = vmatprep.subr.bf16.mxu0 0
        %2505 = vmatpush1.bf16.msra.mxu0 %v2483
        %2506 = vmatprep.subr.bf16.mxu0 0
        %2507 = vmatpush1.bf16.msra.mxu0 %v2484
        %2508 = vmatprep.subr.bf16.mxu0 0
        %2509 = vmatpush1.bf16.msra.mxu0 %v2485
        %2510 = vmatprep.subr.bf16.mxu0 0
        %2511 = vmatpush1.bf16.msra.mxu0 0
        %2512 = vmatprep.subr.bf16.mxu0 0
        %2513 = vmatpush1.bf16.msra.mxu0 0
        %2514 = vmatprep.subr.bf16.mxu0 0
        %2515 = vmatpush1.bf16.msra.mxu0 0
        %2516 = vmatprep.subr.bf16.mxu0 0
        %2517 = vmatpush1.bf16.msra.mxu0 0
        %2518 = vmatprep.subr.bf16.mxu0 0
        %2519 = vmatpush1.bf16.msra.mxu0 0
        %2520 = vmatprep.subr.bf16.mxu0 0
        %2521 = vmatpush1.bf16.msra.mxu0 0
        %2522 = vmatprep.subr.bf16.mxu0 0
        %2523 = vmatpush1.bf16.msra.mxu0 0
        %2524 = vmatprep.subr.bf16.mxu0 0
        %2525 = vmatpush1.bf16.msra.mxu0 0
        %2526 = vmatprep.mubr.bf16.mxu0 0
        %2527 = vmatmul.mubr.bf16.gmra.mrb[0].mxu0 %v2432
        %v2528 = vpop.f32.mrb[0].mxu0
        %v2529 = vadd.f32 0.0, %v2528
        %v2530 = vpop.f32.mrb[0].mxu0
        %v2531 = vpop.f32.mrb[0].mxu0
        %v2532 = vadd.f32 0.0, %v2531
        %v2533 = vpop.f32.mrb[0].mxu0
        %2534 = vmatprep.mubr.bf16.mxu0 0
        %2535 = vmatmul.mubr.bf16.gmra.mrb[0].mxu0 %v2434
        %v2536 = vpop.f32.mrb[0].mxu0
        %v2537 = vadd.f32 0.0, %v2536
        %v2538 = vpop.f32.mrb[0].mxu0
        %v2539 = vpop.f32.mrb[0].mxu0
        %v2540 = vadd.f32 0.0, %v2539
        %v2541 = vpop.f32.mrb[0].mxu0
        %2542 = vmatprep.mubr.bf16.mxu0 0
        %2543 = vmatmul.mubr.bf16.gmra.mrb[0].mxu0 %v2436
        %v2544 = vpop.f32.mrb[0].mxu0
        %v2545 = vadd.f32 0.0, %v2544
        %v2546 = vpop.f32.mrb[0].mxu0
        %v2547 = vpop.f32.mrb[0].mxu0
        %v2548 = vadd.f32 0.0, %v2547
        %v2549 = vpop.f32.mrb[0].mxu0
        %2550 = vmatprep.mubr.bf16.mxu0 0
        %2551 = vmatmul.mubr.bf16.gmra.mrb[0].mxu0 %v2438
        %v2552 = vpop.f32.mrb[0].mxu0
        %v2553 = vadd.f32 0.0, %v2552
        %v2554 = vpop.f32.mrb[0].mxu0
        %v2555 = vpop.f32.mrb[0].mxu0
        %v2556 = vadd.f32 0.0, %v2555
        %v2557 = vpop.f32.mrb[0].mxu0
        %2558 = vmatprep.mubr.bf16.mxu0 0
        %2559 = vmatmul.mubr.bf16.gmra.mrb[0].mxu0 %v2440
        %v2560 = vpop.f32.mrb[0].mxu0
        %v2561 = vadd.f32 0.0, %v2560
        %v2562 = vpop.f32.mrb[0].mxu0
        %v2563 = vpop.f32.mrb[0].mxu0
        %v2564 = vadd.f32 0.0, %v2563
        %v2565 = vpop.f32.mrb[0].mxu0
        %2566 = vdwg.mxu0
        %v2567 = vadd.f32 %v2401, %v2529
        %v2568 = vadd.f32 %v2402, %v2532
        %v2569 = vadd.f32 %v2403, %v2537
        %v2570 = vadd.f32 %v2404, %v2540
        %v2571 = vadd.f32 %v2405, %v2545
        %v2572 = vadd.f32 %v2406, %v2548
        %v2573 = vadd.f32 %v2407, %v2553
        %v2574 = vadd.f32 %v2408, %v2556
        %v2575 = vadd.f32 %v2409, %v2561
        %v2576 = vadd.f32 %v2410, %v2564
        %s2577 = scalar_lea.vmem [#allocation4], 448
        %v2578 = vld [vmem:[%s2577] sm:$0xf]
        %v2579 = vld [vmem:[%s2577 + $0x4] sm:$0xf]
        %v2580 = vld [vmem:[%s2577 + $0x8] sm:$0xf]
        %v2581 = vld [vmem:[%s2577 + $0xc] sm:$0xf]
        %v2582 = vld [vmem:[%s2577 + $0x10] sm:$0xf]
        %v2583 = vld [vmem:[%s2577 + $0x14] sm:$0xf]
        %v2584 = vld [vmem:[%s2577 + $0x18] sm:$0xf]
        %v2585 = vld [vmem:[%s2577 + $0x1c] sm:$0xf]
        %v2586 = vld [vmem:[%s2577 + $0x20] sm:$0xf]
        %v2587 = vld [vmem:[%s2577 + $0x24] sm:$0xf]
        %v2588 = vld [vmem:[%s2577 + $0x28] sm:$0xf]
        %v2589 = vld [vmem:[%s2577 + $0x2c] sm:$0xf]
        %v2590 = vld [vmem:[%s2577 + $0x30] sm:$0xf]
        %v2591 = vld [vmem:[%s2577 + $0x34] sm:$0xf]
        %v2592 = vld [vmem:[%s2577 + $0x38] sm:$0xf]
        %v2593 = vld [vmem:[%s2577 + $0x3c] sm:$0xf]
        %vm2594 = vsmask.f32 5376
        %v2595 = vrot.slane %v1160, 2
        %v2596 = vrot.slane %v1163, 3
        %v2597 = vor.u32 %v2595, %v2596
        %v2598 = vrot.slane %v1169, 2
        %v2599 = vrot.slane %v1172, 3
        %v2600 = vor.u32 %v2598, %v2599
        %v2601 = vsel %vm2594, %v2597, %v2600
        %v2602 = vrot.slane %v1178, 2
        %v2603 = vrot.slane %v1181, 3
        %v2604 = vor.u32 %v2602, %v2603
        %v2605 = vsel %vm2594, %v2600, %v2604
        %v2606 = vrot.slane %v1187, 2
        %v2607 = vrot.slane %v1190, 3
        %v2608 = vor.u32 %v2606, %v2607
        %v2609 = vsel %vm2594, %v2604, %v2608
        %v2610 = vrot.slane %v1196, 2
        %v2611 = vrot.slane %v1199, 3
        %v2612 = vor.u32 %v2610, %v2611
        %v2613 = vsel %vm2594, %v2608, %v2612
        %v2615 = vshrl.u32 %v1111, 16
        %v2617 = vrot.slane %v2615, 2
        %v2618 = vshll.u32 %v1111, 16
        %v2620 = vrot.slane %v2618, 3
        %v2621 = vor.u32 %v2617, %v2620
        %v2622 = vsel %vm2594, %v2612, %v2621
        %v2644 = vunpack.c.l.b16 %v2578
        %v2645 = vunpack.c.l.b16 %v2579
        %v2646 = vunpack.c.l.b16 %v2580
        %v2647 = vunpack.c.l.b16 %v2581
        %v2648 = vunpack.c.l.b16 %v2582
        %v2649 = vunpack.c.l.b16 %v2583
        %v2650 = vunpack.c.l.b16 %v2584
        %v2651 = vunpack.c.l.b16 %v2585
        %v2652 = vunpack.c.l.b16 %v2586
        %v2653 = vunpack.c.l.b16 %v2587
        %v2654 = vunpack.c.l.b16 %v2588
        %v2655 = vunpack.c.l.b16 %v2589
        %v2656 = vunpack.c.l.b16 %v2590
        %v2657 = vunpack.c.l.b16 %v2591
        %v2658 = vunpack.c.l.b16 %v2592
        %v2659 = vunpack.c.l.b16 %v2593
        %v2660 = vpack.c.b16 %v2645, %v2644
        %v2661 = vpack.c.b16 %v2647, %v2646
        %v2662 = vpack.c.b16 %v2649, %v2648
        %v2663 = vpack.c.b16 %v2651, %v2650
        %v2664 = vpack.c.b16 %v2653, %v2652
        %v2665 = vpack.c.b16 %v2655, %v2654
        %v2666 = vpack.c.b16 %v2657, %v2656
        %v2667 = vpack.c.b16 %v2659, %v2658
        %2676 = vmatprep.subr.bf16.mxu0 0
        %2677 = vmatpush1.bf16.msra.mxu0 %v2660
        %2678 = vmatprep.subr.bf16.mxu0 0
        %2679 = vmatpush1.bf16.msra.mxu0 %v2661
        %2680 = vmatprep.subr.bf16.mxu0 0
        %2681 = vmatpush1.bf16.msra.mxu0 %v2662
        %2682 = vmatprep.subr.bf16.mxu0 0
        %2683 = vmatpush1.bf16.msra.mxu0 %v2663
        %2684 = vmatprep.subr.bf16.mxu0 0
        %2685 = vmatpush1.bf16.msra.mxu0 %v2664
        %2686 = vmatprep.subr.bf16.mxu0 0
        %2687 = vmatpush1.bf16.msra.mxu0 %v2665
        %2688 = vmatprep.subr.bf16.mxu0 0
        %2689 = vmatpush1.bf16.msra.mxu0 %v2666
        %2690 = vmatprep.subr.bf16.mxu0 0
        %2691 = vmatpush1.bf16.msra.mxu0 %v2667
        %2692 = vmatprep.subr.bf16.mxu0 0
        %2693 = vmatpush1.bf16.msra.mxu0 0
        %2694 = vmatprep.subr.bf16.mxu0 0
        %2695 = vmatpush1.bf16.msra.mxu0 0
        %2696 = vmatprep.subr.bf16.mxu0 0
        %2697 = vmatpush1.bf16.msra.mxu0 0
        %2698 = vmatprep.subr.bf16.mxu0 0
        %2699 = vmatpush1.bf16.msra.mxu0 0
        %2700 = vmatprep.subr.bf16.mxu0 0
        %2701 = vmatpush1.bf16.msra.mxu0 0
        %2702 = vmatprep.subr.bf16.mxu0 0
        %2703 = vmatpush1.bf16.msra.mxu0 0
        %2704 = vmatprep.subr.bf16.mxu0 0
        %2705 = vmatpush1.bf16.msra.mxu0 0
        %2706 = vmatprep.subr.bf16.mxu0 0
        %2707 = vmatpush1.bf16.msra.mxu0 0
        %2708 = vmatprep.mubr.bf16.mxu0 0
        %2709 = vmatmul.mubr.bf16.gmra.mrb[0].mxu0 %v2601
        %v2710 = vpop.f32.mrb[0].mxu0
        %v2711 = vadd.f32 0.0, %v2710
        %v2712 = vpop.f32.mrb[0].mxu0
        %v2713 = vpop.f32.mrb[0].mxu0
        %v2714 = vadd.f32 0.0, %v2713
        %v2715 = vpop.f32.mrb[0].mxu0
        %2716 = vmatprep.mubr.bf16.mxu0 0
        %2717 = vmatmul.mubr.bf16.gmra.mrb[0].mxu0 %v2605
        %v2718 = vpop.f32.mrb[0].mxu0
        %v2719 = vadd.f32 0.0, %v2718
        %v2720 = vpop.f32.mrb[0].mxu0
        %v2721 = vpop.f32.mrb[0].mxu0
        %v2722 = vadd.f32 0.0, %v2721
        %v2723 = vpop.f32.mrb[0].mxu0
        %2724 = vmatprep.mubr.bf16.mxu0 0
        %2725 = vmatmul.mubr.bf16.gmra.mrb[0].mxu0 %v2609
        %v2726 = vpop.f32.mrb[0].mxu0
        %v2727 = vadd.f32 0.0, %v2726
        %v2728 = vpop.f32.mrb[0].mxu0
        %v2729 = vpop.f32.mrb[0].mxu0
        %v2730 = vadd.f32 0.0, %v2729
        %v2731 = vpop.f32.mrb[0].mxu0
        %2732 = vmatprep.mubr.bf16.mxu0 0
        %2733 = vmatmul.mubr.bf16.gmra.mrb[0].mxu0 %v2613
        %v2734 = vpop.f32.mrb[0].mxu0
        %v2735 = vadd.f32 0.0, %v2734
        %v2736 = vpop.f32.mrb[0].mxu0
        %v2737 = vpop.f32.mrb[0].mxu0
        %v2738 = vadd.f32 0.0, %v2737
        %v2739 = vpop.f32.mrb[0].mxu0
        %2740 = vmatprep.mubr.bf16.mxu0 0
        %2741 = vmatmul.mubr.bf16.gmra.mrb[0].mxu0 %v2622
        %v2742 = vpop.f32.mrb[0].mxu0
        %v2743 = vadd.f32 0.0, %v2742
        %v2744 = vpop.f32.mrb[0].mxu0
        %v2745 = vpop.f32.mrb[0].mxu0
        %v2746 = vadd.f32 0.0, %v2745
        %v2747 = vpop.f32.mrb[0].mxu0
        %2748 = vdwg.mxu0
        %v2749 = vadd.f32 %v2567, %v2711
        %v2750 = vadd.f32 %v2568, %v2714
        %v2751 = vadd.f32 %v2569, %v2719
        %v2752 = vadd.f32 %v2570, %v2722
        %v2753 = vadd.f32 %v2571, %v2727
        %v2754 = vadd.f32 %v2572, %v2730
        %v2755 = vadd.f32 %v2573, %v2735
        %v2756 = vadd.f32 %v2574, %v2738
        %v2757 = vadd.f32 %v2575, %v2743
        %v2758 = vadd.f32 %v2576, %v2746
        %s2759 = scalar_lea.vmem [#allocation4], 512
        %v2760 = vld [vmem:[%s2759] sm:$0xf]
        %v2761 = vld [vmem:[%s2759 + $0x4] sm:$0xf]
        %v2762 = vld [vmem:[%s2759 + $0x8] sm:$0xf]
        %v2763 = vld [vmem:[%s2759 + $0xc] sm:$0xf]
        %v2764 = vld [vmem:[%s2759 + $0x10] sm:$0xf]
        %v2765 = vld [vmem:[%s2759 + $0x14] sm:$0xf]
        %v2766 = vld [vmem:[%s2759 + $0x18] sm:$0xf]
        %v2767 = vld [vmem:[%s2759 + $0x1c] sm:$0xf]
        %v2768 = vld [vmem:[%s2759 + $0x20] sm:$0xf]
        %v2769 = vld [vmem:[%s2759 + $0x24] sm:$0xf]
        %v2770 = vld [vmem:[%s2759 + $0x28] sm:$0xf]
        %v2771 = vld [vmem:[%s2759 + $0x2c] sm:$0xf]
        %v2772 = vld [vmem:[%s2759 + $0x30] sm:$0xf]
        %v2773 = vld [vmem:[%s2759 + $0x34] sm:$0xf]
        %v2774 = vld [vmem:[%s2759 + $0x38] sm:$0xf]
        %v2775 = vld [vmem:[%s2759 + $0x3c] sm:$0xf]
        %vm2776 = vcmask 1044480
        %v2777 = vrot.slane %v1106, 3
        %v2778 = vrot.slane %v1107, 3
        %v2779 = vsel %vm2776, %v2777, %v2778
        %v2780 = vrot.slane %v1108, 3
        %v2781 = vsel %vm2776, %v2778, %v2780
        %v2782 = vrot.slane %v1109, 3
        %v2783 = vsel %vm2776, %v2780, %v2782
        %v2784 = vrot.slane %v1110, 3
        %v2785 = vsel %vm2776, %v2782, %v2784
        %v2786 = vrot.slane %v1111, 3
        %v2787 = vsel %vm2776, %v2784, %v2786
        %v2809 = vunpack.c.l.b16 %v2760
        %v2810 = vunpack.c.l.b16 %v2761
        %v2811 = vunpack.c.l.b16 %v2762
        %v2812 = vunpack.c.l.b16 %v2763
        %v2813 = vunpack.c.l.b16 %v2764
        %v2814 = vunpack.c.l.b16 %v2765
        %v2815 = vunpack.c.l.b16 %v2766
        %v2816 = vunpack.c.l.b16 %v2767
        %v2817 = vunpack.c.l.b16 %v2768
        %v2818 = vunpack.c.l.b16 %v2769
        %v2819 = vunpack.c.l.b16 %v2770
        %v2820 = vunpack.c.l.b16 %v2771
        %v2821 = vunpack.c.l.b16 %v2772
        %v2822 = vunpack.c.l.b16 %v2773
        %v2823 = vunpack.c.l.b16 %v2774
        %v2824 = vunpack.c.l.b16 %v2775
        %v2825 = vpack.c.b16 %v2810, %v2809
        %v2826 = vpack.c.b16 %v2812, %v2811
        %v2827 = vpack.c.b16 %v2814, %v2813
        %v2828 = vpack.c.b16 %v2816, %v2815
        %v2829 = vpack.c.b16 %v2818, %v2817
        %v2830 = vpack.c.b16 %v2820, %v2819
        %v2831 = vpack.c.b16 %v2822, %v2821
        %v2832 = vpack.c.b16 %v2824, %v2823
        %2841 = vmatprep.subr.bf16.mxu0 0
        %2842 = vmatpush1.bf16.msra.mxu0 %v2825
        %2843 = vmatprep.subr.bf16.mxu0 0
        %2844 = vmatpush1.bf16.msra.mxu0 %v2826
        %2845 = vmatprep.subr.bf16.mxu0 0
        %2846 = vmatpush1.bf16.msra.mxu0 %v2827
        %2847 = vmatprep.subr.bf16.mxu0 0
        %2848 = vmatpush1.bf16.msra.mxu0 %v2828
        %2849 = vmatprep.subr.bf16.mxu0 0
        %2850 = vmatpush1.bf16.msra.mxu0 %v2829
        %2851 = vmatprep.subr.bf16.mxu0 0
        %2852 = vmatpush1.bf16.msra.mxu0 %v2830
        %2853 = vmatprep.subr.bf16.mxu0 0
        %2854 = vmatpush1.bf16.msra.mxu0 %v2831
        %2855 = vmatprep.subr.bf16.mxu0 0
        %2856 = vmatpush1.bf16.msra.mxu0 %v2832
        %2857 = vmatprep.subr.bf16.mxu0 0
        %2858 = vmatpush1.bf16.msra.mxu0 0
        %2859 = vmatprep.subr.bf16.mxu0 0
        %2860 = vmatpush1.bf16.msra.mxu0 0
        %2861 = vmatprep.subr.bf16.mxu0 0
        %2862 = vmatpush1.bf16.msra.mxu0 0
        %2863 = vmatprep.subr.bf16.mxu0 0
        %2864 = vmatpush1.bf16.msra.mxu0 0
        %2865 = vmatprep.subr.bf16.mxu0 0
        %2866 = vmatpush1.bf16.msra.mxu0 0
        %2867 = vmatprep.subr.bf16.mxu0 0
        %2868 = vmatpush1.bf16.msra.mxu0 0
        %2869 = vmatprep.subr.bf16.mxu0 0
        %2870 = vmatpush1.bf16.msra.mxu0 0
        %2871 = vmatprep.subr.bf16.mxu0 0
        %2872 = vmatpush1.bf16.msra.mxu0 0
        %2873 = vmatprep.mubr.bf16.mxu0 0
        %2874 = vmatmul.mubr.bf16.gmra.mrb[0].mxu0 %v2779
        %v2875 = vpop.f32.mrb[0].mxu0
        %v2876 = vadd.f32 0.0, %v2875
        %v2877 = vpop.f32.mrb[0].mxu0
        %v2878 = vpop.f32.mrb[0].mxu0
        %v2879 = vadd.f32 0.0, %v2878
        %v2880 = vpop.f32.mrb[0].mxu0
        %2881 = vmatprep.mubr.bf16.mxu0 0
        %2882 = vmatmul.mubr.bf16.gmra.mrb[0].mxu0 %v2781
        %v2883 = vpop.f32.mrb[0].mxu0
        %v2884 = vadd.f32 0.0, %v2883
        %v2885 = vpop.f32.mrb[0].mxu0
        %v2886 = vpop.f32.mrb[0].mxu0
        %v2887 = vadd.f32 0.0, %v2886
        %v2888 = vpop.f32.mrb[0].mxu0
        %2889 = vmatprep.mubr.bf16.mxu0 0
        %2890 = vmatmul.mubr.bf16.gmra.mrb[0].mxu0 %v2783
        %v2891 = vpop.f32.mrb[0].mxu0
        %v2892 = vadd.f32 0.0, %v2891
        %v2893 = vpop.f32.mrb[0].mxu0
        %v2894 = vpop.f32.mrb[0].mxu0
        %v2895 = vadd.f32 0.0, %v2894
        %v2896 = vpop.f32.mrb[0].mxu0
        %2897 = vmatprep.mubr.bf16.mxu0 0
        %2898 = vmatmul.mubr.bf16.gmra.mrb[0].mxu0 %v2785
        %v2899 = vpop.f32.mrb[0].mxu0
        %v2900 = vadd.f32 0.0, %v2899
        %v2901 = vpop.f32.mrb[0].mxu0
        %v2902 = vpop.f32.mrb[0].mxu0
        %v2903 = vadd.f32 0.0, %v2902
        %v2904 = vpop.f32.mrb[0].mxu0
        %2905 = vmatprep.mubr.bf16.mxu0 0
        %2906 = vmatmul.mubr.bf16.gmra.mrb[0].mxu0 %v2787
        %v2907 = vpop.f32.mrb[0].mxu0
        %v2908 = vadd.f32 0.0, %v2907
        %v2909 = vpop.f32.mrb[0].mxu0
        %v2910 = vpop.f32.mrb[0].mxu0
        %v2911 = vadd.f32 0.0, %v2910
        %v2912 = vpop.f32.mrb[0].mxu0
        %2913 = vdwg.mxu0
        %v2914 = vadd.f32 %v2749, %v2876
        %v2915 = vadd.f32 %v2750, %v2879
        %v2916 = vadd.f32 %v2751, %v2884
        %v2917 = vadd.f32 %v2752, %v2887
        %v2918 = vadd.f32 %v2753, %v2892
        %v2919 = vadd.f32 %v2754, %v2895
        %v2920 = vadd.f32 %v2755, %v2900
        %v2921 = vadd.f32 %v2756, %v2903
        %v2922 = vadd.f32 %v2757, %v2908
        %v2923 = vadd.f32 %v2758, %v2911
        %v2924 = vlaneseq
        %v2925 = vshrl.u32 %v2924, 7
        %v2926 = vsub.s32 4, %v2925
        %v2927 = vrot.slane %v390, %v2926
        %v2928 = vmul.f32 %v2914, %v2927
        %v2929 = vmul.f32 %v2915, %v2927
        %v2930 = vmul.f32 %v2916, %v2927
        %v2931 = vmul.f32 %v2917, %v2927
        %v2932 = vmul.f32 %v2918, %v2927
        %v2933 = vmul.f32 %v2919, %v2927
        %v2934 = vmul.f32 %v2920, %v2927
        %v2935 = vmul.f32 %v2921, %v2927
        %v2936 = vmul.f32 %v2922, %v2927
        %v2937 = vmul.f32 %v2923, %v2927
        %v2938 = vlaneseq
        %v2939 = vshrl.u32 %v2938, 7
        %v2940 = vsub.s32 5, %v2939
        %v2941 = vrot.slane %v390, %v2940
        %v2942 = vadd.f32 %v2928, %v2941
        %v2943 = vadd.f32 %v2929, %v2941
        %v2944 = vadd.f32 %v2930, %v2941
        %v2945 = vadd.f32 %v2931, %v2941
        %v2946 = vadd.f32 %v2932, %v2941
        %v2947 = vadd.f32 %v2933, %v2941
        %v2948 = vadd.f32 %v2934, %v2941
        %v2949 = vadd.f32 %v2935, %v2941
        %v2950 = vadd.f32 %v2936, %v2941
        %v2951 = vadd.f32 %v2937, %v2941
        %v2952 = vxor.u32 %v2942, 2147483648
        %v2953 = vxor.u32 %v2943, 2147483648
        %v2954 = vxor.u32 %v2944, 2147483648
        %v2955 = vxor.u32 %v2945, 2147483648
        %v2956 = vxor.u32 %v2946, 2147483648
        %v2957 = vxor.u32 %v2947, 2147483648
        %v2958 = vxor.u32 %v2948, 2147483648
        %v2959 = vxor.u32 %v2949, 2147483648
        %v2960 = vxor.u32 %v2950, 2147483648
        %v2961 = vxor.u32 %v2951, 2147483648
        %v2962 = vmul.f32 %v2952, 1.442695
        %v2963 = vpow.pop %v2962
        %v2964 = vmul.f32 %v2953, 1.442695
        %v2965 = vpow.pop %v2964
        %v2966 = vmul.f32 %v2954, 1.442695
        %v2967 = vpow.pop %v2966
        %v2968 = vmul.f32 %v2955, 1.442695
        %v2969 = vpow.pop %v2968
        %v2970 = vmul.f32 %v2956, 1.442695
        %v2971 = vpow.pop %v2970
        %v2972 = vmul.f32 %v2957, 1.442695
        %v2973 = vpow.pop %v2972
        %v2974 = vmul.f32 %v2958, 1.442695
        %v2975 = vpow.pop %v2974
        %v2976 = vmul.f32 %v2959, 1.442695
        %v2977 = vpow.pop %v2976
        %v2978 = vmul.f32 %v2960, 1.442695
        %v2979 = vpow.pop %v2978
        %v2980 = vmul.f32 %v2961, 1.442695
        %v2981 = vpow.pop %v2980
        %v2982 = vadd.f32 %v2963, 1.0
        %v2983 = vadd.f32 %v2965, 1.0
        %v2984 = vadd.f32 %v2967, 1.0
        %v2985 = vadd.f32 %v2969, 1.0
        %v2986 = vadd.f32 %v2971, 1.0
        %v2987 = vadd.f32 %v2973, 1.0
        %v2988 = vadd.f32 %v2975, 1.0
        %v2989 = vadd.f32 %v2977, 1.0
        %v2990 = vadd.f32 %v2979, 1.0
        %v2991 = vadd.f32 %v2981, 1.0
        %v2992 = vrcp.pop %v2982
        %v2993 = vmul.f32 1.0, %v2992
        %v2994 = vrcp.pop %v2983
        %v2995 = vmul.f32 1.0, %v2994
        %v2996 = vrcp.pop %v2984
        %v2997 = vmul.f32 1.0, %v2996
        %v2998 = vrcp.pop %v2985
        %v2999 = vmul.f32 1.0, %v2998
        %v3000 = vrcp.pop %v2986
        %v3001 = vmul.f32 1.0, %v3000
        %v3002 = vrcp.pop %v2987
        %v3003 = vmul.f32 1.0, %v3002
        %v3004 = vrcp.pop %v2988
        %v3005 = vmul.f32 1.0, %v3004
        %v3006 = vrcp.pop %v2989
        %v3007 = vmul.f32 1.0, %v3006
        %v3008 = vrcp.pop %v2990
        %v3009 = vmul.f32 1.0, %v3008
        %v3010 = vrcp.pop %v2991
        %v3011 = vmul.f32 1.0, %v3010
        %v3012 = vmul.f32 %v2942, %v2993
        %v3013 = vmul.f32 %v2943, %v2995
        %v3014 = vmul.f32 %v2944, %v2997
        %v3015 = vmul.f32 %v2945, %v2999
        %v3016 = vmul.f32 %v2946, %v3001
        %v3017 = vmul.f32 %v2947, %v3003
        %v3018 = vmul.f32 %v2948, %v3005
        %v3019 = vmul.f32 %v2949, %v3007
        %v3020 = vmul.f32 %v2950, %v3009
        %v3021 = vmul.f32 %v2951, %v3011
        %vm3022 = vcmask 1044480
        %v3023 = vrot.slane %v1029, 3
        %v3024 = vrot.slane %v1034, 3
        %v3025 = vsel %vm3022, %v3023, %v3024
        %v3026 = vrot.slane %v1039, 3
        %v3027 = vsel %vm3022, %v3024, %v3026
        %v3028 = vrot.slane %v1044, 3
        %v3029 = vsel %vm3022, %v3026, %v3028
        %v3030 = vrot.slane %v1049, 3
        %v3031 = vsel %vm3022, %v3028, %v3030
        %v3032 = vrot.slane %v1054, 3
        %v3033 = vsel %vm3022, %v3030, %v3032
        %v3034 = vrot.slane %v1059, 3
        %v3035 = vsel %vm3022, %v3032, %v3034
        %v3036 = vrot.slane %v1064, 3
        %v3037 = vsel %vm3022, %v3034, %v3036
        %v3038 = vrot.slane %v1069, 3
        %v3039 = vsel %vm3022, %v3036, %v3038
        %v3040 = vrot.slane %v1074, 3
        %v3041 = vsel %vm3022, %v3038, %v3040
        %v3042 = vrot.slane %v1079, 3
        %v3043 = vsel %vm3022, %v3040, %v3042
        %v3054 = vmul.f32 %v3012, %v3025
        %v3055 = vmul.f32 %v3013, %v3027
        %v3056 = vmul.f32 %v3014, %v3029
        %v3057 = vmul.f32 %v3015, %v3031
        %v3058 = vmul.f32 %v3016, %v3033
        %v3059 = vmul.f32 %v3017, %v3035
        %v3060 = vmul.f32 %v3018, %v3037
        %v3061 = vmul.f32 %v3019, %v3039
        %v3062 = vmul.f32 %v3020, %v3041
        %v3063 = vmul.f32 %v3021, %v3043
        %3064 = vst [vmem:[#allocation2 + $0xb] sm:$0xff] %v3054
        %3065 = vst [vmem:[#allocation2 + $0x13] sm:$0xff] %v3055
        %3066 = vst [vmem:[#allocation2 + $0x1b] sm:$0xff] %v3056
        %3067 = vst [vmem:[#allocation2 + $0x23] sm:$0xff] %v3057
        %3068 = vst [vmem:[#allocation2 + $0x2b] sm:$0xff] %v3058
        %3069 = vst [vmem:[#allocation2 + $0x33] sm:$0xff] %v3059
        %3070 = vst [vmem:[#allocation2 + $0x3b] sm:$0xff] %v3060
        %3071 = vst [vmem:[#allocation2 + $0x43] sm:$0xff] %v3061
        %3072 = vst [vmem:[#allocation2 + $0x4b] sm:$0xff] %v3062
        %3073 = vst [vmem:[#allocation2 + $0x53] sm:$0xff] %v3063
        %v3074 = vld [vmem:[#allocation2] sm:$0xff]
        %v3075 = vld [vmem:[#allocation2 + $0x8] sm:$0xff]
        %v3076 = vld [vmem:[#allocation2 + $0x10] sm:$0xff]
        %v3077 = vld [vmem:[#allocation2 + $0x18] sm:$0xff]
        %v3078 = vld [vmem:[#allocation2 + $0x20] sm:$0xff]
        %v3079 = vld [vmem:[#allocation2 + $0x28] sm:$0xff]
        %v3080 = vld [vmem:[#allocation2 + $0x30] sm:$0xff]
        %v3081 = vld [vmem:[#allocation2 + $0x38] sm:$0xff]
        %v3082 = vld [vmem:[#allocation2 + $0x40] sm:$0xff]
        %v3083 = vld [vmem:[#allocation2 + $0x48] sm:$0xff]
        %v3084 = vld [vmem:[#allocation2 + $0x50] sm:$0xff]
        %v3085 = vld [vmem:[#allocation2 + $0x58] sm:$0xff]
        %v3086 = vld [vmem:[#allocation2 + $0x60] sm:$0xff]
        %v3087 = vld [vmem:[#allocation2 + $0x68] sm:$0x3f]
        %v3088 = vpack.c.bf16 %v3075, %v3074
        %v3089 = vpack.c.bf16 %v3077, %v3076
        %v3090 = vpack.c.bf16 %v3079, %v3078
        %v3091 = vpack.c.bf16 %v3081, %v3080
        %v3092 = vpack.c.bf16 %v3083, %v3082
        %v3093 = vpack.c.bf16 %v3085, %v3084
        %v3094 = vpack.c.bf16 %v3087, %v3086
        %v3095 = vld [vmem:[#allocation7] sm:$0xf]
        %v3096 = vld [vmem:[#allocation7 + $0x4] sm:$0xf]
        %v3097 = vld [vmem:[#allocation7 + $0x8] sm:$0xf]
        %v3098 = vld [vmem:[#allocation7 + $0xc] sm:$0xf]
        %v3099 = vld [vmem:[#allocation7 + $0x10] sm:$0xf]
        %v3100 = vld [vmem:[#allocation7 + $0x14] sm:$0xf]
        %v3101 = vld [vmem:[#allocation7 + $0x18] sm:$0xf]
        %v3102 = vld [vmem:[#allocation7 + $0x1c] sm:$0xf]
        %v3103 = vld [vmem:[#allocation7 + $0x20] sm:$0xf]
        %v3104 = vld [vmem:[#allocation7 + $0x24] sm:$0xf]
        %v3105 = vld [vmem:[#allocation7 + $0x28] sm:$0xf]
        %v3106 = vld [vmem:[#allocation7 + $0x2c] sm:$0xf]
        %v3107 = vld [vmem:[#allocation7 + $0x30] sm:$0xf]
        %v3108 = vld [vmem:[#allocation7 + $0x34] sm:$0xf]
        %v3109 = vld [vmem:[#allocation7 + $0x38] sm:$0xf]
        %v3110 = vld [vmem:[#allocation7 + $0x3c] sm:$0xf]
        %s3111 = scalar_lea.vmem [#allocation7], 64
        %v3112 = vld [vmem:[%s3111] sm:$0xf]
        %v3113 = vld [vmem:[%s3111 + $0x4] sm:$0xf]
        %v3114 = vld [vmem:[%s3111 + $0x8] sm:$0xf]
        %v3115 = vld [vmem:[%s3111 + $0xc] sm:$0xf]
        %v3116 = vld [vmem:[%s3111 + $0x10] sm:$0xf]
        %v3117 = vld [vmem:[%s3111 + $0x14] sm:$0xf]
        %v3118 = vld [vmem:[%s3111 + $0x18] sm:$0xf]
        %v3119 = vld [vmem:[%s3111 + $0x1c] sm:$0xf]
        %v3120 = vld [vmem:[%s3111 + $0x20] sm:$0xf]
        %v3121 = vld [vmem:[%s3111 + $0x24] sm:$0xf]
        %v3122 = vld [vmem:[%s3111 + $0x28] sm:$0xf]
        %v3123 = vld [vmem:[%s3111 + $0x2c] sm:$0xf]
        %v3124 = vld [vmem:[%s3111 + $0x30] sm:$0xf]
        %v3125 = vld [vmem:[%s3111 + $0x34] sm:$0xf]
        %v3126 = vld [vmem:[%s3111 + $0x38] sm:$0xf]
        %v3127 = vld [vmem:[%s3111 + $0x3c] sm:$0xf]
        %v3129 = vshrl.u32 %v3088, 16
        %v3131 = vshll.u32 %v3088, 16
        %v3133 = vrot.slane %v3131, 1
        %v3134 = vor.u32 %v3129, %v3133
        %v3136 = vshll.u32 %v3089, 16
        %v3138 = vrot.slane %v3136, 1
        %v3139 = vsel %vm1498, %v3134, %v3138
        %v3140 = vshrl.u32 %v3089, 16
        %v3142 = vor.u32 %v3140, %v3138
        %v3144 = vshll.u32 %v3090, 16
        %v3146 = vrot.slane %v3144, 1
        %v3147 = vsel %vm1498, %v3142, %v3146
        %v3148 = vshrl.u32 %v3090, 16
        %v3150 = vor.u32 %v3148, %v3146
        %v3152 = vshll.u32 %v3091, 16
        %v3154 = vrot.slane %v3152, 1
        %v3155 = vsel %vm1498, %v3150, %v3154
        %v3156 = vshrl.u32 %v3091, 16
        %v3158 = vor.u32 %v3156, %v3154
        %v3160 = vshll.u32 %v3092, 16
        %v3162 = vrot.slane %v3160, 1
        %v3163 = vsel %vm1498, %v3158, %v3162
        %v3164 = vshrl.u32 %v3092, 16
        %v3166 = vor.u32 %v3164, %v3162
        %v3168 = vshll.u32 %v3093, 16
        %v3170 = vrot.slane %v3168, 1
        %v3171 = vsel %vm1498, %v3166, %v3170
        %v3193 = vunpack.c.l.b16 %v3112
        %v3194 = vunpack.c.l.b16 %v3113
        %v3195 = vunpack.c.l.b16 %v3114
        %v3196 = vunpack.c.l.b16 %v3115
        %v3197 = vunpack.c.l.b16 %v3116
        %v3198 = vunpack.c.l.b16 %v3117
        %v3199 = vunpack.c.l.b16 %v3118
        %v3200 = vunpack.c.l.b16 %v3119
        %v3201 = vunpack.c.l.b16 %v3120
        %v3202 = vunpack.c.l.b16 %v3121
        %v3203 = vunpack.c.l.b16 %v3122
        %v3204 = vunpack.c.l.b16 %v3123
        %v3205 = vunpack.c.l.b16 %v3124
        %v3206 = vunpack.c.l.b16 %v3125
        %v3207 = vunpack.c.l.b16 %v3126
        %v3208 = vunpack.c.l.b16 %v3127
        %v3209 = vpack.c.b16 %v3194, %v3193
        %v3210 = vpack.c.b16 %v3196, %v3195
        %v3211 = vpack.c.b16 %v3198, %v3197
        %v3212 = vpack.c.b16 %v3200, %v3199
        %v3213 = vpack.c.b16 %v3202, %v3201
        %v3214 = vpack.c.b16 %v3204, %v3203
        %v3215 = vpack.c.b16 %v3206, %v3205
        %v3216 = vpack.c.b16 %v3208, %v3207
        %3225 = vmatprep.subr.bf16.mxu0 0
        %3226 = vmatpush1.bf16.msra.mxu0 %v3209
        %3227 = vmatprep.subr.bf16.mxu0 0
        %3228 = vmatpush1.bf16.msra.mxu0 %v3210
        %3229 = vmatprep.subr.bf16.mxu0 0
        %3230 = vmatpush1.bf16.msra.mxu0 %v3211
        %3231 = vmatprep.subr.bf16.mxu0 0
        %3232 = vmatpush1.bf16.msra.mxu0 %v3212
        %3233 = vmatprep.subr.bf16.mxu0 0
        %3234 = vmatpush1.bf16.msra.mxu0 %v3213
        %3235 = vmatprep.subr.bf16.mxu0 0
        %3236 = vmatpush1.bf16.msra.mxu0 %v3214
        %3237 = vmatprep.subr.bf16.mxu0 0
        %3238 = vmatpush1.bf16.msra.mxu0 %v3215
        %3239 = vmatprep.subr.bf16.mxu0 0
        %3240 = vmatpush1.bf16.msra.mxu0 %v3216
        %3241 = vmatprep.subr.bf16.mxu0 0
        %3242 = vmatpush1.bf16.msra.mxu0 0
        %3243 = vmatprep.subr.bf16.mxu0 0
        %3244 = vmatpush1.bf16.msra.mxu0 0
        %3245 = vmatprep.subr.bf16.mxu0 0
        %3246 = vmatpush1.bf16.msra.mxu0 0
        %3247 = vmatprep.subr.bf16.mxu0 0
        %3248 = vmatpush1.bf16.msra.mxu0 0
        %3249 = vmatprep.subr.bf16.mxu0 0
        %3250 = vmatpush1.bf16.msra.mxu0 0
        %3251 = vmatprep.subr.bf16.mxu0 0
        %3252 = vmatpush1.bf16.msra.mxu0 0
        %3253 = vmatprep.subr.bf16.mxu0 0
        %3254 = vmatpush1.bf16.msra.mxu0 0
        %3255 = vmatprep.subr.bf16.mxu0 0
        %3256 = vmatpush1.bf16.msra.mxu0 0
        %3257 = vmatprep.mubr.bf16.mxu0 0
        %3258 = vmatmul.mubr.bf16.gmra.mrb[0].mxu0 %v3139
        %v3259 = vpop.f32.mrb[0].mxu0
        %v3260 = vadd.f32 0.0, %v3259
        %v3261 = vpop.f32.mrb[0].mxu0
        %v3262 = vpop.f32.mrb[0].mxu0
        %v3263 = vadd.f32 0.0, %v3262
        %v3264 = vpop.f32.mrb[0].mxu0
        %3265 = vmatprep.mubr.bf16.mxu0 0
        %3266 = vmatmul.mubr.bf16.gmra.mrb[0].mxu0 %v3147
        %v3267 = vpop.f32.mrb[0].mxu0
        %v3268 = vadd.f32 0.0, %v3267
        %v3269 = vpop.f32.mrb[0].mxu0
        %v3270 = vpop.f32.mrb[0].mxu0
        %v3271 = vadd.f32 0.0, %v3270
        %v3272 = vpop.f32.mrb[0].mxu0
        %3273 = vmatprep.mubr.bf16.mxu0 0
        %3274 = vmatmul.mubr.bf16.gmra.mrb[0].mxu0 %v3155
        %v3275 = vpop.f32.mrb[0].mxu0
        %v3276 = vadd.f32 0.0, %v3275
        %v3277 = vpop.f32.mrb[0].mxu0
        %v3278 = vpop.f32.mrb[0].mxu0
        %v3279 = vadd.f32 0.0, %v3278
        %v3280 = vpop.f32.mrb[0].mxu0
        %3281 = vmatprep.mubr.bf16.mxu0 0
        %3282 = vmatmul.mubr.bf16.gmra.mrb[0].mxu0 %v3163
        %v3283 = vpop.f32.mrb[0].mxu0
        %v3284 = vadd.f32 0.0, %v3283
        %v3285 = vpop.f32.mrb[0].mxu0
        %v3286 = vpop.f32.mrb[0].mxu0
        %v3287 = vadd.f32 0.0, %v3286
        %v3288 = vpop.f32.mrb[0].mxu0
        %3289 = vmatprep.mubr.bf16.mxu0 0
        %3290 = vmatmul.mubr.bf16.gmra.mrb[0].mxu0 %v3171
        %v3291 = vpop.f32.mrb[0].mxu0
        %v3292 = vadd.f32 0.0, %v3291
        %v3293 = vpop.f32.mrb[0].mxu0
        %v3294 = vpop.f32.mrb[0].mxu0
        %v3295 = vadd.f32 0.0, %v3294
        %v3296 = vpop.f32.mrb[0].mxu0
        %3297 = vdwg.mxu0
        %v3314 = vunpack.c.l.b16 %v3095
        %v3315 = vunpack.c.l.b16 %v3096
        %v3316 = vunpack.c.l.b16 %v3097
        %v3317 = vunpack.c.l.b16 %v3098
        %v3318 = vunpack.c.l.b16 %v3099
        %v3319 = vunpack.c.l.b16 %v3100
        %v3320 = vunpack.c.l.b16 %v3101
        %v3321 = vunpack.c.l.b16 %v3102
        %v3322 = vunpack.c.l.b16 %v3103
        %v3323 = vunpack.c.l.b16 %v3104
        %v3324 = vunpack.c.l.b16 %v3105
        %v3325 = vunpack.c.l.b16 %v3106
        %v3326 = vunpack.c.l.b16 %v3107
        %v3327 = vunpack.c.l.b16 %v3108
        %v3328 = vunpack.c.l.b16 %v3109
        %v3329 = vunpack.c.l.b16 %v3110
        %v3330 = vpack.c.b16 %v3315, %v3314
        %v3331 = vpack.c.b16 %v3317, %v3316
        %v3332 = vpack.c.b16 %v3319, %v3318
        %v3333 = vpack.c.b16 %v3321, %v3320
        %v3334 = vpack.c.b16 %v3323, %v3322
        %v3335 = vpack.c.b16 %v3325, %v3324
        %v3336 = vpack.c.b16 %v3327, %v3326
        %v3337 = vpack.c.b16 %v3329, %v3328
        %3346 = vmatprep.subr.bf16.mxu0 0
        %3347 = vmatpush1.bf16.msra.mxu0 %v3330
        %3348 = vmatprep.subr.bf16.mxu0 0
        %3349 = vmatpush1.bf16.msra.mxu0 %v3331
        %3350 = vmatprep.subr.bf16.mxu0 0
        %3351 = vmatpush1.bf16.msra.mxu0 %v3332
        %3352 = vmatprep.subr.bf16.mxu0 0
        %3353 = vmatpush1.bf16.msra.mxu0 %v3333
        %3354 = vmatprep.subr.bf16.mxu0 0
        %3355 = vmatpush1.bf16.msra.mxu0 %v3334
        %3356 = vmatprep.subr.bf16.mxu0 0
        %3357 = vmatpush1.bf16.msra.mxu0 %v3335
        %3358 = vmatprep.subr.bf16.mxu0 0
        %3359 = vmatpush1.bf16.msra.mxu0 %v3336
        %3360 = vmatprep.subr.bf16.mxu0 0
        %3361 = vmatpush1.bf16.msra.mxu0 %v3337
        %3362 = vmatprep.subr.bf16.mxu0 0
        %3363 = vmatpush1.bf16.msra.mxu0 0
        %3364 = vmatprep.subr.bf16.mxu0 0
        %3365 = vmatpush1.bf16.msra.mxu0 0
        %3366 = vmatprep.subr.bf16.mxu0 0
        %3367 = vmatpush1.bf16.msra.mxu0 0
        %3368 = vmatprep.subr.bf16.mxu0 0
        %3369 = vmatpush1.bf16.msra.mxu0 0
        %3370 = vmatprep.subr.bf16.mxu0 0
        %3371 = vmatpush1.bf16.msra.mxu0 0
        %3372 = vmatprep.subr.bf16.mxu0 0
        %3373 = vmatpush1.bf16.msra.mxu0 0
        %3374 = vmatprep.subr.bf16.mxu0 0
        %3375 = vmatpush1.bf16.msra.mxu0 0
        %3376 = vmatprep.subr.bf16.mxu0 0
        %3377 = vmatpush1.bf16.msra.mxu0 0
        %3378 = vmatprep.mubr.bf16.mxu0 0
        %3379 = vmatmul.mubr.bf16.gmra.mrb[0].mxu0 %v3088
        %v3380 = vpop.f32.mrb[0].mxu0
        %v3381 = vadd.f32 %v3260, %v3380
        %v3382 = vpop.f32.mrb[0].mxu0
        %v3383 = vpop.f32.mrb[0].mxu0
        %v3384 = vadd.f32 %v3263, %v3383
        %v3385 = vpop.f32.mrb[0].mxu0
        %3386 = vmatprep.mubr.bf16.mxu0 0
        %3387 = vmatmul.mubr.bf16.gmra.mrb[0].mxu0 %v3089
        %v3388 = vpop.f32.mrb[0].mxu0
        %v3389 = vadd.f32 %v3268, %v3388
        %v3390 = vpop.f32.mrb[0].mxu0
        %v3391 = vpop.f32.mrb[0].mxu0
        %v3392 = vadd.f32 %v3271, %v3391
        %v3393 = vpop.f32.mrb[0].mxu0
        %3394 = vmatprep.mubr.bf16.mxu0 0
        %3395 = vmatmul.mubr.bf16.gmra.mrb[0].mxu0 %v3090
        %v3396 = vpop.f32.mrb[0].mxu0
        %v3397 = vadd.f32 %v3276, %v3396
        %v3398 = vpop.f32.mrb[0].mxu0
        %v3399 = vpop.f32.mrb[0].mxu0
        %v3400 = vadd.f32 %v3279, %v3399
        %v3401 = vpop.f32.mrb[0].mxu0
        %3402 = vmatprep.mubr.bf16.mxu0 0
        %3403 = vmatmul.mubr.bf16.gmra.mrb[0].mxu0 %v3091
        %v3404 = vpop.f32.mrb[0].mxu0
        %v3405 = vadd.f32 %v3284, %v3404
        %v3406 = vpop.f32.mrb[0].mxu0
        %v3407 = vpop.f32.mrb[0].mxu0
        %v3408 = vadd.f32 %v3287, %v3407
        %v3409 = vpop.f32.mrb[0].mxu0
        %3410 = vmatprep.mubr.bf16.mxu0 0
        %3411 = vmatmul.mubr.bf16.gmra.mrb[0].mxu0 %v3092
        %v3412 = vpop.f32.mrb[0].mxu0
        %v3413 = vadd.f32 %v3292, %v3412
        %v3414 = vpop.f32.mrb[0].mxu0
        %v3415 = vpop.f32.mrb[0].mxu0
        %v3416 = vadd.f32 %v3295, %v3415
        %v3417 = vpop.f32.mrb[0].mxu0
        %3418 = vdwg.mxu0
        %s3419 = scalar_lea.vmem [#allocation7], 128
        %v3420 = vld [vmem:[%s3419] sm:$0xf]
        %v3421 = vld [vmem:[%s3419 + $0x4] sm:$0xf]
        %v3422 = vld [vmem:[%s3419 + $0x8] sm:$0xf]
        %v3423 = vld [vmem:[%s3419 + $0xc] sm:$0xf]
        %v3424 = vld [vmem:[%s3419 + $0x10] sm:$0xf]
        %v3425 = vld [vmem:[%s3419 + $0x14] sm:$0xf]
        %v3426 = vld [vmem:[%s3419 + $0x18] sm:$0xf]
        %v3427 = vld [vmem:[%s3419 + $0x1c] sm:$0xf]
        %v3428 = vld [vmem:[%s3419 + $0x20] sm:$0xf]
        %v3429 = vld [vmem:[%s3419 + $0x24] sm:$0xf]
        %v3430 = vld [vmem:[%s3419 + $0x28] sm:$0xf]
        %v3431 = vld [vmem:[%s3419 + $0x2c] sm:$0xf]
        %v3432 = vld [vmem:[%s3419 + $0x30] sm:$0xf]
        %v3433 = vld [vmem:[%s3419 + $0x34] sm:$0xf]
        %v3434 = vld [vmem:[%s3419 + $0x38] sm:$0xf]
        %v3435 = vld [vmem:[%s3419 + $0x3c] sm:$0xf]
        %v3442 = vrot.slane %v3088, 1
        %v3443 = vrot.slane %v3089, 1
        %v3444 = vsel %vm1785, %v3442, %v3443
        %v3445 = vrot.slane %v3090, 1
        %v3446 = vsel %vm1785, %v3443, %v3445
        %v3447 = vrot.slane %v3091, 1
        %v3448 = vsel %vm1785, %v3445, %v3447
        %v3449 = vrot.slane %v3092, 1
        %v3450 = vsel %vm1785, %v3447, %v3449
        %v3451 = vrot.slane %v3093, 1
        %v3452 = vsel %vm1785, %v3449, %v3451
        %v3474 = vunpack.c.l.b16 %v3420
        %v3475 = vunpack.c.l.b16 %v3421
        %v3476 = vunpack.c.l.b16 %v3422
        %v3477 = vunpack.c.l.b16 %v3423
        %v3478 = vunpack.c.l.b16 %v3424
        %v3479 = vunpack.c.l.b16 %v3425
        %v3480 = vunpack.c.l.b16 %v3426
        %v3481 = vunpack.c.l.b16 %v3427
        %v3482 = vunpack.c.l.b16 %v3428
        %v3483 = vunpack.c.l.b16 %v3429
        %v3484 = vunpack.c.l.b16 %v3430
        %v3485 = vunpack.c.l.b16 %v3431
        %v3486 = vunpack.c.l.b16 %v3432
        %v3487 = vunpack.c.l.b16 %v3433
        %v3488 = vunpack.c.l.b16 %v3434
        %v3489 = vunpack.c.l.b16 %v3435
        %v3490 = vpack.c.b16 %v3475, %v3474
        %v3491 = vpack.c.b16 %v3477, %v3476
        %v3492 = vpack.c.b16 %v3479, %v3478
        %v3493 = vpack.c.b16 %v3481, %v3480
        %v3494 = vpack.c.b16 %v3483, %v3482
        %v3495 = vpack.c.b16 %v3485, %v3484
        %v3496 = vpack.c.b16 %v3487, %v3486
        %v3497 = vpack.c.b16 %v3489, %v3488
        %3506 = vmatprep.subr.bf16.mxu0 0
        %3507 = vmatpush1.bf16.msra.mxu0 %v3490
        %3508 = vmatprep.subr.bf16.mxu0 0
        %3509 = vmatpush1.bf16.msra.mxu0 %v3491
        %3510 = vmatprep.subr.bf16.mxu0 0
        %3511 = vmatpush1.bf16.msra.mxu0 %v3492
        %3512 = vmatprep.subr.bf16.mxu0 0
        %3513 = vmatpush1.bf16.msra.mxu0 %v3493
        %3514 = vmatprep.subr.bf16.mxu0 0
        %3515 = vmatpush1.bf16.msra.mxu0 %v3494
        %3516 = vmatprep.subr.bf16.mxu0 0
        %3517 = vmatpush1.bf16.msra.mxu0 %v3495
        %3518 = vmatprep.subr.bf16.mxu0 0
        %3519 = vmatpush1.bf16.msra.mxu0 %v3496
        %3520 = vmatprep.subr.bf16.mxu0 0
        %3521 = vmatpush1.bf16.msra.mxu0 %v3497
        %3522 = vmatprep.subr.bf16.mxu0 0
        %3523 = vmatpush1.bf16.msra.mxu0 0
        %3524 = vmatprep.subr.bf16.mxu0 0
        %3525 = vmatpush1.bf16.msra.mxu0 0
        %3526 = vmatprep.subr.bf16.mxu0 0
        %3527 = vmatpush1.bf16.msra.mxu0 0
        %3528 = vmatprep.subr.bf16.mxu0 0
        %3529 = vmatpush1.bf16.msra.mxu0 0
        %3530 = vmatprep.subr.bf16.mxu0 0
        %3531 = vmatpush1.bf16.msra.mxu0 0
        %3532 = vmatprep.subr.bf16.mxu0 0
        %3533 = vmatpush1.bf16.msra.mxu0 0
        %3534 = vmatprep.subr.bf16.mxu0 0
        %3535 = vmatpush1.bf16.msra.mxu0 0
        %3536 = vmatprep.subr.bf16.mxu0 0
        %3537 = vmatpush1.bf16.msra.mxu0 0
        %3538 = vmatprep.mubr.bf16.mxu0 0
        %3539 = vmatmul.mubr.bf16.gmra.mrb[0].mxu0 %v3444
        %v3540 = vpop.f32.mrb[0].mxu0
        %v3541 = vadd.f32 0.0, %v3540
        %v3542 = vpop.f32.mrb[0].mxu0
        %v3543 = vpop.f32.mrb[0].mxu0
        %v3544 = vadd.f32 0.0, %v3543
        %v3545 = vpop.f32.mrb[0].mxu0
        %3546 = vmatprep.mubr.bf16.mxu0 0
        %3547 = vmatmul.mubr.bf16.gmra.mrb[0].mxu0 %v3446
        %v3548 = vpop.f32.mrb[0].mxu0
        %v3549 = vadd.f32 0.0, %v3548
        %v3550 = vpop.f32.mrb[0].mxu0
        %v3551 = vpop.f32.mrb[0].mxu0
        %v3552 = vadd.f32 0.0, %v3551
        %v3553 = vpop.f32.mrb[0].mxu0
        %3554 = vmatprep.mubr.bf16.mxu0 0
        %3555 = vmatmul.mubr.bf16.gmra.mrb[0].mxu0 %v3448
        %v3556 = vpop.f32.mrb[0].mxu0
        %v3557 = vadd.f32 0.0, %v3556
        %v3558 = vpop.f32.mrb[0].mxu0
        %v3559 = vpop.f32.mrb[0].mxu0
        %v3560 = vadd.f32 0.0, %v3559
        %v3561 = vpop.f32.mrb[0].mxu0
        %3562 = vmatprep.mubr.bf16.mxu0 0
        %3563 = vmatmul.mubr.bf16.gmra.mrb[0].mxu0 %v3450
        %v3564 = vpop.f32.mrb[0].mxu0
        %v3565 = vadd.f32 0.0, %v3564
        %v3566 = vpop.f32.mrb[0].mxu0
        %v3567 = vpop.f32.mrb[0].mxu0
        %v3568 = vadd.f32 0.0, %v3567
        %v3569 = vpop.f32.mrb[0].mxu0
        %3570 = vmatprep.mubr.bf16.mxu0 0
        %3571 = vmatmul.mubr.bf16.gmra.mrb[0].mxu0 %v3452
        %v3572 = vpop.f32.mrb[0].mxu0
        %v3573 = vadd.f32 0.0, %v3572
        %v3574 = vpop.f32.mrb[0].mxu0
        %v3575 = vpop.f32.mrb[0].mxu0
        %v3576 = vadd.f32 0.0, %v3575
        %v3577 = vpop.f32.mrb[0].mxu0
        %3578 = vdwg.mxu0
        %v3579 = vadd.f32 %v3381, %v3541
        %v3580 = vadd.f32 %v3384, %v3544
        %v3581 = vadd.f32 %v3389, %v3549
        %v3582 = vadd.f32 %v3392, %v3552
        %v3583 = vadd.f32 %v3397, %v3557
        %v3584 = vadd.f32 %v3400, %v3560
        %v3585 = vadd.f32 %v3405, %v3565
        %v3586 = vadd.f32 %v3408, %v3568
        %v3587 = vadd.f32 %v3413, %v3573
        %v3588 = vadd.f32 %v3416, %v3576
        %s3589 = scalar_lea.vmem [#allocation7], 192
        %v3590 = vld [vmem:[%s3589] sm:$0xf]
        %v3591 = vld [vmem:[%s3589 + $0x4] sm:$0xf]
        %v3592 = vld [vmem:[%s3589 + $0x8] sm:$0xf]
        %v3593 = vld [vmem:[%s3589 + $0xc] sm:$0xf]
        %v3594 = vld [vmem:[%s3589 + $0x10] sm:$0xf]
        %v3595 = vld [vmem:[%s3589 + $0x14] sm:$0xf]
        %v3596 = vld [vmem:[%s3589 + $0x18] sm:$0xf]
        %v3597 = vld [vmem:[%s3589 + $0x1c] sm:$0xf]
        %v3598 = vld [vmem:[%s3589 + $0x20] sm:$0xf]
        %v3599 = vld [vmem:[%s3589 + $0x24] sm:$0xf]
        %v3600 = vld [vmem:[%s3589 + $0x28] sm:$0xf]
        %v3601 = vld [vmem:[%s3589 + $0x2c] sm:$0xf]
        %v3602 = vld [vmem:[%s3589 + $0x30] sm:$0xf]
        %v3603 = vld [vmem:[%s3589 + $0x34] sm:$0xf]
        %v3604 = vld [vmem:[%s3589 + $0x38] sm:$0xf]
        %v3605 = vld [vmem:[%s3589 + $0x3c] sm:$0xf]
        %v3606 = vrot.slane %v3088, 5
        %v3607 = vrot.slane %v3089, 5
        %v3608 = vsel %vm1950, %v3606, %v3607
        %v3609 = vrot.slane %v3090, 5
        %v3610 = vsel %vm1950, %v3607, %v3609
        %v3611 = vrot.slane %v3091, 5
        %v3612 = vsel %vm1950, %v3609, %v3611
        %v3613 = vrot.slane %v3092, 5
        %v3614 = vsel %vm1950, %v3611, %v3613
        %v3615 = vrot.slane %v3093, 5
        %v3616 = vsel %vm1950, %v3613, %v3615
        %v3638 = vunpack.c.l.b16 %v3590
        %v3639 = vunpack.c.l.b16 %v3591
        %v3640 = vunpack.c.l.b16 %v3592
        %v3641 = vunpack.c.l.b16 %v3593
        %v3642 = vunpack.c.l.b16 %v3594
        %v3643 = vunpack.c.l.b16 %v3595
        %v3644 = vunpack.c.l.b16 %v3596
        %v3645 = vunpack.c.l.b16 %v3597
        %v3646 = vunpack.c.l.b16 %v3598
        %v3647 = vunpack.c.l.b16 %v3599
        %v3648 = vunpack.c.l.b16 %v3600
        %v3649 = vunpack.c.l.b16 %v3601
        %v3650 = vunpack.c.l.b16 %v3602
        %v3651 = vunpack.c.l.b16 %v3603
        %v3652 = vunpack.c.l.b16 %v3604
        %v3653 = vunpack.c.l.b16 %v3605
        %v3654 = vpack.c.b16 %v3639, %v3638
        %v3655 = vpack.c.b16 %v3641, %v3640
        %v3656 = vpack.c.b16 %v3643, %v3642
        %v3657 = vpack.c.b16 %v3645, %v3644
        %v3658 = vpack.c.b16 %v3647, %v3646
        %v3659 = vpack.c.b16 %v3649, %v3648
        %v3660 = vpack.c.b16 %v3651, %v3650
        %v3661 = vpack.c.b16 %v3653, %v3652
        %3670 = vmatprep.subr.bf16.mxu0 0
        %3671 = vmatpush1.bf16.msra.mxu0 %v3654
        %3672 = vmatprep.subr.bf16.mxu0 0
        %3673 = vmatpush1.bf16.msra.mxu0 %v3655
        %3674 = vmatprep.subr.bf16.mxu0 0
        %3675 = vmatpush1.bf16.msra.mxu0 %v3656
        %3676 = vmatprep.subr.bf16.mxu0 0
        %3677 = vmatpush1.bf16.msra.mxu0 %v3657
        %3678 = vmatprep.subr.bf16.mxu0 0
        %3679 = vmatpush1.bf16.msra.mxu0 %v3658
        %3680 = vmatprep.subr.bf16.mxu0 0
        %3681 = vmatpush1.bf16.msra.mxu0 %v3659
        %3682 = vmatprep.subr.bf16.mxu0 0
        %3683 = vmatpush1.bf16.msra.mxu0 %v3660
        %3684 = vmatprep.subr.bf16.mxu0 0
        %3685 = vmatpush1.bf16.msra.mxu0 %v3661
        %3686 = vmatprep.subr.bf16.mxu0 0
        %3687 = vmatpush1.bf16.msra.mxu0 0
        %3688 = vmatprep.subr.bf16.mxu0 0
        %3689 = vmatpush1.bf16.msra.mxu0 0
        %3690 = vmatprep.subr.bf16.mxu0 0
        %3691 = vmatpush1.bf16.msra.mxu0 0
        %3692 = vmatprep.subr.bf16.mxu0 0
        %3693 = vmatpush1.bf16.msra.mxu0 0
        %3694 = vmatprep.subr.bf16.mxu0 0
        %3695 = vmatpush1.bf16.msra.mxu0 0
        %3696 = vmatprep.subr.bf16.mxu0 0
        %3697 = vmatpush1.bf16.msra.mxu0 0
        %3698 = vmatprep.subr.bf16.mxu0 0
        %3699 = vmatpush1.bf16.msra.mxu0 0
        %3700 = vmatprep.subr.bf16.mxu0 0
        %3701 = vmatpush1.bf16.msra.mxu0 0
        %3702 = vmatprep.mubr.bf16.mxu0 0
        %3703 = vmatmul.mubr.bf16.gmra.mrb[0].mxu0 %v3608
        %v3704 = vpop.f32.mrb[0].mxu0
        %v3705 = vadd.f32 0.0, %v3704
        %v3706 = vpop.f32.mrb[0].mxu0
        %v3707 = vpop.f32.mrb[0].mxu0
        %v3708 = vadd.f32 0.0, %v3707
        %v3709 = vpop.f32.mrb[0].mxu0
        %3710 = vmatprep.mubr.bf16.mxu0 0
        %3711 = vmatmul.mubr.bf16.gmra.mrb[0].mxu0 %v3610
        %v3712 = vpop.f32.mrb[0].mxu0
        %v3713 = vadd.f32 0.0, %v3712
        %v3714 = vpop.f32.mrb[0].mxu0
        %v3715 = vpop.f32.mrb[0].mxu0
        %v3716 = vadd.f32 0.0, %v3715
        %v3717 = vpop.f32.mrb[0].mxu0
        %3718 = vmatprep.mubr.bf16.mxu0 0
        %3719 = vmatmul.mubr.bf16.gmra.mrb[0].mxu0 %v3612
        %v3720 = vpop.f32.mrb[0].mxu0
        %v3721 = vadd.f32 0.0, %v3720
        %v3722 = vpop.f32.mrb[0].mxu0
        %v3723 = vpop.f32.mrb[0].mxu0
        %v3724 = vadd.f32 0.0, %v3723
        %v3725 = vpop.f32.mrb[0].mxu0
        %3726 = vmatprep.mubr.bf16.mxu0 0
        %3727 = vmatmul.mubr.bf16.gmra.mrb[0].mxu0 %v3614
        %v3728 = vpop.f32.mrb[0].mxu0
        %v3729 = vadd.f32 0.0, %v3728
        %v3730 = vpop.f32.mrb[0].mxu0
        %v3731 = vpop.f32.mrb[0].mxu0
        %v3732 = vadd.f32 0.0, %v3731
        %v3733 = vpop.f32.mrb[0].mxu0
        %3734 = vmatprep.mubr.bf16.mxu0 0
        %3735 = vmatmul.mubr.bf16.gmra.mrb[0].mxu0 %v3616
        %v3736 = vpop.f32.mrb[0].mxu0
        %v3737 = vadd.f32 0.0, %v3736
        %v3738 = vpop.f32.mrb[0].mxu0
        %v3739 = vpop.f32.mrb[0].mxu0
        %v3740 = vadd.f32 0.0, %v3739
        %v3741 = vpop.f32.mrb[0].mxu0
        %3742 = vdwg.mxu0
        %v3743 = vadd.f32 %v3579, %v3705
        %v3744 = vadd.f32 %v3580, %v3708
        %v3745 = vadd.f32 %v3581, %v3713
        %v3746 = vadd.f32 %v3582, %v3716
        %v3747 = vadd.f32 %v3583, %v3721
        %v3748 = vadd.f32 %v3584, %v3724
        %v3749 = vadd.f32 %v3585, %v3729
        %v3750 = vadd.f32 %v3586, %v3732
        %v3751 = vadd.f32 %v3587, %v3737
        %v3752 = vadd.f32 %v3588, %v3740
        %s3753 = scalar_lea.vmem [#allocation7], 256
        %v3754 = vld [vmem:[%s3753] sm:$0xf]
        %v3755 = vld [vmem:[%s3753 + $0x4] sm:$0xf]
        %v3756 = vld [vmem:[%s3753 + $0x8] sm:$0xf]
        %v3757 = vld [vmem:[%s3753 + $0xc] sm:$0xf]
        %v3758 = vld [vmem:[%s3753 + $0x10] sm:$0xf]
        %v3759 = vld [vmem:[%s3753 + $0x14] sm:$0xf]
        %v3760 = vld [vmem:[%s3753 + $0x18] sm:$0xf]
        %v3761 = vld [vmem:[%s3753 + $0x1c] sm:$0xf]
        %v3762 = vld [vmem:[%s3753 + $0x20] sm:$0xf]
        %v3763 = vld [vmem:[%s3753 + $0x24] sm:$0xf]
        %v3764 = vld [vmem:[%s3753 + $0x28] sm:$0xf]
        %v3765 = vld [vmem:[%s3753 + $0x2c] sm:$0xf]
        %v3766 = vld [vmem:[%s3753 + $0x30] sm:$0xf]
        %v3767 = vld [vmem:[%s3753 + $0x34] sm:$0xf]
        %v3768 = vld [vmem:[%s3753 + $0x38] sm:$0xf]
        %v3769 = vld [vmem:[%s3753 + $0x3c] sm:$0xf]
        %v3770 = vrot.slane %v3129, 5
        %v3771 = vrot.slane %v3131, 6
        %v3772 = vor.u32 %v3770, %v3771
        %v3773 = vrot.slane %v3140, 5
        %v3774 = vrot.slane %v3136, 6
        %v3775 = vor.u32 %v3773, %v3774
        %v3776 = vsel %vm1150, %v3772, %v3775
        %v3777 = vrot.slane %v3148, 5
        %v3778 = vrot.slane %v3144, 6
        %v3779 = vor.u32 %v3777, %v3778
        %v3780 = vsel %vm1150, %v3775, %v3779
        %v3781 = vrot.slane %v3156, 5
        %v3782 = vrot.slane %v3152, 6
        %v3783 = vor.u32 %v3781, %v3782
        %v3784 = vsel %vm1150, %v3779, %v3783
        %v3785 = vrot.slane %v3164, 5
        %v3786 = vrot.slane %v3160, 6
        %v3787 = vor.u32 %v3785, %v3786
        %v3788 = vsel %vm1150, %v3783, %v3787
        %v3789 = vshrl.u32 %v3093, 16
        %v3791 = vrot.slane %v3789, 5
        %v3792 = vrot.slane %v3168, 6
        %v3793 = vor.u32 %v3791, %v3792
        %v3794 = vsel %vm1150, %v3787, %v3793
        %v3816 = vunpack.c.l.b16 %v3754
        %v3817 = vunpack.c.l.b16 %v3755
        %v3818 = vunpack.c.l.b16 %v3756
        %v3819 = vunpack.c.l.b16 %v3757
        %v3820 = vunpack.c.l.b16 %v3758
        %v3821 = vunpack.c.l.b16 %v3759
        %v3822 = vunpack.c.l.b16 %v3760
        %v3823 = vunpack.c.l.b16 %v3761
        %v3824 = vunpack.c.l.b16 %v3762
        %v3825 = vunpack.c.l.b16 %v3763
        %v3826 = vunpack.c.l.b16 %v3764
        %v3827 = vunpack.c.l.b16 %v3765
        %v3828 = vunpack.c.l.b16 %v3766
        %v3829 = vunpack.c.l.b16 %v3767
        %v3830 = vunpack.c.l.b16 %v3768
        %v3831 = vunpack.c.l.b16 %v3769
        %v3832 = vpack.c.b16 %v3817, %v3816
        %v3833 = vpack.c.b16 %v3819, %v3818
        %v3834 = vpack.c.b16 %v3821, %v3820
        %v3835 = vpack.c.b16 %v3823, %v3822
        %v3836 = vpack.c.b16 %v3825, %v3824
        %v3837 = vpack.c.b16 %v3827, %v3826
        %v3838 = vpack.c.b16 %v3829, %v3828
        %v3839 = vpack.c.b16 %v3831, %v3830
        %3848 = vmatprep.subr.bf16.mxu0 0
        %3849 = vmatpush1.bf16.msra.mxu0 %v3832
        %3850 = vmatprep.subr.bf16.mxu0 0
        %3851 = vmatpush1.bf16.msra.mxu0 %v3833
        %3852 = vmatprep.subr.bf16.mxu0 0
        %3853 = vmatpush1.bf16.msra.mxu0 %v3834
        %3854 = vmatprep.subr.bf16.mxu0 0
        %3855 = vmatpush1.bf16.msra.mxu0 %v3835
        %3856 = vmatprep.subr.bf16.mxu0 0
        %3857 = vmatpush1.bf16.msra.mxu0 %v3836
        %3858 = vmatprep.subr.bf16.mxu0 0
        %3859 = vmatpush1.bf16.msra.mxu0 %v3837
        %3860 = vmatprep.subr.bf16.mxu0 0
        %3861 = vmatpush1.bf16.msra.mxu0 %v3838
        %3862 = vmatprep.subr.bf16.mxu0 0
        %3863 = vmatpush1.bf16.msra.mxu0 %v3839
        %3864 = vmatprep.subr.bf16.mxu0 0
        %3865 = vmatpush1.bf16.msra.mxu0 0
        %3866 = vmatprep.subr.bf16.mxu0 0
        %3867 = vmatpush1.bf16.msra.mxu0 0
        %3868 = vmatprep.subr.bf16.mxu0 0
        %3869 = vmatpush1.bf16.msra.mxu0 0
        %3870 = vmatprep.subr.bf16.mxu0 0
        %3871 = vmatpush1.bf16.msra.mxu0 0
        %3872 = vmatprep.subr.bf16.mxu0 0
        %3873 = vmatpush1.bf16.msra.mxu0 0
        %3874 = vmatprep.subr.bf16.mxu0 0
        %3875 = vmatpush1.bf16.msra.mxu0 0
        %3876 = vmatprep.subr.bf16.mxu0 0
        %3877 = vmatpush1.bf16.msra.mxu0 0
        %3878 = vmatprep.subr.bf16.mxu0 0
        %3879 = vmatpush1.bf16.msra.mxu0 0
        %3880 = vmatprep.mubr.bf16.mxu0 0
        %3881 = vmatmul.mubr.bf16.gmra.mrb[0].mxu0 %v3776
        %v3882 = vpop.f32.mrb[0].mxu0
        %v3883 = vadd.f32 0.0, %v3882
        %v3884 = vpop.f32.mrb[0].mxu0
        %v3885 = vpop.f32.mrb[0].mxu0
        %v3886 = vadd.f32 0.0, %v3885
        %v3887 = vpop.f32.mrb[0].mxu0
        %3888 = vmatprep.mubr.bf16.mxu0 0
        %3889 = vmatmul.mubr.bf16.gmra.mrb[0].mxu0 %v3780
        %v3890 = vpop.f32.mrb[0].mxu0
        %v3891 = vadd.f32 0.0, %v3890
        %v3892 = vpop.f32.mrb[0].mxu0
        %v3893 = vpop.f32.mrb[0].mxu0
        %v3894 = vadd.f32 0.0, %v3893
        %v3895 = vpop.f32.mrb[0].mxu0
        %3896 = vmatprep.mubr.bf16.mxu0 0
        %3897 = vmatmul.mubr.bf16.gmra.mrb[0].mxu0 %v3784
        %v3898 = vpop.f32.mrb[0].mxu0
        %v3899 = vadd.f32 0.0, %v3898
        %v3900 = vpop.f32.mrb[0].mxu0
        %v3901 = vpop.f32.mrb[0].mxu0
        %v3902 = vadd.f32 0.0, %v3901
        %v3903 = vpop.f32.mrb[0].mxu0
        %3904 = vmatprep.mubr.bf16.mxu0 0
        %3905 = vmatmul.mubr.bf16.gmra.mrb[0].mxu0 %v3788
        %v3906 = vpop.f32.mrb[0].mxu0
        %v3907 = vadd.f32 0.0, %v3906
        %v3908 = vpop.f32.mrb[0].mxu0
        %v3909 = vpop.f32.mrb[0].mxu0
        %v3910 = vadd.f32 0.0, %v3909
        %v3911 = vpop.f32.mrb[0].mxu0
        %3912 = vmatprep.mubr.bf16.mxu0 0
        %3913 = vmatmul.mubr.bf16.gmra.mrb[0].mxu0 %v3794
        %v3914 = vpop.f32.mrb[0].mxu0
        %v3915 = vadd.f32 0.0, %v3914
        %v3916 = vpop.f32.mrb[0].mxu0
        %v3917 = vpop.f32.mrb[0].mxu0
        %v3918 = vadd.f32 0.0, %v3917
        %v3919 = vpop.f32.mrb[0].mxu0
        %3920 = vdwg.mxu0
        %v3921 = vadd.f32 %v3743, %v3883
        %v3922 = vadd.f32 %v3744, %v3886
        %v3923 = vadd.f32 %v3745, %v3891
        %v3924 = vadd.f32 %v3746, %v3894
        %v3925 = vadd.f32 %v3747, %v3899
        %v3926 = vadd.f32 %v3748, %v3902
        %v3927 = vadd.f32 %v3749, %v3907
        %v3928 = vadd.f32 %v3750, %v3910
        %v3929 = vadd.f32 %v3751, %v3915
        %v3930 = vadd.f32 %v3752, %v3918
        %s3931 = scalar_lea.vmem [#allocation7], 320
        %v3932 = vld [vmem:[%s3931] sm:$0xf]
        %v3933 = vld [vmem:[%s3931 + $0x4] sm:$0xf]
        %v3934 = vld [vmem:[%s3931 + $0x8] sm:$0xf]
        %v3935 = vld [vmem:[%s3931 + $0xc] sm:$0xf]
        %v3936 = vld [vmem:[%s3931 + $0x10] sm:$0xf]
        %v3937 = vld [vmem:[%s3931 + $0x14] sm:$0xf]
        %v3938 = vld [vmem:[%s3931 + $0x18] sm:$0xf]
        %v3939 = vld [vmem:[%s3931 + $0x1c] sm:$0xf]
        %v3940 = vld [vmem:[%s3931 + $0x20] sm:$0xf]
        %v3941 = vld [vmem:[%s3931 + $0x24] sm:$0xf]
        %v3942 = vld [vmem:[%s3931 + $0x28] sm:$0xf]
        %v3943 = vld [vmem:[%s3931 + $0x2c] sm:$0xf]
        %v3944 = vld [vmem:[%s3931 + $0x30] sm:$0xf]
        %v3945 = vld [vmem:[%s3931 + $0x34] sm:$0xf]
        %v3946 = vld [vmem:[%s3931 + $0x38] sm:$0xf]
        %v3947 = vld [vmem:[%s3931 + $0x3c] sm:$0xf]
        %v3948 = vrot.slane %v3088, 6
        %v3949 = vrot.slane %v3089, 6
        %v3950 = vsel %vm2263, %v3948, %v3949
        %v3951 = vrot.slane %v3090, 6
        %v3952 = vsel %vm2263, %v3949, %v3951
        %v3953 = vrot.slane %v3091, 6
        %v3954 = vsel %vm2263, %v3951, %v3953
        %v3955 = vrot.slane %v3092, 6
        %v3956 = vsel %vm2263, %v3953, %v3955
        %v3957 = vrot.slane %v3093, 6
        %v3958 = vsel %vm2263, %v3955, %v3957
        %v3980 = vunpack.c.l.b16 %v3932
        %v3981 = vunpack.c.l.b16 %v3933
        %v3982 = vunpack.c.l.b16 %v3934
        %v3983 = vunpack.c.l.b16 %v3935
        %v3984 = vunpack.c.l.b16 %v3936
        %v3985 = vunpack.c.l.b16 %v3937
        %v3986 = vunpack.c.l.b16 %v3938
        %v3987 = vunpack.c.l.b16 %v3939
        %v3988 = vunpack.c.l.b16 %v3940
        %v3989 = vunpack.c.l.b16 %v3941
        %v3990 = vunpack.c.l.b16 %v3942
        %v3991 = vunpack.c.l.b16 %v3943
        %v3992 = vunpack.c.l.b16 %v3944
        %v3993 = vunpack.c.l.b16 %v3945
        %v3994 = vunpack.c.l.b16 %v3946
        %v3995 = vunpack.c.l.b16 %v3947
        %v3996 = vpack.c.b16 %v3981, %v3980
        %v3997 = vpack.c.b16 %v3983, %v3982
        %v3998 = vpack.c.b16 %v3985, %v3984
        %v3999 = vpack.c.b16 %v3987, %v3986
        %v4000 = vpack.c.b16 %v3989, %v3988
        %v4001 = vpack.c.b16 %v3991, %v3990
        %v4002 = vpack.c.b16 %v3993, %v3992
        %v4003 = vpack.c.b16 %v3995, %v3994
        %4012 = vmatprep.subr.bf16.mxu0 0
        %4013 = vmatpush1.bf16.msra.mxu0 %v3996
        %4014 = vmatprep.subr.bf16.mxu0 0
        %4015 = vmatpush1.bf16.msra.mxu0 %v3997
        %4016 = vmatprep.subr.bf16.mxu0 0
        %4017 = vmatpush1.bf16.msra.mxu0 %v3998
        %4018 = vmatprep.subr.bf16.mxu0 0
        %4019 = vmatpush1.bf16.msra.mxu0 %v3999
        %4020 = vmatprep.subr.bf16.mxu0 0
        %4021 = vmatpush1.bf16.msra.mxu0 %v4000
        %4022 = vmatprep.subr.bf16.mxu0 0
        %4023 = vmatpush1.bf16.msra.mxu0 %v4001
        %4024 = vmatprep.subr.bf16.mxu0 0
        %4025 = vmatpush1.bf16.msra.mxu0 %v4002
        %4026 = vmatprep.subr.bf16.mxu0 0
        %4027 = vmatpush1.bf16.msra.mxu0 %v4003
        %4028 = vmatprep.subr.bf16.mxu0 0
        %4029 = vmatpush1.bf16.msra.mxu0 0
        %4030 = vmatprep.subr.bf16.mxu0 0
        %4031 = vmatpush1.bf16.msra.mxu0 0
        %4032 = vmatprep.subr.bf16.mxu0 0
        %4033 = vmatpush1.bf16.msra.mxu0 0
        %4034 = vmatprep.subr.bf16.mxu0 0
        %4035 = vmatpush1.bf16.msra.mxu0 0
        %4036 = vmatprep.subr.bf16.mxu0 0
        %4037 = vmatpush1.bf16.msra.mxu0 0
        %4038 = vmatprep.subr.bf16.mxu0 0
        %4039 = vmatpush1.bf16.msra.mxu0 0
        %4040 = vmatprep.subr.bf16.mxu0 0
        %4041 = vmatpush1.bf16.msra.mxu0 0
        %4042 = vmatprep.subr.bf16.mxu0 0
        %4043 = vmatpush1.bf16.msra.mxu0 0
        %4044 = vmatprep.mubr.bf16.mxu0 0
        %4045 = vmatmul.mubr.bf16.gmra.mrb[0].mxu0 %v3950
        %v4046 = vpop.f32.mrb[0].mxu0
        %v4047 = vadd.f32 0.0, %v4046
        %v4048 = vpop.f32.mrb[0].mxu0
        %v4049 = vpop.f32.mrb[0].mxu0
        %v4050 = vadd.f32 0.0, %v4049
        %v4051 = vpop.f32.mrb[0].mxu0
        %4052 = vmatprep.mubr.bf16.mxu0 0
        %4053 = vmatmul.mubr.bf16.gmra.mrb[0].mxu0 %v3952
        %v4054 = vpop.f32.mrb[0].mxu0
        %v4055 = vadd.f32 0.0, %v4054
        %v4056 = vpop.f32.mrb[0].mxu0
        %v4057 = vpop.f32.mrb[0].mxu0
        %v4058 = vadd.f32 0.0, %v4057
        %v4059 = vpop.f32.mrb[0].mxu0
        %4060 = vmatprep.mubr.bf16.mxu0 0
        %4061 = vmatmul.mubr.bf16.gmra.mrb[0].mxu0 %v3954
        %v4062 = vpop.f32.mrb[0].mxu0
        %v4063 = vadd.f32 0.0, %v4062
        %v4064 = vpop.f32.mrb[0].mxu0
        %v4065 = vpop.f32.mrb[0].mxu0
        %v4066 = vadd.f32 0.0, %v4065
        %v4067 = vpop.f32.mrb[0].mxu0
        %4068 = vmatprep.mubr.bf16.mxu0 0
        %4069 = vmatmul.mubr.bf16.gmra.mrb[0].mxu0 %v3956
        %v4070 = vpop.f32.mrb[0].mxu0
        %v4071 = vadd.f32 0.0, %v4070
        %v4072 = vpop.f32.mrb[0].mxu0
        %v4073 = vpop.f32.mrb[0].mxu0
        %v4074 = vadd.f32 0.0, %v4073
        %v4075 = vpop.f32.mrb[0].mxu0
        %4076 = vmatprep.mubr.bf16.mxu0 0
        %4077 = vmatmul.mubr.bf16.gmra.mrb[0].mxu0 %v3958
        %v4078 = vpop.f32.mrb[0].mxu0
        %v4079 = vadd.f32 0.0, %v4078
        %v4080 = vpop.f32.mrb[0].mxu0
        %v4081 = vpop.f32.mrb[0].mxu0
        %v4082 = vadd.f32 0.0, %v4081
        %v4083 = vpop.f32.mrb[0].mxu0
        %4084 = vdwg.mxu0
        %v4085 = vadd.f32 %v3921, %v4047
        %v4086 = vadd.f32 %v3922, %v4050
        %v4087 = vadd.f32 %v3923, %v4055
        %v4088 = vadd.f32 %v3924, %v4058
        %v4089 = vadd.f32 %v3925, %v4063
        %v4090 = vadd.f32 %v3926, %v4066
        %v4091 = vadd.f32 %v3927, %v4071
        %v4092 = vadd.f32 %v3928, %v4074
        %v4093 = vadd.f32 %v3929, %v4079
        %v4094 = vadd.f32 %v3930, %v4082
        %s4095 = scalar_lea.vmem [#allocation7], 384
        %v4096 = vld [vmem:[%s4095] sm:$0xf]
        %v4097 = vld [vmem:[%s4095 + $0x4] sm:$0xf]
        %v4098 = vld [vmem:[%s4095 + $0x8] sm:$0xf]
        %v4099 = vld [vmem:[%s4095 + $0xc] sm:$0xf]
        %v4100 = vld [vmem:[%s4095 + $0x10] sm:$0xf]
        %v4101 = vld [vmem:[%s4095 + $0x14] sm:$0xf]
        %v4102 = vld [vmem:[%s4095 + $0x18] sm:$0xf]
        %v4103 = vld [vmem:[%s4095 + $0x1c] sm:$0xf]
        %v4104 = vld [vmem:[%s4095 + $0x20] sm:$0xf]
        %v4105 = vld [vmem:[%s4095 + $0x24] sm:$0xf]
        %v4106 = vld [vmem:[%s4095 + $0x28] sm:$0xf]
        %v4107 = vld [vmem:[%s4095 + $0x2c] sm:$0xf]
        %v4108 = vld [vmem:[%s4095 + $0x30] sm:$0xf]
        %v4109 = vld [vmem:[%s4095 + $0x34] sm:$0xf]
        %v4110 = vld [vmem:[%s4095 + $0x38] sm:$0xf]
        %v4111 = vld [vmem:[%s4095 + $0x3c] sm:$0xf]
        %v4113 = vrot.slane %v3089, 2
        %v4114 = vrot.slane %v3090, 2
        %v4115 = vsel %vm2429, %v4113, %v4114
        %v4116 = vrot.slane %v3091, 2
        %v4117 = vsel %vm2429, %v4114, %v4116
        %v4118 = vrot.slane %v3092, 2
        %v4119 = vsel %vm2429, %v4116, %v4118
        %v4120 = vrot.slane %v3093, 2
        %v4121 = vsel %vm2429, %v4118, %v4120
        %v4122 = vrot.slane %v3094, 2
        %v4123 = vsel %vm2429, %v4120, %v4122
        %v4145 = vunpack.c.l.b16 %v4096
        %v4146 = vunpack.c.l.b16 %v4097
        %v4147 = vunpack.c.l.b16 %v4098
        %v4148 = vunpack.c.l.b16 %v4099
        %v4149 = vunpack.c.l.b16 %v4100
        %v4150 = vunpack.c.l.b16 %v4101
        %v4151 = vunpack.c.l.b16 %v4102
        %v4152 = vunpack.c.l.b16 %v4103
        %v4153 = vunpack.c.l.b16 %v4104
        %v4154 = vunpack.c.l.b16 %v4105
        %v4155 = vunpack.c.l.b16 %v4106
        %v4156 = vunpack.c.l.b16 %v4107
        %v4157 = vunpack.c.l.b16 %v4108
        %v4158 = vunpack.c.l.b16 %v4109
        %v4159 = vunpack.c.l.b16 %v4110
        %v4160 = vunpack.c.l.b16 %v4111
        %v4161 = vpack.c.b16 %v4146, %v4145
        %v4162 = vpack.c.b16 %v4148, %v4147
        %v4163 = vpack.c.b16 %v4150, %v4149
        %v4164 = vpack.c.b16 %v4152, %v4151
        %v4165 = vpack.c.b16 %v4154, %v4153
        %v4166 = vpack.c.b16 %v4156, %v4155
        %v4167 = vpack.c.b16 %v4158, %v4157
        %v4168 = vpack.c.b16 %v4160, %v4159
        %4177 = vmatprep.subr.bf16.mxu0 0
        %4178 = vmatpush1.bf16.msra.mxu0 %v4161
        %4179 = vmatprep.subr.bf16.mxu0 0
        %4180 = vmatpush1.bf16.msra.mxu0 %v4162
        %4181 = vmatprep.subr.bf16.mxu0 0
        %4182 = vmatpush1.bf16.msra.mxu0 %v4163
        %4183 = vmatprep.subr.bf16.mxu0 0
        %4184 = vmatpush1.bf16.msra.mxu0 %v4164
        %4185 = vmatprep.subr.bf16.mxu0 0
        %4186 = vmatpush1.bf16.msra.mxu0 %v4165
        %4187 = vmatprep.subr.bf16.mxu0 0
        %4188 = vmatpush1.bf16.msra.mxu0 %v4166
        %4189 = vmatprep.subr.bf16.mxu0 0
        %4190 = vmatpush1.bf16.msra.mxu0 %v4167
        %4191 = vmatprep.subr.bf16.mxu0 0
        %4192 = vmatpush1.bf16.msra.mxu0 %v4168
        %4193 = vmatprep.subr.bf16.mxu0 0
        %4194 = vmatpush1.bf16.msra.mxu0 0
        %4195 = vmatprep.subr.bf16.mxu0 0
        %4196 = vmatpush1.bf16.msra.mxu0 0
        %4197 = vmatprep.subr.bf16.mxu0 0
        %4198 = vmatpush1.bf16.msra.mxu0 0
        %4199 = vmatprep.subr.bf16.mxu0 0
        %4200 = vmatpush1.bf16.msra.mxu0 0
        %4201 = vmatprep.subr.bf16.mxu0 0
        %4202 = vmatpush1.bf16.msra.mxu0 0
        %4203 = vmatprep.subr.bf16.mxu0 0
        %4204 = vmatpush1.bf16.msra.mxu0 0
        %4205 = vmatprep.subr.bf16.mxu0 0
        %4206 = vmatpush1.bf16.msra.mxu0 0
        %4207 = vmatprep.subr.bf16.mxu0 0
        %4208 = vmatpush1.bf16.msra.mxu0 0
        %4209 = vmatprep.mubr.bf16.mxu0 0
        %4210 = vmatmul.mubr.bf16.gmra.mrb[0].mxu0 %v4115
        %v4211 = vpop.f32.mrb[0].mxu0
        %v4212 = vadd.f32 0.0, %v4211
        %v4213 = vpop.f32.mrb[0].mxu0
        %v4214 = vpop.f32.mrb[0].mxu0
        %v4215 = vadd.f32 0.0, %v4214
        %v4216 = vpop.f32.mrb[0].mxu0
        %4217 = vmatprep.mubr.bf16.mxu0 0
        %4218 = vmatmul.mubr.bf16.gmra.mrb[0].mxu0 %v4117
        %v4219 = vpop.f32.mrb[0].mxu0
        %v4220 = vadd.f32 0.0, %v4219
        %v4221 = vpop.f32.mrb[0].mxu0
        %v4222 = vpop.f32.mrb[0].mxu0
        %v4223 = vadd.f32 0.0, %v4222
        %v4224 = vpop.f32.mrb[0].mxu0
        %4225 = vmatprep.mubr.bf16.mxu0 0
        %4226 = vmatmul.mubr.bf16.gmra.mrb[0].mxu0 %v4119
        %v4227 = vpop.f32.mrb[0].mxu0
        %v4228 = vadd.f32 0.0, %v4227
        %v4229 = vpop.f32.mrb[0].mxu0
        %v4230 = vpop.f32.mrb[0].mxu0
        %v4231 = vadd.f32 0.0, %v4230
        %v4232 = vpop.f32.mrb[0].mxu0
        %4233 = vmatprep.mubr.bf16.mxu0 0
        %4234 = vmatmul.mubr.bf16.gmra.mrb[0].mxu0 %v4121
        %v4235 = vpop.f32.mrb[0].mxu0
        %v4236 = vadd.f32 0.0, %v4235
        %v4237 = vpop.f32.mrb[0].mxu0
        %v4238 = vpop.f32.mrb[0].mxu0
        %v4239 = vadd.f32 0.0, %v4238
        %v4240 = vpop.f32.mrb[0].mxu0
        %4241 = vmatprep.mubr.bf16.mxu0 0
        %4242 = vmatmul.mubr.bf16.gmra.mrb[0].mxu0 %v4123
        %v4243 = vpop.f32.mrb[0].mxu0
        %v4244 = vadd.f32 0.0, %v4243
        %v4245 = vpop.f32.mrb[0].mxu0
        %v4246 = vpop.f32.mrb[0].mxu0
        %v4247 = vadd.f32 0.0, %v4246
        %v4248 = vpop.f32.mrb[0].mxu0
        %4249 = vdwg.mxu0
        %v4250 = vadd.f32 %v4085, %v4212
        %v4251 = vadd.f32 %v4086, %v4215
        %v4252 = vadd.f32 %v4087, %v4220
        %v4253 = vadd.f32 %v4088, %v4223
        %v4254 = vadd.f32 %v4089, %v4228
        %v4255 = vadd.f32 %v4090, %v4231
        %v4256 = vadd.f32 %v4091, %v4236
        %v4257 = vadd.f32 %v4092, %v4239
        %v4258 = vadd.f32 %v4093, %v4244
        %v4259 = vadd.f32 %v4094, %v4247
        %s4260 = scalar_lea.vmem [#allocation7], 448
        %v4261 = vld [vmem:[%s4260] sm:$0xf]
        %v4262 = vld [vmem:[%s4260 + $0x4] sm:$0xf]
        %v4263 = vld [vmem:[%s4260 + $0x8] sm:$0xf]
        %v4264 = vld [vmem:[%s4260 + $0xc] sm:$0xf]
        %v4265 = vld [vmem:[%s4260 + $0x10] sm:$0xf]
        %v4266 = vld [vmem:[%s4260 + $0x14] sm:$0xf]
        %v4267 = vld [vmem:[%s4260 + $0x18] sm:$0xf]
        %v4268 = vld [vmem:[%s4260 + $0x1c] sm:$0xf]
        %v4269 = vld [vmem:[%s4260 + $0x20] sm:$0xf]
        %v4270 = vld [vmem:[%s4260 + $0x24] sm:$0xf]
        %v4271 = vld [vmem:[%s4260 + $0x28] sm:$0xf]
        %v4272 = vld [vmem:[%s4260 + $0x2c] sm:$0xf]
        %v4273 = vld [vmem:[%s4260 + $0x30] sm:$0xf]
        %v4274 = vld [vmem:[%s4260 + $0x34] sm:$0xf]
        %v4275 = vld [vmem:[%s4260 + $0x38] sm:$0xf]
        %v4276 = vld [vmem:[%s4260 + $0x3c] sm:$0xf]
        %v4277 = vrot.slane %v3140, 2
        %v4278 = vrot.slane %v3136, 3
        %v4279 = vor.u32 %v4277, %v4278
        %v4280 = vrot.slane %v3148, 2
        %v4281 = vrot.slane %v3144, 3
        %v4282 = vor.u32 %v4280, %v4281
        %v4283 = vsel %vm2594, %v4279, %v4282
        %v4284 = vrot.slane %v3156, 2
        %v4285 = vrot.slane %v3152, 3
        %v4286 = vor.u32 %v4284, %v4285
        %v4287 = vsel %vm2594, %v4282, %v4286
        %v4288 = vrot.slane %v3164, 2
        %v4289 = vrot.slane %v3160, 3
        %v4290 = vor.u32 %v4288, %v4289
        %v4291 = vsel %vm2594, %v4286, %v4290
        %v4292 = vrot.slane %v3789, 2
        %v4293 = vrot.slane %v3168, 3
        %v4294 = vor.u32 %v4292, %v4293
        %v4295 = vsel %vm2594, %v4290, %v4294
        %v4297 = vshrl.u32 %v3094, 16
        %v4299 = vrot.slane %v4297, 2
        %v4300 = vshll.u32 %v3094, 16
        %v4302 = vrot.slane %v4300, 3
        %v4303 = vor.u32 %v4299, %v4302
        %v4304 = vsel %vm2594, %v4294, %v4303
        %v4326 = vunpack.c.l.b16 %v4261
        %v4327 = vunpack.c.l.b16 %v4262
        %v4328 = vunpack.c.l.b16 %v4263
        %v4329 = vunpack.c.l.b16 %v4264
        %v4330 = vunpack.c.l.b16 %v4265
        %v4331 = vunpack.c.l.b16 %v4266
        %v4332 = vunpack.c.l.b16 %v4267
        %v4333 = vunpack.c.l.b16 %v4268
        %v4334 = vunpack.c.l.b16 %v4269
        %v4335 = vunpack.c.l.b16 %v4270
        %v4336 = vunpack.c.l.b16 %v4271
        %v4337 = vunpack.c.l.b16 %v4272
        %v4338 = vunpack.c.l.b16 %v4273
        %v4339 = vunpack.c.l.b16 %v4274
        %v4340 = vunpack.c.l.b16 %v4275
        %v4341 = vunpack.c.l.b16 %v4276
        %v4342 = vpack.c.b16 %v4327, %v4326
        %v4343 = vpack.c.b16 %v4329, %v4328
        %v4344 = vpack.c.b16 %v4331, %v4330
        %v4345 = vpack.c.b16 %v4333, %v4332
        %v4346 = vpack.c.b16 %v4335, %v4334
        %v4347 = vpack.c.b16 %v4337, %v4336
        %v4348 = vpack.c.b16 %v4339, %v4338
        %v4349 = vpack.c.b16 %v4341, %v4340
        %4358 = vmatprep.subr.bf16.mxu0 0
        %4359 = vmatpush1.bf16.msra.mxu0 %v4342
        %4360 = vmatprep.subr.bf16.mxu0 0
        %4361 = vmatpush1.bf16.msra.mxu0 %v4343
        %4362 = vmatprep.subr.bf16.mxu0 0
        %4363 = vmatpush1.bf16.msra.mxu0 %v4344
        %4364 = vmatprep.subr.bf16.mxu0 0
        %4365 = vmatpush1.bf16.msra.mxu0 %v4345
        %4366 = vmatprep.subr.bf16.mxu0 0
        %4367 = vmatpush1.bf16.msra.mxu0 %v4346
        %4368 = vmatprep.subr.bf16.mxu0 0
        %4369 = vmatpush1.bf16.msra.mxu0 %v4347
        %4370 = vmatprep.subr.bf16.mxu0 0
        %4371 = vmatpush1.bf16.msra.mxu0 %v4348
        %4372 = vmatprep.subr.bf16.mxu0 0
        %4373 = vmatpush1.bf16.msra.mxu0 %v4349
        %4374 = vmatprep.subr.bf16.mxu0 0
        %4375 = vmatpush1.bf16.msra.mxu0 0
        %4376 = vmatprep.subr.bf16.mxu0 0
        %4377 = vmatpush1.bf16.msra.mxu0 0
        %4378 = vmatprep.subr.bf16.mxu0 0
        %4379 = vmatpush1.bf16.msra.mxu0 0
        %4380 = vmatprep.subr.bf16.mxu0 0
        %4381 = vmatpush1.bf16.msra.mxu0 0
        %4382 = vmatprep.subr.bf16.mxu0 0
        %4383 = vmatpush1.bf16.msra.mxu0 0
        %4384 = vmatprep.subr.bf16.mxu0 0
        %4385 = vmatpush1.bf16.msra.mxu0 0
        %4386 = vmatprep.subr.bf16.mxu0 0
        %4387 = vmatpush1.bf16.msra.mxu0 0
        %4388 = vmatprep.subr.bf16.mxu0 0
        %4389 = vmatpush1.bf16.msra.mxu0 0
        %4390 = vmatprep.mubr.bf16.mxu0 0
        %4391 = vmatmul.mubr.bf16.gmra.mrb[0].mxu0 %v4283
        %v4392 = vpop.f32.mrb[0].mxu0
        %v4393 = vadd.f32 0.0, %v4392
        %v4394 = vpop.f32.mrb[0].mxu0
        %v4395 = vpop.f32.mrb[0].mxu0
        %v4396 = vadd.f32 0.0, %v4395
        %v4397 = vpop.f32.mrb[0].mxu0
        %4398 = vmatprep.mubr.bf16.mxu0 0
        %4399 = vmatmul.mubr.bf16.gmra.mrb[0].mxu0 %v4287
        %v4400 = vpop.f32.mrb[0].mxu0
        %v4401 = vadd.f32 0.0, %v4400
        %v4402 = vpop.f32.mrb[0].mxu0
        %v4403 = vpop.f32.mrb[0].mxu0
        %v4404 = vadd.f32 0.0, %v4403
        %v4405 = vpop.f32.mrb[0].mxu0
        %4406 = vmatprep.mubr.bf16.mxu0 0
        %4407 = vmatmul.mubr.bf16.gmra.mrb[0].mxu0 %v4291
        %v4408 = vpop.f32.mrb[0].mxu0
        %v4409 = vadd.f32 0.0, %v4408
        %v4410 = vpop.f32.mrb[0].mxu0
        %v4411 = vpop.f32.mrb[0].mxu0
        %v4412 = vadd.f32 0.0, %v4411
        %v4413 = vpop.f32.mrb[0].mxu0
        %4414 = vmatprep.mubr.bf16.mxu0 0
        %4415 = vmatmul.mubr.bf16.gmra.mrb[0].mxu0 %v4295
        %v4416 = vpop.f32.mrb[0].mxu0
        %v4417 = vadd.f32 0.0, %v4416
        %v4418 = vpop.f32.mrb[0].mxu0
        %v4419 = vpop.f32.mrb[0].mxu0
        %v4420 = vadd.f32 0.0, %v4419
        %v4421 = vpop.f32.mrb[0].mxu0
        %4422 = vmatprep.mubr.bf16.mxu0 0
        %4423 = vmatmul.mubr.bf16.gmra.mrb[0].mxu0 %v4304
        %v4424 = vpop.f32.mrb[0].mxu0
        %v4425 = vadd.f32 0.0, %v4424
        %v4426 = vpop.f32.mrb[0].mxu0
        %v4427 = vpop.f32.mrb[0].mxu0
        %v4428 = vadd.f32 0.0, %v4427
        %v4429 = vpop.f32.mrb[0].mxu0
        %4430 = vdwg.mxu0
        %v4431 = vadd.f32 %v4250, %v4393
        %v4432 = vadd.f32 %v4251, %v4396
        %v4433 = vadd.f32 %v4252, %v4401
        %v4434 = vadd.f32 %v4253, %v4404
        %v4435 = vadd.f32 %v4254, %v4409
        %v4436 = vadd.f32 %v4255, %v4412
        %v4437 = vadd.f32 %v4256, %v4417
        %v4438 = vadd.f32 %v4257, %v4420
        %v4439 = vadd.f32 %v4258, %v4425
        %v4440 = vadd.f32 %v4259, %v4428
        %s4441 = scalar_lea.vmem [#allocation7], 512
        %v4442 = vld [vmem:[%s4441] sm:$0xf]
        %v4443 = vld [vmem:[%s4441 + $0x4] sm:$0xf]
        %v4444 = vld [vmem:[%s4441 + $0x8] sm:$0xf]
        %v4445 = vld [vmem:[%s4441 + $0xc] sm:$0xf]
        %v4446 = vld [vmem:[%s4441 + $0x10] sm:$0xf]
        %v4447 = vld [vmem:[%s4441 + $0x14] sm:$0xf]
        %v4448 = vld [vmem:[%s4441 + $0x18] sm:$0xf]
        %v4449 = vld [vmem:[%s4441 + $0x1c] sm:$0xf]
        %v4450 = vld [vmem:[%s4441 + $0x20] sm:$0xf]
        %v4451 = vld [vmem:[%s4441 + $0x24] sm:$0xf]
        %v4452 = vld [vmem:[%s4441 + $0x28] sm:$0xf]
        %v4453 = vld [vmem:[%s4441 + $0x2c] sm:$0xf]
        %v4454 = vld [vmem:[%s4441 + $0x30] sm:$0xf]
        %v4455 = vld [vmem:[%s4441 + $0x34] sm:$0xf]
        %v4456 = vld [vmem:[%s4441 + $0x38] sm:$0xf]
        %v4457 = vld [vmem:[%s4441 + $0x3c] sm:$0xf]
        %v4458 = vrot.slane %v3089, 3
        %v4459 = vrot.slane %v3090, 3
        %v4460 = vsel %vm2776, %v4458, %v4459
        %v4461 = vrot.slane %v3091, 3
        %v4462 = vsel %vm2776, %v4459, %v4461
        %v4463 = vrot.slane %v3092, 3
        %v4464 = vsel %vm2776, %v4461, %v4463
        %v4465 = vrot.slane %v3093, 3
        %v4466 = vsel %vm2776, %v4463, %v4465
        %v4467 = vrot.slane %v3094, 3
        %v4468 = vsel %vm2776, %v4465, %v4467
        %v4490 = vunpack.c.l.b16 %v4442
        %v4491 = vunpack.c.l.b16 %v4443
        %v4492 = vunpack.c.l.b16 %v4444
        %v4493 = vunpack.c.l.b16 %v4445
        %v4494 = vunpack.c.l.b16 %v4446
        %v4495 = vunpack.c.l.b16 %v4447
        %v4496 = vunpack.c.l.b16 %v4448
        %v4497 = vunpack.c.l.b16 %v4449
        %v4498 = vunpack.c.l.b16 %v4450
        %v4499 = vunpack.c.l.b16 %v4451
        %v4500 = vunpack.c.l.b16 %v4452
        %v4501 = vunpack.c.l.b16 %v4453
        %v4502 = vunpack.c.l.b16 %v4454
        %v4503 = vunpack.c.l.b16 %v4455
        %v4504 = vunpack.c.l.b16 %v4456
        %v4505 = vunpack.c.l.b16 %v4457
        %v4506 = vpack.c.b16 %v4491, %v4490
        %v4507 = vpack.c.b16 %v4493, %v4492
        %v4508 = vpack.c.b16 %v4495, %v4494
        %v4509 = vpack.c.b16 %v4497, %v4496
        %v4510 = vpack.c.b16 %v4499, %v4498
        %v4511 = vpack.c.b16 %v4501, %v4500
        %v4512 = vpack.c.b16 %v4503, %v4502
        %v4513 = vpack.c.b16 %v4505, %v4504
        %4522 = vmatprep.subr.bf16.mxu0 0
        %4523 = vmatpush1.bf16.msra.mxu0 %v4506
        %4524 = vmatprep.subr.bf16.mxu0 0
        %4525 = vmatpush1.bf16.msra.mxu0 %v4507
        %4526 = vmatprep.subr.bf16.mxu0 0
        %4527 = vmatpush1.bf16.msra.mxu0 %v4508
        %4528 = vmatprep.subr.bf16.mxu0 0
        %4529 = vmatpush1.bf16.msra.mxu0 %v4509
        %4530 = vmatprep.subr.bf16.mxu0 0
        %4531 = vmatpush1.bf16.msra.mxu0 %v4510
        %4532 = vmatprep.subr.bf16.mxu0 0
        %4533 = vmatpush1.bf16.msra.mxu0 %v4511
        %4534 = vmatprep.subr.bf16.mxu0 0
        %4535 = vmatpush1.bf16.msra.mxu0 %v4512
        %4536 = vmatprep.subr.bf16.mxu0 0
        %4537 = vmatpush1.bf16.msra.mxu0 %v4513
        %4538 = vmatprep.subr.bf16.mxu0 0
        %4539 = vmatpush1.bf16.msra.mxu0 0
        %4540 = vmatprep.subr.bf16.mxu0 0
        %4541 = vmatpush1.bf16.msra.mxu0 0
        %4542 = vmatprep.subr.bf16.mxu0 0
        %4543 = vmatpush1.bf16.msra.mxu0 0
        %4544 = vmatprep.subr.bf16.mxu0 0
        %4545 = vmatpush1.bf16.msra.mxu0 0
        %4546 = vmatprep.subr.bf16.mxu0 0
        %4547 = vmatpush1.bf16.msra.mxu0 0
        %4548 = vmatprep.subr.bf16.mxu0 0
        %4549 = vmatpush1.bf16.msra.mxu0 0
        %4550 = vmatprep.subr.bf16.mxu0 0
        %4551 = vmatpush1.bf16.msra.mxu0 0
        %4552 = vmatprep.subr.bf16.mxu0 0
        %4553 = vmatpush1.bf16.msra.mxu0 0
        %4554 = vmatprep.mubr.bf16.mxu0 0
        %4555 = vmatmul.mubr.bf16.gmra.mrb[0].mxu0 %v4460
        %v4556 = vpop.f32.mrb[0].mxu0
        %v4557 = vadd.f32 0.0, %v4556
        %v4558 = vpop.f32.mrb[0].mxu0
        %v4559 = vpop.f32.mrb[0].mxu0
        %v4560 = vadd.f32 0.0, %v4559
        %v4561 = vpop.f32.mrb[0].mxu0
        %4562 = vmatprep.mubr.bf16.mxu0 0
        %4563 = vmatmul.mubr.bf16.gmra.mrb[0].mxu0 %v4462
        %v4564 = vpop.f32.mrb[0].mxu0
        %v4565 = vadd.f32 0.0, %v4564
        %v4566 = vpop.f32.mrb[0].mxu0
        %v4567 = vpop.f32.mrb[0].mxu0
        %v4568 = vadd.f32 0.0, %v4567
        %v4569 = vpop.f32.mrb[0].mxu0
        %4570 = vmatprep.mubr.bf16.mxu0 0
        %4571 = vmatmul.mubr.bf16.gmra.mrb[0].mxu0 %v4464
        %v4572 = vpop.f32.mrb[0].mxu0
        %v4573 = vadd.f32 0.0, %v4572
        %v4574 = vpop.f32.mrb[0].mxu0
        %v4575 = vpop.f32.mrb[0].mxu0
        %v4576 = vadd.f32 0.0, %v4575
        %v4577 = vpop.f32.mrb[0].mxu0
        %4578 = vmatprep.mubr.bf16.mxu0 0
        %4579 = vmatmul.mubr.bf16.gmra.mrb[0].mxu0 %v4466
        %v4580 = vpop.f32.mrb[0].mxu0
        %v4581 = vadd.f32 0.0, %v4580
        %v4582 = vpop.f32.mrb[0].mxu0
        %v4583 = vpop.f32.mrb[0].mxu0
        %v4584 = vadd.f32 0.0, %v4583
        %v4585 = vpop.f32.mrb[0].mxu0
        %4586 = vmatprep.mubr.bf16.mxu0 0
        %4587 = vmatmul.mubr.bf16.gmra.mrb[0].mxu0 %v4468
        %v4588 = vpop.f32.mrb[0].mxu0
        %v4589 = vadd.f32 0.0, %v4588
        %v4590 = vpop.f32.mrb[0].mxu0
        %v4591 = vpop.f32.mrb[0].mxu0
        %v4592 = vadd.f32 0.0, %v4591
        %v4593 = vpop.f32.mrb[0].mxu0
        %4594 = vdwg.mxu0
        %v4595 = vadd.f32 %v4431, %v4557
        %v4596 = vadd.f32 %v4432, %v4560
        %v4597 = vadd.f32 %v4433, %v4565
        %v4598 = vadd.f32 %v4434, %v4568
        %v4599 = vadd.f32 %v4435, %v4573
        %v4600 = vadd.f32 %v4436, %v4576
        %v4601 = vadd.f32 %v4437, %v4581
        %v4602 = vadd.f32 %v4438, %v4584
        %v4603 = vadd.f32 %v4439, %v4589
        %v4604 = vadd.f32 %v4440, %v4592
        %v4605 = vlaneseq
        %v4606 = vshrl.u32 %v4605, 7
        %v4607 = vsub.s32 6, %v4606
        %v4608 = vrot.slane %v390, %v4607
        %v4609 = vmul.f32 %v4595, %v4608
        %v4610 = vmul.f32 %v4596, %v4608
        %v4611 = vmul.f32 %v4597, %v4608
        %v4612 = vmul.f32 %v4598, %v4608
        %v4613 = vmul.f32 %v4599, %v4608
        %v4614 = vmul.f32 %v4600, %v4608
        %v4615 = vmul.f32 %v4601, %v4608
        %v4616 = vmul.f32 %v4602, %v4608
        %v4617 = vmul.f32 %v4603, %v4608
        %v4618 = vmul.f32 %v4604, %v4608
        %v4619 = vlaneseq
        %v4620 = vshrl.u32 %v4619, 7
        %v4621 = vsub.s32 7, %v4620
        %v4622 = vrot.slane %v390, %v4621
        %v4623 = vadd.f32 %v4609, %v4622
        %v4624 = vadd.f32 %v4610, %v4622
        %v4625 = vadd.f32 %v4611, %v4622
        %v4626 = vadd.f32 %v4612, %v4622
        %v4627 = vadd.f32 %v4613, %v4622
        %v4628 = vadd.f32 %v4614, %v4622
        %v4629 = vadd.f32 %v4615, %v4622
        %v4630 = vadd.f32 %v4616, %v4622
        %v4631 = vadd.f32 %v4617, %v4622
        %v4632 = vadd.f32 %v4618, %v4622
        %v4633 = vxor.u32 %v4623, 2147483648
        %v4634 = vxor.u32 %v4624, 2147483648
        %v4635 = vxor.u32 %v4625, 2147483648
        %v4636 = vxor.u32 %v4626, 2147483648
        %v4637 = vxor.u32 %v4627, 2147483648
        %v4638 = vxor.u32 %v4628, 2147483648
        %v4639 = vxor.u32 %v4629, 2147483648
        %v4640 = vxor.u32 %v4630, 2147483648
        %v4641 = vxor.u32 %v4631, 2147483648
        %v4642 = vxor.u32 %v4632, 2147483648
        %v4643 = vmul.f32 %v4633, 1.442695
        %v4644 = vpow.pop %v4643
        %v4645 = vmul.f32 %v4634, 1.442695
        %v4646 = vpow.pop %v4645
        %v4647 = vmul.f32 %v4635, 1.442695
        %v4648 = vpow.pop %v4647
        %v4649 = vmul.f32 %v4636, 1.442695
        %v4650 = vpow.pop %v4649
        %v4651 = vmul.f32 %v4637, 1.442695
        %v4652 = vpow.pop %v4651
        %v4653 = vmul.f32 %v4638, 1.442695
        %v4654 = vpow.pop %v4653
        %v4655 = vmul.f32 %v4639, 1.442695
        %v4656 = vpow.pop %v4655
        %v4657 = vmul.f32 %v4640, 1.442695
        %v4658 = vpow.pop %v4657
        %v4659 = vmul.f32 %v4641, 1.442695
        %v4660 = vpow.pop %v4659
        %v4661 = vmul.f32 %v4642, 1.442695
        %v4662 = vpow.pop %v4661
        %v4663 = vadd.f32 %v4644, 1.0
        %v4664 = vadd.f32 %v4646, 1.0
        %v4665 = vadd.f32 %v4648, 1.0
        %v4666 = vadd.f32 %v4650, 1.0
        %v4667 = vadd.f32 %v4652, 1.0
        %v4668 = vadd.f32 %v4654, 1.0
        %v4669 = vadd.f32 %v4656, 1.0
        %v4670 = vadd.f32 %v4658, 1.0
        %v4671 = vadd.f32 %v4660, 1.0
        %v4672 = vadd.f32 %v4662, 1.0
        %v4673 = vrcp.pop %v4663
        %v4674 = vmul.f32 1.0, %v4673
        %v4675 = vrcp.pop %v4664
        %v4676 = vmul.f32 1.0, %v4675
        %v4677 = vrcp.pop %v4665
        %v4678 = vmul.f32 1.0, %v4677
        %v4679 = vrcp.pop %v4666
        %v4680 = vmul.f32 1.0, %v4679
        %v4681 = vrcp.pop %v4667
        %v4682 = vmul.f32 1.0, %v4681
        %v4683 = vrcp.pop %v4668
        %v4684 = vmul.f32 1.0, %v4683
        %v4685 = vrcp.pop %v4669
        %v4686 = vmul.f32 1.0, %v4685
        %v4687 = vrcp.pop %v4670
        %v4688 = vmul.f32 1.0, %v4687
        %v4689 = vrcp.pop %v4671
        %v4690 = vmul.f32 1.0, %v4689
        %v4691 = vrcp.pop %v4672
        %v4692 = vmul.f32 1.0, %v4691
        %v4693 = vmul.f32 %v4623, %v4674
        %v4694 = vmul.f32 %v4624, %v4676
        %v4695 = vmul.f32 %v4625, %v4678
        %v4696 = vmul.f32 %v4626, %v4680
        %v4697 = vmul.f32 %v4627, %v4682
        %v4698 = vmul.f32 %v4628, %v4684
        %v4699 = vmul.f32 %v4629, %v4686
        %v4700 = vmul.f32 %v4630, %v4688
        %v4701 = vmul.f32 %v4631, %v4690
        %v4702 = vmul.f32 %v4632, %v4692
        %v4703 = vpack.c.bf16 %v4694, %v4693
        %v4704 = vpack.c.bf16 %v4696, %v4695
        %v4705 = vpack.c.bf16 %v4698, %v4697
        %v4706 = vpack.c.bf16 %v4700, %v4699
        %v4707 = vpack.c.bf16 %v4702, %v4701
        %s4708 = scalar_lea.vmem %s6, 128
        %v4709 = vld [vmem:[%s4708] sm:$0xf]
        %v4710 = vld [vmem:[%s4708 + $0x4] sm:$0xf]
        %v4711 = vld [vmem:[%s4708 + $0x8] sm:$0xf]
        %v4712 = vld [vmem:[%s4708 + $0xc] sm:$0xf]
        %v4713 = vld [vmem:[%s4708 + $0x10] sm:$0xf]
        %v4714 = vld [vmem:[%s4708 + $0x14] sm:$0xf]
        %v4715 = vld [vmem:[%s4708 + $0x18] sm:$0xf]
        %v4716 = vld [vmem:[%s4708 + $0x1c] sm:$0xf]
        %v4717 = vld [vmem:[%s4708 + $0x20] sm:$0xf]
        %v4718 = vld [vmem:[%s4708 + $0x24] sm:$0xf]
        %v4719 = vld [vmem:[%s4708 + $0x28] sm:$0xf]
        %v4720 = vld [vmem:[%s4708 + $0x2c] sm:$0xf]
        %v4721 = vld [vmem:[%s4708 + $0x30] sm:$0xf]
        %v4722 = vld [vmem:[%s4708 + $0x34] sm:$0xf]
        %v4723 = vld [vmem:[%s4708 + $0x38] sm:$0xf]
        %v4724 = vld [vmem:[%s4708 + $0x3c] sm:$0xf]
        %v4741 = vunpack.c.l.b16 %v4709
        %v4742 = vunpack.c.l.b16 %v4710
        %v4743 = vunpack.c.l.b16 %v4711
        %v4744 = vunpack.c.l.b16 %v4712
        %v4745 = vunpack.c.l.b16 %v4713
        %v4746 = vunpack.c.l.b16 %v4714
        %v4747 = vunpack.c.l.b16 %v4715
        %v4748 = vunpack.c.l.b16 %v4716
        %v4749 = vunpack.c.l.b16 %v4717
        %v4750 = vunpack.c.l.b16 %v4718
        %v4751 = vunpack.c.l.b16 %v4719
        %v4752 = vunpack.c.l.b16 %v4720
        %v4753 = vunpack.c.l.b16 %v4721
        %v4754 = vunpack.c.l.b16 %v4722
        %v4755 = vunpack.c.l.b16 %v4723
        %v4756 = vunpack.c.l.b16 %v4724
        %v4757 = vpack.c.b16 %v4742, %v4741
        %v4758 = vpack.c.b16 %v4744, %v4743
        %v4759 = vpack.c.b16 %v4746, %v4745
        %v4760 = vpack.c.b16 %v4748, %v4747
        %v4761 = vpack.c.b16 %v4750, %v4749
        %v4762 = vpack.c.b16 %v4752, %v4751
        %v4763 = vpack.c.b16 %v4754, %v4753
        %v4764 = vpack.c.b16 %v4756, %v4755
        %4773 = vmatprep.subr.bf16.mxu0 0
        %4774 = vmatpush1.bf16.msra.mxu0 %v4757
        %4775 = vmatprep.subr.bf16.mxu0 0
        %4776 = vmatpush1.bf16.msra.mxu0 %v4758
        %4777 = vmatprep.subr.bf16.mxu0 0
        %4778 = vmatpush1.bf16.msra.mxu0 %v4759
        %4779 = vmatprep.subr.bf16.mxu0 0
        %4780 = vmatpush1.bf16.msra.mxu0 %v4760
        %4781 = vmatprep.subr.bf16.mxu0 0
        %4782 = vmatpush1.bf16.msra.mxu0 %v4761
        %4783 = vmatprep.subr.bf16.mxu0 0
        %4784 = vmatpush1.bf16.msra.mxu0 %v4762
        %4785 = vmatprep.subr.bf16.mxu0 0
        %4786 = vmatpush1.bf16.msra.mxu0 %v4763
        %4787 = vmatprep.subr.bf16.mxu0 0
        %4788 = vmatpush1.bf16.msra.mxu0 %v4764
        %4789 = vmatprep.subr.bf16.mxu0 0
        %4790 = vmatpush1.bf16.msra.mxu0 0
        %4791 = vmatprep.subr.bf16.mxu0 0
        %4792 = vmatpush1.bf16.msra.mxu0 0
        %4793 = vmatprep.subr.bf16.mxu0 0
        %4794 = vmatpush1.bf16.msra.mxu0 0
        %4795 = vmatprep.subr.bf16.mxu0 0
        %4796 = vmatpush1.bf16.msra.mxu0 0
        %4797 = vmatprep.subr.bf16.mxu0 0
        %4798 = vmatpush1.bf16.msra.mxu0 0
        %4799 = vmatprep.subr.bf16.mxu0 0
        %4800 = vmatpush1.bf16.msra.mxu0 0
        %4801 = vmatprep.subr.bf16.mxu0 0
        %4802 = vmatpush1.bf16.msra.mxu0 0
        %4803 = vmatprep.subr.bf16.mxu0 0
        %4804 = vmatpush1.bf16.msra.mxu0 0
        %4805 = vmatprep.mubr.bf16.mxu0 0
        %4806 = vmatmul.mubr.bf16.gmra.mrb[0].mxu0 %v4703
        %v4807 = vpop.f32.mrb[0].mxu0
        %v4808 = vadd.f32 0.0, %v4807
        %v4809 = vpop.f32.mrb[0].mxu0
        %v4810 = vpop.f32.mrb[0].mxu0
        %v4811 = vadd.f32 0.0, %v4810
        %v4812 = vpop.f32.mrb[0].mxu0
        %4813 = vmatprep.mubr.bf16.mxu0 0
        %4814 = vmatmul.mubr.bf16.gmra.mrb[0].mxu0 %v4704
        %v4815 = vpop.f32.mrb[0].mxu0
        %v4816 = vadd.f32 0.0, %v4815
        %v4817 = vpop.f32.mrb[0].mxu0
        %v4818 = vpop.f32.mrb[0].mxu0
        %v4819 = vadd.f32 0.0, %v4818
        %v4820 = vpop.f32.mrb[0].mxu0
        %4821 = vmatprep.mubr.bf16.mxu0 0
        %4822 = vmatmul.mubr.bf16.gmra.mrb[0].mxu0 %v4705
        %v4823 = vpop.f32.mrb[0].mxu0
        %v4824 = vadd.f32 0.0, %v4823
        %v4825 = vpop.f32.mrb[0].mxu0
        %v4826 = vpop.f32.mrb[0].mxu0
        %v4827 = vadd.f32 0.0, %v4826
        %v4828 = vpop.f32.mrb[0].mxu0
        %4829 = vmatprep.mubr.bf16.mxu0 0
        %4830 = vmatmul.mubr.bf16.gmra.mrb[0].mxu0 %v4706
        %v4831 = vpop.f32.mrb[0].mxu0
        %v4832 = vadd.f32 0.0, %v4831
        %v4833 = vpop.f32.mrb[0].mxu0
        %v4834 = vpop.f32.mrb[0].mxu0
        %v4835 = vadd.f32 0.0, %v4834
        %v4836 = vpop.f32.mrb[0].mxu0
        %4837 = vmatprep.mubr.bf16.mxu0 0
        %4838 = vmatmul.mubr.bf16.gmra.mrb[0].mxu0 %v4707
        %v4839 = vpop.f32.mrb[0].mxu0
        %v4840 = vadd.f32 0.0, %v4839
        %v4841 = vpop.f32.mrb[0].mxu0
        %v4842 = vpop.f32.mrb[0].mxu0
        %v4843 = vadd.f32 0.0, %v4842
        %v4844 = vpop.f32.mrb[0].mxu0
        %4845 = vdwg.mxu0
        %v4846 = vadd.f32 %v1413, %v4808
        %v4847 = vadd.f32 %v1416, %v4811
        %v4848 = vadd.f32 %v1421, %v4816
        %v4849 = vadd.f32 %v1424, %v4819
        %v4850 = vadd.f32 %v1429, %v4824
        %v4851 = vadd.f32 %v1432, %v4827
        %v4852 = vadd.f32 %v1437, %v4832
        %v4853 = vadd.f32 %v1440, %v4835
        %v4854 = vadd.f32 %v1445, %v4840
        %v4855 = vadd.f32 %v1448, %v4843
        %v4856 = vlaneseq
        %v4857 = vshrl.u32 %v4856, 7
        %v4858 = vsub.s32 0, %v4857
        %v4859 = vrot.slane %v391, %v4858
        %v4860 = vmul.f32 %v4846, %v4859
        %v4861 = vmul.f32 %v4847, %v4859
        %v4862 = vmul.f32 %v4848, %v4859
        %v4863 = vmul.f32 %v4849, %v4859
        %v4864 = vmul.f32 %v4850, %v4859
        %v4865 = vmul.f32 %v4851, %v4859
        %v4866 = vmul.f32 %v4852, %v4859
        %v4867 = vmul.f32 %v4853, %v4859
        %v4868 = vmul.f32 %v4854, %v4859
        %v4869 = vmul.f32 %v4855, %v4859
        %v4870 = vlaneseq
        %v4871 = vshrl.u32 %v4870, 7
        %v4872 = vsub.s32 1, %v4871
        %v4873 = vrot.slane %v391, %v4872
        %v4874 = vadd.f32 %v4860, %v4873
        %v4875 = vadd.f32 %v4861, %v4873
        %v4876 = vadd.f32 %v4862, %v4873
        %v4877 = vadd.f32 %v4863, %v4873
        %v4878 = vadd.f32 %v4864, %v4873
        %v4879 = vadd.f32 %v4865, %v4873
        %v4880 = vadd.f32 %v4866, %v4873
        %v4881 = vadd.f32 %v4867, %v4873
        %v4882 = vadd.f32 %v4868, %v4873
        %v4883 = vadd.f32 %v4869, %v4873
        %v4884 = vxor.u32 %v4874, 2147483648
        %v4885 = vxor.u32 %v4875, 2147483648
        %v4886 = vxor.u32 %v4876, 2147483648
        %v4887 = vxor.u32 %v4877, 2147483648
        %v4888 = vxor.u32 %v4878, 2147483648
        %v4889 = vxor.u32 %v4879, 2147483648
        %v4890 = vxor.u32 %v4880, 2147483648
        %v4891 = vxor.u32 %v4881, 2147483648
        %v4892 = vxor.u32 %v4882, 2147483648
        %v4893 = vxor.u32 %v4883, 2147483648
        %v4894 = vmul.f32 %v4884, 1.442695
        %v4895 = vpow.pop %v4894
        %v4896 = vmul.f32 %v4885, 1.442695
        %v4897 = vpow.pop %v4896
        %v4898 = vmul.f32 %v4886, 1.442695
        %v4899 = vpow.pop %v4898
        %v4900 = vmul.f32 %v4887, 1.442695
        %v4901 = vpow.pop %v4900
        %v4902 = vmul.f32 %v4888, 1.442695
        %v4903 = vpow.pop %v4902
        %v4904 = vmul.f32 %v4889, 1.442695
        %v4905 = vpow.pop %v4904
        %v4906 = vmul.f32 %v4890, 1.442695
        %v4907 = vpow.pop %v4906
        %v4908 = vmul.f32 %v4891, 1.442695
        %v4909 = vpow.pop %v4908
        %v4910 = vmul.f32 %v4892, 1.442695
        %v4911 = vpow.pop %v4910
        %v4912 = vmul.f32 %v4893, 1.442695
        %v4913 = vpow.pop %v4912
        %v4914 = vadd.f32 %v4895, 1.0
        %v4915 = vadd.f32 %v4897, 1.0
        %v4916 = vadd.f32 %v4899, 1.0
        %v4917 = vadd.f32 %v4901, 1.0
        %v4918 = vadd.f32 %v4903, 1.0
        %v4919 = vadd.f32 %v4905, 1.0
        %v4920 = vadd.f32 %v4907, 1.0
        %v4921 = vadd.f32 %v4909, 1.0
        %v4922 = vadd.f32 %v4911, 1.0
        %v4923 = vadd.f32 %v4913, 1.0
        %v4924 = vrcp.pop %v4914
        %v4925 = vmul.f32 1.0, %v4924
        %v4926 = vrcp.pop %v4915
        %v4927 = vmul.f32 1.0, %v4926
        %v4928 = vrcp.pop %v4916
        %v4929 = vmul.f32 1.0, %v4928
        %v4930 = vrcp.pop %v4917
        %v4931 = vmul.f32 1.0, %v4930
        %v4932 = vrcp.pop %v4918
        %v4933 = vmul.f32 1.0, %v4932
        %v4934 = vrcp.pop %v4919
        %v4935 = vmul.f32 1.0, %v4934
        %v4936 = vrcp.pop %v4920
        %v4937 = vmul.f32 1.0, %v4936
        %v4938 = vrcp.pop %v4921
        %v4939 = vmul.f32 1.0, %v4938
        %v4940 = vrcp.pop %v4922
        %v4941 = vmul.f32 1.0, %v4940
        %v4942 = vrcp.pop %v4923
        %v4943 = vmul.f32 1.0, %v4942
        %v4944 = vmul.f32 %v4874, %v4925
        %v4945 = vmul.f32 %v4875, %v4927
        %v4946 = vmul.f32 %v4876, %v4929
        %v4947 = vmul.f32 %v4877, %v4931
        %v4948 = vmul.f32 %v4878, %v4933
        %v4949 = vmul.f32 %v4879, %v4935
        %v4950 = vmul.f32 %v4880, %v4937
        %v4951 = vmul.f32 %v4881, %v4939
        %v4952 = vmul.f32 %v4882, %v4941
        %v4953 = vmul.f32 %v4883, %v4943
        %4954 = vst [vmem:[%s355] sm:$0xff] %v4944
        %4955 = vst [vmem:[%s355 + $0x8] sm:$0xff] %v4945
        %4956 = vst [vmem:[%s355 + $0x10] sm:$0xff] %v4946
        %4957 = vst [vmem:[%s355 + $0x18] sm:$0xff] %v4947
        %4958 = vst [vmem:[%s355 + $0x20] sm:$0xff] %v4948
        %4959 = vst [vmem:[%s355 + $0x28] sm:$0xff] %v4949
        %4960 = vst [vmem:[%s355 + $0x30] sm:$0xff] %v4950
        %4961 = vst [vmem:[%s355 + $0x38] sm:$0xff] %v4951
        %4962 = vst [vmem:[%s355 + $0x40] sm:$0xff] %v4952
        %4963 = vst [vmem:[%s355 + $0x48] sm:$0xff] %v4953
        %s4964 = sand.u32 %s227, 1
        %s4965 = scalar_lea.sflag [#allocation6], %s4964
        %s4966 = sand.u32 %s227, 1
        %s4967 = smul.addr %s4966, 80
        %s4968 = scalar_lea.vmem [#allocation9], %s4967
        // Predicated region
        $region65: #{tpu_custom_call.1} parent=55 // pred_check
          %p4969 = pneg %p237
        $region66: #{tpu_custom_call.1} parent=55 // pred_check_branch
          %4971 = sbr.rel (%p4969) target = $region68
        $region67: #{tpu_custom_call.1} parent=55 // pred_region
          %s4973 = ssub.s32 1280, 1280
          %4974 = vsyncadd %s4965, %s4973
          %s4975 = smul.addr %s25, 10
          %s4976 = smul.addr %s4975, 128
          %s4977 = scalar_lea.hbm %s9, %s4976
          %s4978 = sshll.u32 %s4968, 4
          %s4979 = int_to_ptr.vmem [resolvable:$true] %s4978
          %4984 = dma.vmem_to_hbm [thread:$0]  %s4979, 1280, %s4977, %s4965, 128, 128, 8
        $region68: #{tpu_custom_call.1} parent=55 // pred_fallthru
          _
      $region56: #{tpu_custom_call.1} parent=5 // pred_fallthru
        _
      %p4985 = scmp.le.s32.totalorder 2, %s20
      // Predicated region
      $region69: #{tpu_custom_call.1} parent=5 // pred_check
        %p4986 = pneg %p4985
      $region70: #{tpu_custom_call.1} parent=5 // pred_check_branch
        %4988 = sbr.rel (%p4986) target = $region72
      $region71: #{tpu_custom_call.1} parent=5 // pred_region
        %s4989 = ssub.s32 %s20, 2
        // Predicated region
        $region73: #{tpu_custom_call.1} parent=71 // pred_check
          %p4990 = pneg %p243
        $region74: #{tpu_custom_call.1} parent=71 // pred_check_branch
          %4992 = sbr.rel (%p4990) target = $region76
        $region75: #{tpu_custom_call.1} parent=71 // pred_region
          %s4993 = sand.u32 %s228, 1
          %s4994 = scalar_lea.sflag [#allocation6], %s4993
          %s4995 = sand.u32 %s228, 1
          %s4996 = smul.addr %s4995, 80
          %s4997 = scalar_lea.vmem [#allocation9], %s4996
          %4998 = dma.done %s4994, 1280
        $region76: #{tpu_custom_call.1} parent=71 // pred_fallthru
          _
      $region72: #{tpu_custom_call.1} parent=5 // pred_fallthru
        _
    $region6: #{tpu_custom_call.1} parent=1 // loop_footer
      %s24 = sadd.s32 1, %s20
    $region7: #{tpu_custom_call.1} parent=1 // loop_footer_branch
      %19 = sbr.rel target = $region3
    $region8: #{tpu_custom_call.1} parent=1 // loop_exit
      _
    %4999 = vsyncpa [#allocation5], 1
    %s5000 = scalar_lea.sflag [#allocation5], 1
    %5001 = vsyncpa %s5000, 1
    %5002 = vsyncpa [#allocation8], 1
    %5003 = vsyncpa [#allocation6], 1
    %s5004 = scalar_lea.sflag [#allocation6], 1
    %5005 = vsyncpa %s5004, 1

</llo_original>
